<compile_context>
chip_gen: v7x
topology: tpu7x:2x2x1
jax: 0.10.0
libtpu: 0.0.40
codegen_flags: <defaults>
</compile_context>

<pallas_src>
import functools

import jax
import jax.numpy as jnp
from jax.experimental import pallas as pl
from jax.experimental.pallas import tpu as pltpu


def _conv_stats_kernel(x_ref, w_ref, b_ref, y_ref, psum_ref, psumsq_ref,
                       xpad_ref, acc_ref, *, KH, KW, HO, WO, stride, dilation,
                       pad):
    """Direct conv for one batch element + per-step partial channel stats."""
    H, W, Cin = x_ref.shape[1], x_ref.shape[2], x_ref.shape[3]

    # In-kernel zero padding into a VMEM scratch (no padded activation in HBM).
    if pad > 0:
        xpad_ref[...] = jnp.zeros_like(xpad_ref)
    xpad_ref[pad:pad + H, pad:pad + W, :] = x_ref[0]

    # One MXU matmul per tap, accumulated into the f32 VMEM scratch.
    tap = 0
    for kh in range(KH):
        for kw in range(KW):
            h0, w0 = kh * dilation, kw * dilation
            if stride == 1:
                patch = xpad_ref[h0:h0 + HO, w0:w0 + WO, :]
            else:
                patch = xpad_ref[pl.ds(h0, HO, stride=stride),
                                 pl.ds(w0, WO, stride=stride), :]
            contrib = jnp.dot(patch.reshape(HO * WO, Cin), w_ref[kh, kw],
                              preferred_element_type=jnp.float32)
            if tap == 0:
                acc_ref[...] = contrib
            else:
                acc_ref[...] += contrib
            tap += 1

    acc = acc_ref[...] + b_ref[0][None, :]   # conv bias (zeros when bias=False)
    y_ref[0] = acc
    # Per-step partial batch statistics; reduced over N in the JAX glue.
    psum_ref[0] = jnp.sum(acc, axis=0, keepdims=True)
    psumsq_ref[0] = jnp.sum(acc * acc, axis=0, keepdims=True)


def _bn_relu_kernel(y_ref, scale_ref, shift_ref, o_ref, *, relu):
    # Lane-dense elementwise scale/shift (+ReLU); all f32 (v5e-safe).
    y = y_ref[...] * scale_ref[...] + shift_ref[...]
    if relu:
        y = jnp.maximum(y, 0.0)
    o_ref[...] = y


class BasicConvPallas:
    """JAX/Pallas re-implementation of BasicConv's forward pass (NCHW in/out)."""

    def __init__(self, in_planes, out_planes, kernel_size, stride=1, padding=0,
                 dilation=1, groups=1, relu=True, bn=True, bias=False,
                 key=jax.random.PRNGKey(0)):
        assert groups == 1  # TODO(synk): grouped conv not implemented
        self.in_planes = in_planes
        self.out_channels = out_planes
        self.k = kernel_size
        self.stride = stride
        self.padding = padding
        self.dilation = dilation
        self.relu = relu
        self.bn = bn
        self.eps = 1e-5

        kw_key, kb_key = jax.random.split(key)
        fan_in = in_planes * kernel_size * kernel_size
        bound = 1.0 / float(fan_in) ** 0.5
        # deterministic synthetic init (PyTorch would use kaiming-uniform)
        self.weight = jax.random.uniform(
            kw_key, (kernel_size, kernel_size, in_planes, out_planes),
            minval=-bound, maxval=bound, dtype=jnp.float32)  # HWIO
        if bias:
            self.bias = jax.random.uniform(
                kb_key, (out_planes,), minval=-bound, maxval=bound,
                dtype=jnp.float32)
        else:
            self.bias = jnp.zeros((out_planes,), jnp.float32)
        # BatchNorm2d affine params (PyTorch defaults: weight=1, bias=0)
        self.gamma = jnp.ones((out_planes,), jnp.float32)
        self.beta = jnp.zeros((out_planes,), jnp.float32)

        self._forward = jax.jit(self._forward_impl)

    def __call__(self, x_nchw):
        return self._forward(x_nchw)

    def _forward_impl(self, x_nchw):
        N, Cin, H, W = x_nchw.shape
        assert Cin == self.in_planes
        k, s, p, d = self.k, self.stride, self.padding, self.dilation
        Cout = self.out_channels
        HO = (H + 2 * p - d * (k - 1) - 1) // s + 1
        WO = (W + 2 * p - d * (k - 1) - 1) // s + 1
        Hp, Wp = H + 2 * p, W + 2 * p

        # NCHW -> NHWC compute layout (channels last); padding happens in-kernel.
        x = jnp.transpose(x_nchw, (0, 2, 3, 1)).astype(jnp.float32)
        b2d = self.bias.reshape(1, Cout)

        conv_kernel = functools.partial(
            _conv_stats_kernel, KH=k, KW=k, HO=HO, WO=WO, stride=s, dilation=d,
            pad=p)

        y, psum, psumsq = pl.pallas_call(
            conv_kernel,
            out_shape=(
                jax.ShapeDtypeStruct((N, HO * WO, Cout), jnp.float32),
                jax.ShapeDtypeStruct((N, 1, Cout), jnp.float32),
                jax.ShapeDtypeStruct((N, 1, Cout), jnp.float32),
            ),
            grid=(N,),
            in_specs=[
                pl.BlockSpec((1, H, W, Cin), lambda n: (n, 0, 0, 0)),
                pl.BlockSpec((k, k, Cin, Cout), lambda n: (0, 0, 0, 0)),
                pl.BlockSpec((1, Cout), lambda n: (0, 0)),
            ],
            out_specs=(
                pl.BlockSpec((1, HO * WO, Cout), lambda n: (n, 0, 0)),
                pl.BlockSpec((1, 1, Cout), lambda n: (n, 0, 0)),
                pl.BlockSpec((1, 1, Cout), lambda n: (n, 0, 0)),
            ),
            scratch_shapes=[
                pltpu.VMEM((Hp, Wp, Cin), jnp.float32),     # padded image
                pltpu.VMEM((HO * WO, Cout), jnp.float32),   # f32 accumulator
            ],
            compiler_params=pltpu.CompilerParams(
                dimension_semantics=("parallel",),
                vmem_limit_bytes=32 * 1024 * 1024),
        )(x, self.weight, b2d)

        # BatchNorm batch statistics (training-mode semantics of a freshly
        # constructed PyTorch module: biased variance) from per-step partials.
        if self.bn:
            count = jnp.float32(N * HO * WO)
            mean = jnp.sum(psum[:, 0, :], axis=0) / count
            var = jnp.sum(psumsq[:, 0, :], axis=0) / count - mean * mean
            var = jnp.maximum(var, 0.0)          # guard against cancellation
            scale = self.gamma / jnp.sqrt(var + self.eps)
            shift = self.beta - mean * scale
        else:
            scale = jnp.ones((Cout,), jnp.float32)
            shift = jnp.zeros((Cout,), jnp.float32)

        # Lane-dense elementwise pass: flatten to (N, HO*WO*Cout) rows and
        # broadcast scale/shift to matching lane-dense slabs (channel fastest).
        D = HO * WO * Cout
        y_flat = y.reshape(N, D)                          # contiguous, free
        scale_slab = jnp.tile(scale, HO * WO).reshape(1, D)
        shift_slab = jnp.tile(shift, HO * WO).reshape(1, D)

        # Process as many batch rows per grid step as comfortably fit in VMEM
        # (4x = in+out, double-buffered).
        nb = 1
        for cand in range(N, 0, -1):
            if N % cand == 0 and cand * D * 4 * 4 <= (8 << 20):
                nb = cand
                break
        # TODO(synk): for very large HO*WO*Cout also tile the lane dimension.

        bn_kernel = functools.partial(_bn_relu_kernel, relu=self.relu)
        out_flat = pl.pallas_call(
            bn_kernel,
            out_shape=jax.ShapeDtypeStruct((N, D), jnp.float32),
            grid=(N // nb,),
            in_specs=[
                pl.BlockSpec((nb, D), lambda i: (i, 0)),
                pl.BlockSpec((1, D), lambda i: (0, 0)),
                pl.BlockSpec((1, D), lambda i: (0, 0)),
            ],
            out_specs=pl.BlockSpec((nb, D), lambda i: (i, 0)),
            input_output_aliases={0: 0},
            compiler_params=pltpu.CompilerParams(
                dimension_semantics=("parallel",)),
        )(y_flat, scale_slab, shift_slab)

        # (N, HO*WO*Cout) -> (N, HO, WO, Cout) -> NCHW.
        out = out_flat.reshape(N, HO, WO, Cout)
        return jnp.transpose(out, (0, 3, 1, 2))


def _reference(module, x_nchw):
    """Pure-JAX reference for verification."""
    x = jnp.transpose(x_nchw, (0, 2, 3, 1)).astype(jnp.float32)
    y = jax.lax.conv_general_dilated(
        x, module.weight,
        window_strides=(module.stride, module.stride),
        padding=[(module.padding, module.padding)] * 2,
        rhs_dilation=(module.dilation, module.dilation),
        dimension_numbers=("NHWC", "HWIO", "NHWC"))
    y = y + module.bias
    if module.bn:
        mean = y.mean(axis=(0, 1, 2))
        var = y.var(axis=(0, 1, 2))
        y = (y - mean) / jnp.sqrt(var + module.eps) * module.gamma + module.beta
    if module.relu:
        y = jnp.maximum(y, 0.0)
    return jnp.transpose(y, (0, 3, 1, 2))


if __name__ == "__main__":
    key = jax.random.PRNGKey(0)
    xkey, wkey = jax.random.split(key)

    # BasicConv(in_planes=4, out_planes=8, kernel_size=3, stride=1, padding=1)
    module = BasicConvPallas(in_planes=4, out_planes=8, kernel_size=3,
                             stride=1, padding=1, relu=True, bn=True,
                             bias=False, key=wkey)

    x = jax.random.normal(xkey, (2, 4, 16, 16), dtype=jnp.float32)  # NCHW

    out = module(x)
    out = jax.block_until_ready(out)

    ref = _reference(module, x)
    assert out.shape == ref.shape == (2, 8, 16, 16)
    assert jnp.max(jnp.abs(out - ref)) < 1e-4

    print("KERNEL_OK")
</pallas_src>

<mosaic_0001>
module attributes {stable_mosaic.version = 11 : i64} {
  func.func @_conv_stats_kernel(%arg0: i32, %arg1: memref<1x16x16x4xf32, #tpu.memory_space<vmem>>, %arg2: memref<3x3x4x8xf32, #tpu.memory_space<vmem>>, %arg3: memref<1x8xf32, #tpu.memory_space<vmem>>, %arg4: memref<1x256x8xf32, #tpu.memory_space<vmem>>, %arg5: memref<1x1x8xf32, #tpu.memory_space<vmem>>, %arg6: memref<1x1x8xf32, #tpu.memory_space<vmem>>, %arg7: memref<18x18x4xf32, #tpu.memory_space<vmem>>, %arg8: memref<256x8xf32, #tpu.memory_space<vmem>>) attributes {dimension_semantics = [#tpu.dimension_semantics<parallel>], iteration_bounds = array<i64: 2>, scalar_prefetch = 0 : i64, scratch_operands = 2 : i64, tpu.core_type = #tpu.core_type<tc>, window_params = [{transform_indices = @transform_0, window_bounds = array<i64: 1, 16, 16, 4>}, {pipeline_mode = #tpu.pipeline_mode<synchronous>, transform_indices = @transform_1, window_bounds = array<i64: 3, 3, 4, 8>}, {pipeline_mode = #tpu.pipeline_mode<synchronous>, transform_indices = @transform_2, window_bounds = array<i64: 1, 8>}, {transform_indices = @transform_3, window_bounds = array<i64: 1, 256, 8>}, {transform_indices = @transform_4, window_bounds = array<i64: 1, 1, 8>}, {transform_indices = @transform_5, window_bounds = array<i64: 1, 1, 8>}]} {
    %cst = arith.constant 0.000000e+00 : f32
    %0 = vector.broadcast %cst : f32 to vector<18x18x4xf32>
    %c0 = arith.constant 0 : index
    %c0_0 = arith.constant 0 : index
    %c0_1 = arith.constant 0 : index
    %1 = vector.load %arg7[%c0, %c0_0, %c0_1] : memref<18x18x4xf32, #tpu.memory_space<vmem>>, vector<18x18x4xf32>
    tpu.vector_store %arg7[%c0, %c0_0, %c0_1], %0 {strides = array<i32>} : memref<18x18x4xf32, #tpu.memory_space<vmem>>, vector<18x18x4xf32>,
    %c0_2 = arith.constant 0 : index
    %c0_3 = arith.constant 0 : index
    %c0_4 = arith.constant 0 : index
    %c0_5 = arith.constant 0 : index
    %2 = vector.load %arg1[%c0_2, %c0_3, %c0_4, %c0_5] : memref<1x16x16x4xf32, #tpu.memory_space<vmem>>, vector<1x16x16x4xf32>
    %3 = vector.shape_cast %2 : vector<1x16x16x4xf32> to vector<16x16x4xf32>
    %c1 = arith.constant 1 : index
    %c1_6 = arith.constant 1 : index
    %c0_7 = arith.constant 0 : index
    %4 = vector.load %arg7[%c1, %c1_6, %c0_7] : memref<18x18x4xf32, #tpu.memory_space<vmem>>, vector<16x16x4xf32>
    tpu.vector_store %arg7[%c1, %c1_6, %c0_7], %3 {strides = array<i32>} : memref<18x18x4xf32, #tpu.memory_space<vmem>>, vector<16x16x4xf32>,
    %c0_8 = arith.constant 0 : index
    %c0_9 = arith.constant 0 : index
    %c0_10 = arith.constant 0 : index
    %5 = vector.load %arg7[%c0_8, %c0_9, %c0_10] : memref<18x18x4xf32, #tpu.memory_space<vmem>>, vector<16x16x4xf32>
    %6 = vector.shape_cast %5 : vector<16x16x4xf32> to vector<256x4xf32>
    %c0_11 = arith.constant 0 : index
    %c0_12 = arith.constant 0 : index
    %c0_13 = arith.constant 0 : index
    %c0_14 = arith.constant 0 : index
    %7 = vector.load %arg2[%c0_11, %c0_12, %c0_13, %c0_14] : memref<3x3x4x8xf32, #tpu.memory_space<vmem>>, vector<1x1x4x8xf32>
    %8 = vector.shape_cast %7 : vector<1x1x4x8xf32> to vector<4x8xf32>
    %cst_15 = arith.constant dense<0.000000e+00> : vector<256x8xf32>
    %9 = tpu.matmul %6, %8, %cst_15 {dimension_numbers = #tpu.dot_dimension_numbers<[1], [0], [0], [1], [0, 0, 1, 1], [], []>} : vector<256x4xf32>, vector<4x8xf32>, vector<256x8xf32> -> vector<256x8xf32>
    %c0_16 = arith.constant 0 : index
    %c0_17 = arith.constant 0 : index
    %10 = vector.load %arg8[%c0_16, %c0_17] : memref<256x8xf32, #tpu.memory_space<vmem>>, vector<256x8xf32>
    tpu.vector_store %arg8[%c0_16, %c0_17], %9 {strides = array<i32>} : memref<256x8xf32, #tpu.memory_space<vmem>>, vector<256x8xf32>,
    %c0_18 = arith.constant 0 : index
    %c1_19 = arith.constant 1 : index
    %c0_20 = arith.constant 0 : index
    %11 = vector.load %arg7[%c0_18, %c1_19, %c0_20] : memref<18x18x4xf32, #tpu.memory_space<vmem>>, vector<16x16x4xf32>
    %12 = vector.shape_cast %11 : vector<16x16x4xf32> to vector<256x4xf32>
    %c0_21 = arith.constant 0 : index
    %c1_22 = arith.constant 1 : index
    %c0_23 = arith.constant 0 : index
    %c0_24 = arith.constant 0 : index
    %13 = vector.load %arg2[%c0_21, %c1_22, %c0_23, %c0_24] : memref<3x3x4x8xf32, #tpu.memory_space<vmem>>, vector<1x1x4x8xf32>
    %14 = vector.shape_cast %13 : vector<1x1x4x8xf32> to vector<4x8xf32>
    %cst_25 = arith.constant dense<0.000000e+00> : vector<256x8xf32>
    %15 = tpu.matmul %12, %14, %cst_25 {dimension_numbers = #tpu.dot_dimension_numbers<[1], [0], [0], [1], [0, 0, 1, 1], [], []>} : vector<256x4xf32>, vector<4x8xf32>, vector<256x8xf32> -> vector<256x8xf32>
    %c0_26 = arith.constant 0 : index
    %c0_27 = arith.constant 0 : index
    %16 = vector.load %arg8[%c0_26, %c0_27] : memref<256x8xf32, #tpu.memory_space<vmem>>, vector<256x8xf32>
    %17 = arith.addf %16, %15 : vector<256x8xf32>
    %c0_28 = arith.constant 0 : index
    %c0_29 = arith.constant 0 : index
    %18 = vector.load %arg8[%c0_28, %c0_29] : memref<256x8xf32, #tpu.memory_space<vmem>>, vector<256x8xf32>
    tpu.vector_store %arg8[%c0_28, %c0_29], %17 {strides = array<i32>} : memref<256x8xf32, #tpu.memory_space<vmem>>, vector<256x8xf32>,
    %c0_30 = arith.constant 0 : index
    %c2 = arith.constant 2 : index
    %c0_31 = arith.constant 0 : index
    %19 = vector.load %arg7[%c0_30, %c2, %c0_31] : memref<18x18x4xf32, #tpu.memory_space<vmem>>, vector<16x16x4xf32>
    %20 = vector.shape_cast %19 : vector<16x16x4xf32> to vector<256x4xf32>
    %c0_32 = arith.constant 0 : index
    %c2_33 = arith.constant 2 : index
    %c0_34 = arith.constant 0 : index
    %c0_35 = arith.constant 0 : index
    %21 = vector.load %arg2[%c0_32, %c2_33, %c0_34, %c0_35] : memref<3x3x4x8xf32, #tpu.memory_space<vmem>>, vector<1x1x4x8xf32>
    %22 = vector.shape_cast %21 : vector<1x1x4x8xf32> to vector<4x8xf32>
    %cst_36 = arith.constant dense<0.000000e+00> : vector<256x8xf32>
    %23 = tpu.matmul %20, %22, %cst_36 {dimension_numbers = #tpu.dot_dimension_numbers<[1], [0], [0], [1], [0, 0, 1, 1], [], []>} : vector<256x4xf32>, vector<4x8xf32>, vector<256x8xf32> -> vector<256x8xf32>
    %c0_37 = arith.constant 0 : index
    %c0_38 = arith.constant 0 : index
    %24 = vector.load %arg8[%c0_37, %c0_38] : memref<256x8xf32, #tpu.memory_space<vmem>>, vector<256x8xf32>
    %25 = arith.addf %24, %23 : vector<256x8xf32>
    %c0_39 = arith.constant 0 : index
    %c0_40 = arith.constant 0 : index
    %26 = vector.load %arg8[%c0_39, %c0_40] : memref<256x8xf32, #tpu.memory_space<vmem>>, vector<256x8xf32>
    tpu.vector_store %arg8[%c0_39, %c0_40], %25 {strides = array<i32>} : memref<256x8xf32, #tpu.memory_space<vmem>>, vector<256x8xf32>,
    %c1_41 = arith.constant 1 : index
    %c0_42 = arith.constant 0 : index
    %c0_43 = arith.constant 0 : index
    %27 = vector.load %arg7[%c1_41, %c0_42, %c0_43] : memref<18x18x4xf32, #tpu.memory_space<vmem>>, vector<16x16x4xf32>
    %28 = vector.shape_cast %27 : vector<16x16x4xf32> to vector<256x4xf32>
    %c1_44 = arith.constant 1 : index
    %c0_45 = arith.constant 0 : index
    %c0_46 = arith.constant 0 : index
    %c0_47 = arith.constant 0 : index
    %29 = vector.load %arg2[%c1_44, %c0_45, %c0_46, %c0_47] : memref<3x3x4x8xf32, #tpu.memory_space<vmem>>, vector<1x1x4x8xf32>
    %30 = vector.shape_cast %29 : vector<1x1x4x8xf32> to vector<4x8xf32>
    %cst_48 = arith.constant dense<0.000000e+00> : vector<256x8xf32>
    %31 = tpu.matmul %28, %30, %cst_48 {dimension_numbers = #tpu.dot_dimension_numbers<[1], [0], [0], [1], [0, 0, 1, 1], [], []>} : vector<256x4xf32>, vector<4x8xf32>, vector<256x8xf32> -> vector<256x8xf32>
    %c0_49 = arith.constant 0 : index
    %c0_50 = arith.constant 0 : index
    %32 = vector.load %arg8[%c0_49, %c0_50] : memref<256x8xf32, #tpu.memory_space<vmem>>, vector<256x8xf32>
    %33 = arith.addf %32, %31 : vector<256x8xf32>
    %c0_51 = arith.constant 0 : index
    %c0_52 = arith.constant 0 : index
    %34 = vector.load %arg8[%c0_51, %c0_52] : memref<256x8xf32, #tpu.memory_space<vmem>>, vector<256x8xf32>
    tpu.vector_store %arg8[%c0_51, %c0_52], %33 {strides = array<i32>} : memref<256x8xf32, #tpu.memory_space<vmem>>, vector<256x8xf32>,
    %c1_53 = arith.constant 1 : index
    %c1_54 = arith.constant 1 : index
    %c0_55 = arith.constant 0 : index
    %35 = vector.load %arg7[%c1_53, %c1_54, %c0_55] : memref<18x18x4xf32, #tpu.memory_space<vmem>>, vector<16x16x4xf32>
    %36 = vector.shape_cast %35 : vector<16x16x4xf32> to vector<256x4xf32>
    %c1_56 = arith.constant 1 : index
    %c1_57 = arith.constant 1 : index
    %c0_58 = arith.constant 0 : index
    %c0_59 = arith.constant 0 : index
    %37 = vector.load %arg2[%c1_56, %c1_57, %c0_58, %c0_59] : memref<3x3x4x8xf32, #tpu.memory_space<vmem>>, vector<1x1x4x8xf32>
    %38 = vector.shape_cast %37 : vector<1x1x4x8xf32> to vector<4x8xf32>
    %cst_60 = arith.constant dense<0.000000e+00> : vector<256x8xf32>
    %39 = tpu.matmul %36, %38, %cst_60 {dimension_numbers = #tpu.dot_dimension_numbers<[1], [0], [0], [1], [0, 0, 1, 1], [], []>} : vector<256x4xf32>, vector<4x8xf32>, vector<256x8xf32> -> vector<256x8xf32>
    %c0_61 = arith.constant 0 : index
    %c0_62 = arith.constant 0 : index
    %40 = vector.load %arg8[%c0_61, %c0_62] : memref<256x8xf32, #tpu.memory_space<vmem>>, vector<256x8xf32>
    %41 = arith.addf %40, %39 : vector<256x8xf32>
    %c0_63 = arith.constant 0 : index
    %c0_64 = arith.constant 0 : index
    %42 = vector.load %arg8[%c0_63, %c0_64] : memref<256x8xf32, #tpu.memory_space<vmem>>, vector<256x8xf32>
    tpu.vector_store %arg8[%c0_63, %c0_64], %41 {strides = array<i32>} : memref<256x8xf32, #tpu.memory_space<vmem>>, vector<256x8xf32>,
    %c1_65 = arith.constant 1 : index
    %c2_66 = arith.constant 2 : index
    %c0_67 = arith.constant 0 : index
    %43 = vector.load %arg7[%c1_65, %c2_66, %c0_67] : memref<18x18x4xf32, #tpu.memory_space<vmem>>, vector<16x16x4xf32>
    %44 = vector.shape_cast %43 : vector<16x16x4xf32> to vector<256x4xf32>
    %c1_68 = arith.constant 1 : index
    %c2_69 = arith.constant 2 : index
    %c0_70 = arith.constant 0 : index
    %c0_71 = arith.constant 0 : index
    %45 = vector.load %arg2[%c1_68, %c2_69, %c0_70, %c0_71] : memref<3x3x4x8xf32, #tpu.memory_space<vmem>>, vector<1x1x4x8xf32>
    %46 = vector.shape_cast %45 : vector<1x1x4x8xf32> to vector<4x8xf32>
    %cst_72 = arith.constant dense<0.000000e+00> : vector<256x8xf32>
    %47 = tpu.matmul %44, %46, %cst_72 {dimension_numbers = #tpu.dot_dimension_numbers<[1], [0], [0], [1], [0, 0, 1, 1], [], []>} : vector<256x4xf32>, vector<4x8xf32>, vector<256x8xf32> -> vector<256x8xf32>
    %c0_73 = arith.constant 0 : index
    %c0_74 = arith.constant 0 : index
    %48 = vector.load %arg8[%c0_73, %c0_74] : memref<256x8xf32, #tpu.memory_space<vmem>>, vector<256x8xf32>
    %49 = arith.addf %48, %47 : vector<256x8xf32>
    %c0_75 = arith.constant 0 : index
    %c0_76 = arith.constant 0 : index
    %50 = vector.load %arg8[%c0_75, %c0_76] : memref<256x8xf32, #tpu.memory_space<vmem>>, vector<256x8xf32>
    tpu.vector_store %arg8[%c0_75, %c0_76], %49 {strides = array<i32>} : memref<256x8xf32, #tpu.memory_space<vmem>>, vector<256x8xf32>,
    %c2_77 = arith.constant 2 : index
    %c0_78 = arith.constant 0 : index
    %c0_79 = arith.constant 0 : index
    %51 = vector.load %arg7[%c2_77, %c0_78, %c0_79] : memref<18x18x4xf32, #tpu.memory_space<vmem>>, vector<16x16x4xf32>
    %52 = vector.shape_cast %51 : vector<16x16x4xf32> to vector<256x4xf32>
    %c2_80 = arith.constant 2 : index
    %c0_81 = arith.constant 0 : index
    %c0_82 = arith.constant 0 : index
    %c0_83 = arith.constant 0 : index
    %53 = vector.load %arg2[%c2_80, %c0_81, %c0_82, %c0_83] : memref<3x3x4x8xf32, #tpu.memory_space<vmem>>, vector<1x1x4x8xf32>
    %54 = vector.shape_cast %53 : vector<1x1x4x8xf32> to vector<4x8xf32>
    %cst_84 = arith.constant dense<0.000000e+00> : vector<256x8xf32>
    %55 = tpu.matmul %52, %54, %cst_84 {dimension_numbers = #tpu.dot_dimension_numbers<[1], [0], [0], [1], [0, 0, 1, 1], [], []>} : vector<256x4xf32>, vector<4x8xf32>, vector<256x8xf32> -> vector<256x8xf32>
    %c0_85 = arith.constant 0 : index
    %c0_86 = arith.constant 0 : index
    %56 = vector.load %arg8[%c0_85, %c0_86] : memref<256x8xf32, #tpu.memory_space<vmem>>, vector<256x8xf32>
    %57 = arith.addf %56, %55 : vector<256x8xf32>
    %c0_87 = arith.constant 0 : index
    %c0_88 = arith.constant 0 : index
    %58 = vector.load %arg8[%c0_87, %c0_88] : memref<256x8xf32, #tpu.memory_space<vmem>>, vector<256x8xf32>
    tpu.vector_store %arg8[%c0_87, %c0_88], %57 {strides = array<i32>} : memref<256x8xf32, #tpu.memory_space<vmem>>, vector<256x8xf32>,
    %c2_89 = arith.constant 2 : index
    %c1_90 = arith.constant 1 : index
    %c0_91 = arith.constant 0 : index
    %59 = vector.load %arg7[%c2_89, %c1_90, %c0_91] : memref<18x18x4xf32, #tpu.memory_space<vmem>>, vector<16x16x4xf32>
    %60 = vector.shape_cast %59 : vector<16x16x4xf32> to vector<256x4xf32>
    %c2_92 = arith.constant 2 : index
    %c1_93 = arith.constant 1 : index
    %c0_94 = arith.constant 0 : index
    %c0_95 = arith.constant 0 : index
    %61 = vector.load %arg2[%c2_92, %c1_93, %c0_94, %c0_95] : memref<3x3x4x8xf32, #tpu.memory_space<vmem>>, vector<1x1x4x8xf32>
    %62 = vector.shape_cast %61 : vector<1x1x4x8xf32> to vector<4x8xf32>
    %cst_96 = arith.constant dense<0.000000e+00> : vector<256x8xf32>
    %63 = tpu.matmul %60, %62, %cst_96 {dimension_numbers = #tpu.dot_dimension_numbers<[1], [0], [0], [1], [0, 0, 1, 1], [], []>} : vector<256x4xf32>, vector<4x8xf32>, vector<256x8xf32> -> vector<256x8xf32>
    %c0_97 = arith.constant 0 : index
    %c0_98 = arith.constant 0 : index
    %64 = vector.load %arg8[%c0_97, %c0_98] : memref<256x8xf32, #tpu.memory_space<vmem>>, vector<256x8xf32>
    %65 = arith.addf %64, %63 : vector<256x8xf32>
    %c0_99 = arith.constant 0 : index
    %c0_100 = arith.constant 0 : index
    %66 = vector.load %arg8[%c0_99, %c0_100] : memref<256x8xf32, #tpu.memory_space<vmem>>, vector<256x8xf32>
    tpu.vector_store %arg8[%c0_99, %c0_100], %65 {strides = array<i32>} : memref<256x8xf32, #tpu.memory_space<vmem>>, vector<256x8xf32>,
    %c2_101 = arith.constant 2 : index
    %c2_102 = arith.constant 2 : index
    %c0_103 = arith.constant 0 : index
    %67 = vector.load %arg7[%c2_101, %c2_102, %c0_103] : memref<18x18x4xf32, #tpu.memory_space<vmem>>, vector<16x16x4xf32>
    %68 = vector.shape_cast %67 : vector<16x16x4xf32> to vector<256x4xf32>
    %c2_104 = arith.constant 2 : index
    %c2_105 = arith.constant 2 : index
    %c0_106 = arith.constant 0 : index
    %c0_107 = arith.constant 0 : index
    %69 = vector.load %arg2[%c2_104, %c2_105, %c0_106, %c0_107] : memref<3x3x4x8xf32, #tpu.memory_space<vmem>>, vector<1x1x4x8xf32>
    %70 = vector.shape_cast %69 : vector<1x1x4x8xf32> to vector<4x8xf32>
    %cst_108 = arith.constant dense<0.000000e+00> : vector<256x8xf32>
    %71 = tpu.matmul %68, %70, %cst_108 {dimension_numbers = #tpu.dot_dimension_numbers<[1], [0], [0], [1], [0, 0, 1, 1], [], []>} : vector<256x4xf32>, vector<4x8xf32>, vector<256x8xf32> -> vector<256x8xf32>
    %c0_109 = arith.constant 0 : index
    %c0_110 = arith.constant 0 : index
    %72 = vector.load %arg8[%c0_109, %c0_110] : memref<256x8xf32, #tpu.memory_space<vmem>>, vector<256x8xf32>
    %73 = arith.addf %72, %71 : vector<256x8xf32>
    %c0_111 = arith.constant 0 : index
    %c0_112 = arith.constant 0 : index
    %74 = vector.load %arg8[%c0_111, %c0_112] : memref<256x8xf32, #tpu.memory_space<vmem>>, vector<256x8xf32>
    tpu.vector_store %arg8[%c0_111, %c0_112], %73 {strides = array<i32>} : memref<256x8xf32, #tpu.memory_space<vmem>>, vector<256x8xf32>,
    %c0_113 = arith.constant 0 : index
    %c0_114 = arith.constant 0 : index
    %75 = vector.load %arg8[%c0_113, %c0_114] : memref<256x8xf32, #tpu.memory_space<vmem>>, vector<256x8xf32>
    %c0_115 = arith.constant 0 : index
    %c0_116 = arith.constant 0 : index
    %76 = vector.load %arg3[%c0_115, %c0_116] : memref<1x8xf32, #tpu.memory_space<vmem>>, vector<1x8xf32>
    %77 = vector.shape_cast %76 : vector<1x8xf32> to vector<8xf32>
    %78 = vector.shape_cast %77 : vector<8xf32> to vector<1x8xf32>
    %79 = vector.broadcast %78 : vector<1x8xf32> to vector<256x8xf32>
    %80 = arith.addf %75, %79 : vector<256x8xf32>
    %c0_117 = arith.constant 0 : index
    %c0_118 = arith.constant 0 : index
    %c0_119 = arith.constant 0 : index
    %81 = vector.load %arg4[%c0_117, %c0_118, %c0_119] : memref<1x256x8xf32, #tpu.memory_space<vmem>>, vector<1x256x8xf32>
    %82 = vector.shape_cast %81 : vector<1x256x8xf32> to vector<256x8xf32>
    %83 = vector.shape_cast %80 : vector<256x8xf32> to vector<1x256x8xf32>
    tpu.vector_store %arg4[%c0_117, %c0_118, %c0_119], %83 {strides = array<i32>} : memref<1x256x8xf32, #tpu.memory_space<vmem>>, vector<1x256x8xf32>,
    %cst_120 = arith.constant dense<0.000000e+00> : vector<8xf32>
    %84 = vector.multi_reduction <add>, %80, %cst_120 [0] : vector<256x8xf32> to vector<8xf32>
    %85 = vector.shape_cast %84 : vector<8xf32> to vector<1x8xf32>
    %c0_121 = arith.constant 0 : index
    %c0_122 = arith.constant 0 : index
    %c0_123 = arith.constant 0 : index
    %86 = vector.load %arg5[%c0_121, %c0_122, %c0_123] : memref<1x1x8xf32, #tpu.memory_space<vmem>>, vector<1x1x8xf32>
    %87 = vector.shape_cast %86 : vector<1x1x8xf32> to vector<1x8xf32>
    %88 = vector.shape_cast %85 : vector<1x8xf32> to vector<1x1x8xf32>
    tpu.vector_store %arg5[%c0_121, %c0_122, %c0_123], %88 {strides = array<i32>} : memref<1x1x8xf32, #tpu.memory_space<vmem>>, vector<1x1x8xf32>,
    %89 = arith.mulf %80, %80 : vector<256x8xf32>
    %cst_124 = arith.constant dense<0.000000e+00> : vector<8xf32>
    %90 = vector.multi_reduction <add>, %89, %cst_124 [0] : vector<256x8xf32> to vector<8xf32>
    %91 = vector.shape_cast %90 : vector<8xf32> to vector<1x8xf32>
    %c0_125 = arith.constant 0 : index
    %c0_126 = arith.constant 0 : index
    %c0_127 = arith.constant 0 : index
    %92 = vector.load %arg6[%c0_125, %c0_126, %c0_127] : memref<1x1x8xf32, #tpu.memory_space<vmem>>, vector<1x1x8xf32>
    %93 = vector.shape_cast %92 : vector<1x1x8xf32> to vector<1x8xf32>
    %94 = vector.shape_cast %91 : vector<1x8xf32> to vector<1x1x8xf32>
    tpu.vector_store %arg6[%c0_125, %c0_126, %c0_127], %94 {strides = array<i32>} : memref<1x1x8xf32, #tpu.memory_space<vmem>>, vector<1x1x8xf32>,
    return
  }
  func.func @transform_0(%arg0: i32) -> (i32, i32, i32, i32) {
    %c0_i32 = arith.constant 0 : i32
    %c0_i32_0 = arith.constant 0 : i32
    %c0_i32_1 = arith.constant 0 : i32
    %c0_i32_2 = arith.constant 0 : i32
    return %arg0, %c0_i32, %c0_i32_0, %c0_i32_1 : i32, i32, i32, i32
  }
  func.func @transform_1(%arg0: i32) -> (i32, i32, i32, i32) {
    %c0_i32 = arith.constant 0 : i32
    %c0_i32_0 = arith.constant 0 : i32
    %c0_i32_1 = arith.constant 0 : i32
    %c0_i32_2 = arith.constant 0 : i32
    %c0_i32_3 = arith.constant 0 : i32
    return %c0_i32, %c0_i32_0, %c0_i32_1, %c0_i32_2 : i32, i32, i32, i32
  }
  func.func @transform_2(%arg0: i32) -> (i32, i32) {
    %c0_i32 = arith.constant 0 : i32
    %c0_i32_0 = arith.constant 0 : i32
    %c0_i32_1 = arith.constant 0 : i32
    return %c0_i32, %c0_i32_0 : i32, i32
  }
  func.func @transform_3(%arg0: i32) -> (i32, i32, i32) {
    %c0_i32 = arith.constant 0 : i32
    %c0_i32_0 = arith.constant 0 : i32
    %c0_i32_1 = arith.constant 0 : i32
    return %arg0, %c0_i32, %c0_i32_0 : i32, i32, i32
  }
  func.func @transform_4(%arg0: i32) -> (i32, i32, i32) {
    %c0_i32 = arith.constant 0 : i32
    %c0_i32_0 = arith.constant 0 : i32
    %c0_i32_1 = arith.constant 0 : i32
    return %arg0, %c0_i32, %c0_i32_0 : i32, i32, i32
  }
  func.func @transform_5(%arg0: i32) -> (i32, i32, i32) {
    %c0_i32 = arith.constant 0 : i32
    %c0_i32_0 = arith.constant 0 : i32
    %c0_i32_1 = arith.constant 0 : i32
    return %arg0, %c0_i32, %c0_i32_0 : i32, i32, i32
  }
}

module attributes {stable_mosaic.version = 11 : i64} {
  func.func @_bn_relu_kernel(%arg0: i32, %arg1: memref<2x2048xf32, #tpu.memory_space<vmem>>, %arg2: memref<1x2048xf32, #tpu.memory_space<vmem>>, %arg3: memref<1x2048xf32, #tpu.memory_space<vmem>>, %arg4: memref<2x2048xf32, #tpu.memory_space<vmem>>) attributes {dimension_semantics = [#tpu.dimension_semantics<parallel>], iteration_bounds = array<i64: 1>, scalar_prefetch = 0 : i64, scratch_operands = 0 : i64, tpu.core_type = #tpu.core_type<tc>, window_params = [{transform_indices = @transform_0, window_bounds = array<i64: 2, 2048>}, {pipeline_mode = #tpu.pipeline_mode<synchronous>, transform_indices = @transform_1, window_bounds = array<i64: 1, 2048>}, {pipeline_mode = #tpu.pipeline_mode<synchronous>, transform_indices = @transform_2, window_bounds = array<i64: 1, 2048>}, {transform_indices = @transform_3, window_bounds = array<i64: 2, 2048>}]} {
    %c0 = arith.constant 0 : index
    %c0_0 = arith.constant 0 : index
    %0 = vector.load %arg1[%c0, %c0_0] : memref<2x2048xf32, #tpu.memory_space<vmem>>, vector<2x2048xf32>
    %c0_1 = arith.constant 0 : index
    %c0_2 = arith.constant 0 : index
    %1 = vector.load %arg2[%c0_1, %c0_2] : memref<1x2048xf32, #tpu.memory_space<vmem>>, vector<1x2048xf32>
    %2 = vector.broadcast %1 : vector<1x2048xf32> to vector<2x2048xf32>
    %3 = arith.mulf %0, %2 : vector<2x2048xf32>
    %c0_3 = arith.constant 0 : index
    %c0_4 = arith.constant 0 : index
    %4 = vector.load %arg3[%c0_3, %c0_4] : memref<1x2048xf32, #tpu.memory_space<vmem>>, vector<1x2048xf32>
    %5 = vector.broadcast %4 : vector<1x2048xf32> to vector<2x2048xf32>
    %6 = arith.addf %3, %5 : vector<2x2048xf32>
    %cst = arith.constant 0.000000e+00 : f32
    %7 = vector.broadcast %cst : f32 to vector<2x2048xf32>
    %8 = arith.maximumf %6, %7 : vector<2x2048xf32>
    %c0_5 = arith.constant 0 : index
    %c0_6 = arith.constant 0 : index
    %9 = vector.load %arg4[%c0_5, %c0_6] : memref<2x2048xf32, #tpu.memory_space<vmem>>, vector<2x2048xf32>
    tpu.vector_store %arg4[%c0_5, %c0_6], %8 {strides = array<i32>} : memref<2x2048xf32, #tpu.memory_space<vmem>>, vector<2x2048xf32>,
    return
  }
  func.func @transform_0(%arg0: i32) -> (i32, i32) {
    %c0_i32 = arith.constant 0 : i32
    %c0_i32_0 = arith.constant 0 : i32
    return %arg0, %c0_i32 : i32, i32
  }
  func.func @transform_1(%arg0: i32) -> (i32, i32) {
    %c0_i32 = arith.constant 0 : i32
    %c0_i32_0 = arith.constant 0 : i32
    %c0_i32_1 = arith.constant 0 : i32
    return %c0_i32, %c0_i32_0 : i32, i32
  }
  func.func @transform_2(%arg0: i32) -> (i32, i32) {
    %c0_i32 = arith.constant 0 : i32
    %c0_i32_0 = arith.constant 0 : i32
    %c0_i32_1 = arith.constant 0 : i32
    return %c0_i32, %c0_i32_0 : i32, i32
  }
  func.func @transform_3(%arg0: i32) -> (i32, i32) {
    %c0_i32 = arith.constant 0 : i32
    %c0_i32_0 = arith.constant 0 : i32
    return %arg0, %c0_i32 : i32, i32
  }
}

</mosaic_0001>

<llo_original>
// kernel: tile.18
$region0: #{tile.18}
  #allocation0 [shape = 's32[1]{0}', space=sflag, size = 0x4, scoped, tag = 'scoped memory for tile.18']
  %s0 = inlined_call_operand.vmem [shape: f32[8], index: 0, kind: input, shape index: {}]
  %s1 = inlined_call_operand.vmem [shape: f32[256,8], index: 1, kind: output, shape index: {}]
  // Predicated region
  $region2: #{tile.18} parent=0 // pred_check
    _
  $region3: #{tile.18} parent=0 // pred_check_branch
    %3 = sbr.rel (0) target = $region5
  $region4: #{tile.18} parent=0 // pred_region
    _
  $region5: #{tile.18} parent=0 // pred_fallthru
    _
  %v4 = vld [vmem:[%s0] ss:$0 sm:$0xff]
  %5 = vst [vmem:[%s1] sm:$0xff] %v4
  %s6 = scalar_lea.vmem %s1, 8
  %7 = vst [vmem:[%s6] sm:$0xff] %v4
  %s8 = scalar_lea.vmem %s1, 16
  %9 = vst [vmem:[%s8] sm:$0xff] %v4
  %s10 = scalar_lea.vmem %s1, 24
  %11 = vst [vmem:[%s10] sm:$0xff] %v4
  %s12 = scalar_lea.vmem %s1, 32
  %13 = vst [vmem:[%s12] sm:$0xff] %v4
  %s14 = scalar_lea.vmem %s1, 40
  %15 = vst [vmem:[%s14] sm:$0xff] %v4
  %s16 = scalar_lea.vmem %s1, 48
  %17 = vst [vmem:[%s16] sm:$0xff] %v4
  %s18 = scalar_lea.vmem %s1, 56
  %19 = vst [vmem:[%s18] sm:$0xff] %v4
  %s20 = scalar_lea.vmem %s1, 64
  %21 = vst [vmem:[%s20] sm:$0xff] %v4
  %s22 = scalar_lea.vmem %s1, 72
  %23 = vst [vmem:[%s22] sm:$0xff] %v4
  %s24 = scalar_lea.vmem %s1, 80
  %25 = vst [vmem:[%s24] sm:$0xff] %v4
  %s26 = scalar_lea.vmem %s1, 88
  %27 = vst [vmem:[%s26] sm:$0xff] %v4
  %s28 = scalar_lea.vmem %s1, 96
  %29 = vst [vmem:[%s28] sm:$0xff] %v4
  %s30 = scalar_lea.vmem %s1, 104
  %31 = vst [vmem:[%s30] sm:$0xff] %v4
  %s32 = scalar_lea.vmem %s1, 112
  %33 = vst [vmem:[%s32] sm:$0xff] %v4
  %s34 = scalar_lea.vmem %s1, 120
  %35 = vst [vmem:[%s34] sm:$0xff] %v4
  %s36 = scalar_lea.vmem %s1, 128
  %37 = vst [vmem:[%s36] sm:$0xff] %v4
  %s38 = scalar_lea.vmem %s1, 136
  %39 = vst [vmem:[%s38] sm:$0xff] %v4
  %s40 = scalar_lea.vmem %s1, 144
  %41 = vst [vmem:[%s40] sm:$0xff] %v4
  %s42 = scalar_lea.vmem %s1, 152
  %43 = vst [vmem:[%s42] sm:$0xff] %v4
  %s44 = scalar_lea.vmem %s1, 160
  %45 = vst [vmem:[%s44] sm:$0xff] %v4
  %s46 = scalar_lea.vmem %s1, 168
  %47 = vst [vmem:[%s46] sm:$0xff] %v4
  %s48 = scalar_lea.vmem %s1, 176
  %49 = vst [vmem:[%s48] sm:$0xff] %v4
  %s50 = scalar_lea.vmem %s1, 184
  %51 = vst [vmem:[%s50] sm:$0xff] %v4
  %s52 = scalar_lea.vmem %s1, 192
  %53 = vst [vmem:[%s52] sm:$0xff] %v4
  %s54 = scalar_lea.vmem %s1, 200
  %55 = vst [vmem:[%s54] sm:$0xff] %v4
  %s56 = scalar_lea.vmem %s1, 208
  %57 = vst [vmem:[%s56] sm:$0xff] %v4
  %s58 = scalar_lea.vmem %s1, 216
  %59 = vst [vmem:[%s58] sm:$0xff] %v4
  %s60 = scalar_lea.vmem %s1, 224
  %61 = vst [vmem:[%s60] sm:$0xff] %v4
  %s62 = scalar_lea.vmem %s1, 232
  %63 = vst [vmem:[%s62] sm:$0xff] %v4
  %s64 = scalar_lea.vmem %s1, 240
  %65 = vst [vmem:[%s64] sm:$0xff] %v4
  %s66 = scalar_lea.vmem %s1, 248
  %67 = vst [vmem:[%s66] sm:$0xff] %v4

// kernel: tile.19
$region0: #{tile.19}
  %s0 = inlined_call_operand.vmem [shape: f32[256,8], index: 0, kind: input, shape index: {}]
  %s1 = inlined_call_operand.vmem [shape: f32[1,2048], index: 1, kind: output, shape index: {}]
  $region1: #{tile.19} parent=0
    #allocation0 [shape = 'u8[65536]{0}', space=vmem, size = 0x10000, scoped, tag = 'scoped mem for output reshape']
    %s2 = smov 3
    %v3 = vld [vmem:[%s0] ss:$16 sm:%s2]
    %s4 = smov 12
    %v5 = vld [vmem:[%s0] ss:$16 sm:%s4]
    %vm6 = vcmask 1043458
    %v7 = vsel %vm6, %v5, %v3
    %s8 = smov 48
    %v9 = vld [vmem:[%s0] ss:$16 sm:%s8]
    %vm10 = vcmask 1045508
    %v11 = vsel %vm10, %v9, %v7
    %s12 = smov 192
    %v13 = vld [vmem:[%s0] ss:$16 sm:%s12]
    %vm14 = vcmask 1047558
    %v15 = vsel %vm14, %v13, %v11
    %vm16 = vcmask 64512
    %17 = vst.msk [vmem:[#allocation0] ss:$8 sm:$0xf] %vm16, %v15
    %18 = vst.msk [vmem:[#allocation0] ss:$8 sm:$0xf0] %vm16, %v15
    %s19 = scalar_lea.vmem %s0, 128
    %s20 = smov 3
    %v21 = vld [vmem:[%s19] ss:$16 sm:%s20]
    %s22 = scalar_lea.vmem %s0, 128
    %s23 = smov 12
    %v24 = vld [vmem:[%s22] ss:$16 sm:%s23]
    %vm25 = vcmask 1043458
    %v26 = vsel %vm25, %v24, %v21
    %s27 = scalar_lea.vmem %s0, 128
    %s28 = smov 48
    %v29 = vld [vmem:[%s27] ss:$16 sm:%s28]
    %vm30 = vcmask 1045508
    %v31 = vsel %vm30, %v29, %v26
    %s32 = scalar_lea.vmem %s0, 128
    %s33 = smov 192
    %v34 = vld [vmem:[%s32] ss:$16 sm:%s33]
    %vm35 = vcmask 1047558
    %v36 = vsel %vm35, %v34, %v31
    %vm37 = vcmask 64512
    %s38 = scalar_lea.vmem [#allocation0], 64
    %39 = vst.msk [vmem:[%s38] ss:$8 sm:$0xf] %vm37, %v36
    %s40 = scalar_lea.vmem [#allocation0], 64
    %41 = vst.msk [vmem:[%s40] ss:$8 sm:$0xf0] %vm37, %v36
    %s42 = scalar_lea.vmem %s0, 15
    %s43 = smov 3
    %v44 = vld [vmem:[%s42] ss:$16 sm:%s43]
    %s45 = scalar_lea.vmem %s0, 15
    %s46 = smov 12
    %v47 = vld [vmem:[%s45] ss:$16 sm:%s46]
    %vm48 = vcmask 1043458
    %v49 = vsel %vm48, %v47, %v44
    %s50 = scalar_lea.vmem %s0, 15
    %s51 = smov 48
    %v52 = vld [vmem:[%s50] ss:$16 sm:%s51]
    %vm53 = vcmask 1045508
    %v54 = vsel %vm53, %v52, %v49
    %s55 = scalar_lea.vmem %s0, 15
    %s56 = smov 192
    %v57 = vld [vmem:[%s55] ss:$16 sm:%s56]
    %vm58 = vcmask 1047558
    %v59 = vsel %vm58, %v57, %v54
    %60 = vrot.lane.b32.xlu0 %v59, 120
    %v61 = vpop.permute.xlu0 %60
    %vm62 = vcmask 1048512
    %63 = vst.msk [vmem:[#allocation0] ss:$8 sm:$0xf] %vm62, %v61
    %64 = vst.msk [vmem:[#allocation0] ss:$8 sm:$0xf0] %vm62, %v61
    %s65 = scalar_lea.vmem %s0, 143
    %s66 = smov 3
    %v67 = vld [vmem:[%s65] ss:$16 sm:%s66]
    %s68 = scalar_lea.vmem %s0, 143
    %s69 = smov 12
    %v70 = vld [vmem:[%s68] ss:$16 sm:%s69]
    %vm71 = vcmask 1043458
    %v72 = vsel %vm71, %v70, %v67
    %s73 = scalar_lea.vmem %s0, 143
    %s74 = smov 48
    %v75 = vld [vmem:[%s73] ss:$16 sm:%s74]
    %vm76 = vcmask 1045508
    %v77 = vsel %vm76, %v75, %v72
    %s78 = scalar_lea.vmem %s0, 143
    %s79 = smov 192
    %v80 = vld [vmem:[%s78] ss:$16 sm:%s79]
    %vm81 = vcmask 1047558
    %v82 = vsel %vm81, %v80, %v77
    %83 = vrot.lane.b32.xlu0 %v82, 120
    %v84 = vpop.permute.xlu0 %83
    %vm85 = vcmask 1048512
    %s86 = scalar_lea.vmem [#allocation0], 64
    %87 = vst.msk [vmem:[%s86] ss:$8 sm:$0xf] %vm85, %v84
    %s88 = scalar_lea.vmem [#allocation0], 64
    %89 = vst.msk [vmem:[%s88] ss:$8 sm:$0xf0] %vm85, %v84
    %s90 = scalar_lea.vmem %s0, 14
    %s91 = smov 3
    %v92 = vld [vmem:[%s90] ss:$16 sm:%s91]
    %s93 = scalar_lea.vmem %s0, 14
    %s94 = smov 12
    %v95 = vld [vmem:[%s93] ss:$16 sm:%s94]
    %vm96 = vcmask 1043458
    %v97 = vsel %vm96, %v95, %v92
    %s98 = scalar_lea.vmem %s0, 14
    %s99 = smov 48
    %v100 = vld [vmem:[%s98] ss:$16 sm:%s99]
    %vm101 = vcmask 1045508
    %v102 = vsel %vm101, %v100, %v97
    %s103 = scalar_lea.vmem %s0, 14
    %s104 = smov 192
    %v105 = vld [vmem:[%s103] ss:$16 sm:%s104]
    %vm106 = vcmask 1047558
    %v107 = vsel %vm106, %v105, %v102
    %108 = vrot.lane.b32.xlu0 %v107, 112
    %v109 = vpop.permute.xlu0 %108
    %vm110 = vcmask 982912
    %111 = vst.msk [vmem:[#allocation0] ss:$8 sm:$0xf] %vm110, %v109
    %112 = vst.msk [vmem:[#allocation0] ss:$8 sm:$0xf0] %vm110, %v109
    %s113 = scalar_lea.vmem %s0, 142
    %s114 = smov 3
    %v115 = vld [vmem:[%s113] ss:$16 sm:%s114]
    %s116 = scalar_lea.vmem %s0, 142
    %s117 = smov 12
    %v118 = vld [vmem:[%s116] ss:$16 sm:%s117]
    %vm119 = vcmask 1043458
    %v120 = vsel %vm119, %v118, %v115
    %s121 = scalar_lea.vmem %s0, 142
    %s122 = smov 48
    %v123 = vld [vmem:[%s121] ss:$16 sm:%s122]
    %vm124 = vcmask 1045508
    %v125 = vsel %vm124, %v123, %v120
    %s126 = scalar_lea.vmem %s0, 142
    %s127 = smov 192
    %v128 = vld [vmem:[%s126] ss:$16 sm:%s127]
    %vm129 = vcmask 1047558
    %v130 = vsel %vm129, %v128, %v125
    %131 = vrot.lane.b32.xlu0 %v130, 112
    %v132 = vpop.permute.xlu0 %131
    %vm133 = vcmask 982912
    %s134 = scalar_lea.vmem [#allocation0], 64
    %135 = vst.msk [vmem:[%s134] ss:$8 sm:$0xf] %vm133, %v132
    %s136 = scalar_lea.vmem [#allocation0], 64
    %137 = vst.msk [vmem:[%s136] ss:$8 sm:$0xf0] %vm133, %v132
    %s138 = scalar_lea.vmem %s0, 13
    %s139 = smov 3
    %v140 = vld [vmem:[%s138] ss:$16 sm:%s139]
    %s141 = scalar_lea.vmem %s0, 13
    %s142 = smov 12
    %v143 = vld [vmem:[%s141] ss:$16 sm:%s142]
    %vm144 = vcmask 1043458
    %v145 = vsel %vm144, %v143, %v140
    %s146 = scalar_lea.vmem %s0, 13
    %s147 = smov 48
    %v148 = vld [vmem:[%s146] ss:$16 sm:%s147]
    %vm149 = vcmask 1045508
    %v150 = vsel %vm149, %v148, %v145
    %s151 = scalar_lea.vmem %s0, 13
    %s152 = smov 192
    %v153 = vld [vmem:[%s151] ss:$16 sm:%s152]
    %vm154 = vcmask 1047558
    %v155 = vsel %vm154, %v153, %v150
    %156 = vrot.lane.b32.xlu0 %v155, 104
    %v157 = vpop.permute.xlu0 %156
    %vm158 = vcmask 917312
    %159 = vst.msk [vmem:[#allocation0] ss:$8 sm:$0xf] %vm158, %v157
    %160 = vst.msk [vmem:[#allocation0] ss:$8 sm:$0xf0] %vm158, %v157
    %s161 = scalar_lea.vmem %s0, 141
    %s162 = smov 3
    %v163 = vld [vmem:[%s161] ss:$16 sm:%s162]
    %s164 = scalar_lea.vmem %s0, 141
    %s165 = smov 12
    %v166 = vld [vmem:[%s164] ss:$16 sm:%s165]
    %vm167 = vcmask 1043458
    %v168 = vsel %vm167, %v166, %v163
    %s169 = scalar_lea.vmem %s0, 141
    %s170 = smov 48
    %v171 = vld [vmem:[%s169] ss:$16 sm:%s170]
    %vm172 = vcmask 1045508
    %v173 = vsel %vm172, %v171, %v168
    %s174 = scalar_lea.vmem %s0, 141
    %s175 = smov 192
    %v176 = vld [vmem:[%s174] ss:$16 sm:%s175]
    %vm177 = vcmask 1047558
    %v178 = vsel %vm177, %v176, %v173
    %179 = vrot.lane.b32.xlu0 %v178, 104
    %v180 = vpop.permute.xlu0 %179
    %vm181 = vcmask 917312
    %s182 = scalar_lea.vmem [#allocation0], 64
    %183 = vst.msk [vmem:[%s182] ss:$8 sm:$0xf] %vm181, %v180
    %s184 = scalar_lea.vmem [#allocation0], 64
    %185 = vst.msk [vmem:[%s184] ss:$8 sm:$0xf0] %vm181, %v180
    %s186 = scalar_lea.vmem %s0, 12
    %s187 = smov 3
    %v188 = vld [vmem:[%s186] ss:$16 sm:%s187]
    %s189 = scalar_lea.vmem %s0, 12
    %s190 = smov 12
    %v191 = vld [vmem:[%s189] ss:$16 sm:%s190]
    %vm192 = vcmask 1043458
    %v193 = vsel %vm192, %v191, %v188
    %s194 = scalar_lea.vmem %s0, 12
    %s195 = smov 48
    %v196 = vld [vmem:[%s194] ss:$16 sm:%s195]
    %vm197 = vcmask 1045508
    %v198 = vsel %vm197, %v196, %v193
    %s199 = scalar_lea.vmem %s0, 12
    %s200 = smov 192
    %v201 = vld [vmem:[%s199] ss:$16 sm:%s200]
    %vm202 = vcmask 1047558
    %v203 = vsel %vm202, %v201, %v198
    %204 = vrot.lane.b32.xlu0 %v203, 96
    %v205 = vpop.permute.xlu0 %204
    %vm206 = vcmask 851712
    %207 = vst.msk [vmem:[#allocation0] ss:$8 sm:$0xf] %vm206, %v205
    %208 = vst.msk [vmem:[#allocation0] ss:$8 sm:$0xf0] %vm206, %v205
    %s209 = scalar_lea.vmem %s0, 140
    %s210 = smov 3
    %v211 = vld [vmem:[%s209] ss:$16 sm:%s210]
    %s212 = scalar_lea.vmem %s0, 140
    %s213 = smov 12
    %v214 = vld [vmem:[%s212] ss:$16 sm:%s213]
    %vm215 = vcmask 1043458
    %v216 = vsel %vm215, %v214, %v211
    %s217 = scalar_lea.vmem %s0, 140
    %s218 = smov 48
    %v219 = vld [vmem:[%s217] ss:$16 sm:%s218]
    %vm220 = vcmask 1045508
    %v221 = vsel %vm220, %v219, %v216
    %s222 = scalar_lea.vmem %s0, 140
    %s223 = smov 192
    %v224 = vld [vmem:[%s222] ss:$16 sm:%s223]
    %vm225 = vcmask 1047558
    %v226 = vsel %vm225, %v224, %v221
    %227 = vrot.lane.b32.xlu0 %v226, 96
    %v228 = vpop.permute.xlu0 %227
    %vm229 = vcmask 851712
    %s230 = scalar_lea.vmem [#allocation0], 64
    %231 = vst.msk [vmem:[%s230] ss:$8 sm:$0xf] %vm229, %v228
    %s232 = scalar_lea.vmem [#allocation0], 64
    %233 = vst.msk [vmem:[%s232] ss:$8 sm:$0xf0] %vm229, %v228
    %s234 = scalar_lea.vmem %s0, 11
    %s235 = smov 3
    %v236 = vld [vmem:[%s234] ss:$16 sm:%s235]
    %s237 = scalar_lea.vmem %s0, 11
    %s238 = smov 12
    %v239 = vld [vmem:[%s237] ss:$16 sm:%s238]
    %vm240 = vcmask 1043458
    %v241 = vsel %vm240, %v239, %v236
    %s242 = scalar_lea.vmem %s0, 11
    %s243 = smov 48
    %v244 = vld [vmem:[%s242] ss:$16 sm:%s243]
    %vm245 = vcmask 1045508
    %v246 = vsel %vm245, %v244, %v241
    %s247 = scalar_lea.vmem %s0, 11
    %s248 = smov 192
    %v249 = vld [vmem:[%s247] ss:$16 sm:%s248]
    %vm250 = vcmask 1047558
    %v251 = vsel %vm250, %v249, %v246
    %252 = vrot.lane.b32.xlu0 %v251, 88
    %v253 = vpop.permute.xlu0 %252
    %vm254 = vcmask 786112
    %255 = vst.msk [vmem:[#allocation0] ss:$8 sm:$0xf] %vm254, %v253
    %256 = vst.msk [vmem:[#allocation0] ss:$8 sm:$0xf0] %vm254, %v253
    %s257 = scalar_lea.vmem %s0, 139
    %s258 = smov 3
    %v259 = vld [vmem:[%s257] ss:$16 sm:%s258]
    %s260 = scalar_lea.vmem %s0, 139
    %s261 = smov 12
    %v262 = vld [vmem:[%s260] ss:$16 sm:%s261]
    %vm263 = vcmask 1043458
    %v264 = vsel %vm263, %v262, %v259
    %s265 = scalar_lea.vmem %s0, 139
    %s266 = smov 48
    %v267 = vld [vmem:[%s265] ss:$16 sm:%s266]
    %vm268 = vcmask 1045508
    %v269 = vsel %vm268, %v267, %v264
    %s270 = scalar_lea.vmem %s0, 139
    %s271 = smov 192
    %v272 = vld [vmem:[%s270] ss:$16 sm:%s271]
    %vm273 = vcmask 1047558
    %v274 = vsel %vm273, %v272, %v269
    %275 = vrot.lane.b32.xlu0 %v274, 88
    %v276 = vpop.permute.xlu0 %275
    %vm277 = vcmask 786112
    %s278 = scalar_lea.vmem [#allocation0], 64
    %279 = vst.msk [vmem:[%s278] ss:$8 sm:$0xf] %vm277, %v276
    %s280 = scalar_lea.vmem [#allocation0], 64
    %281 = vst.msk [vmem:[%s280] ss:$8 sm:$0xf0] %vm277, %v276
    %s282 = scalar_lea.vmem %s0, 10
    %s283 = smov 3
    %v284 = vld [vmem:[%s282] ss:$16 sm:%s283]
    %s285 = scalar_lea.vmem %s0, 10
    %s286 = smov 12
    %v287 = vld [vmem:[%s285] ss:$16 sm:%s286]
    %vm288 = vcmask 1043458
    %v289 = vsel %vm288, %v287, %v284
    %s290 = scalar_lea.vmem %s0, 10
    %s291 = smov 48
    %v292 = vld [vmem:[%s290] ss:$16 sm:%s291]
    %vm293 = vcmask 1045508
    %v294 = vsel %vm293, %v292, %v289
    %s295 = scalar_lea.vmem %s0, 10
    %s296 = smov 192
    %v297 = vld [vmem:[%s295] ss:$16 sm:%s296]
    %vm298 = vcmask 1047558
    %v299 = vsel %vm298, %v297, %v294
    %300 = vrot.lane.b32.xlu0 %v299, 80
    %v301 = vpop.permute.xlu0 %300
    %vm302 = vcmask 720512
    %303 = vst.msk [vmem:[#allocation0] ss:$8 sm:$0xf] %vm302, %v301
    %304 = vst.msk [vmem:[#allocation0] ss:$8 sm:$0xf0] %vm302, %v301
    %s305 = scalar_lea.vmem %s0, 138
    %s306 = smov 3
    %v307 = vld [vmem:[%s305] ss:$16 sm:%s306]
    %s308 = scalar_lea.vmem %s0, 138
    %s309 = smov 12
    %v310 = vld [vmem:[%s308] ss:$16 sm:%s309]
    %vm311 = vcmask 1043458
    %v312 = vsel %vm311, %v310, %v307
    %s313 = scalar_lea.vmem %s0, 138
    %s314 = smov 48
    %v315 = vld [vmem:[%s313] ss:$16 sm:%s314]
    %vm316 = vcmask 1045508
    %v317 = vsel %vm316, %v315, %v312
    %s318 = scalar_lea.vmem %s0, 138
    %s319 = smov 192
    %v320 = vld [vmem:[%s318] ss:$16 sm:%s319]
    %vm321 = vcmask 1047558
    %v322 = vsel %vm321, %v320, %v317
    %323 = vrot.lane.b32.xlu0 %v322, 80
    %v324 = vpop.permute.xlu0 %323
    %vm325 = vcmask 720512
    %s326 = scalar_lea.vmem [#allocation0], 64
    %327 = vst.msk [vmem:[%s326] ss:$8 sm:$0xf] %vm325, %v324
    %s328 = scalar_lea.vmem [#allocation0], 64
    %329 = vst.msk [vmem:[%s328] ss:$8 sm:$0xf0] %vm325, %v324
    %s330 = scalar_lea.vmem %s0, 9
    %s331 = smov 3
    %v332 = vld [vmem:[%s330] ss:$16 sm:%s331]
    %s333 = scalar_lea.vmem %s0, 9
    %s334 = smov 12
    %v335 = vld [vmem:[%s333] ss:$16 sm:%s334]
    %vm336 = vcmask 1043458
    %v337 = vsel %vm336, %v335, %v332
    %s338 = scalar_lea.vmem %s0, 9
    %s339 = smov 48
    %v340 = vld [vmem:[%s338] ss:$16 sm:%s339]
    %vm341 = vcmask 1045508
    %v342 = vsel %vm341, %v340, %v337
    %s343 = scalar_lea.vmem %s0, 9
    %s344 = smov 192
    %v345 = vld [vmem:[%s343] ss:$16 sm:%s344]
    %vm346 = vcmask 1047558
    %v347 = vsel %vm346, %v345, %v342
    %348 = vrot.lane.b32.xlu0 %v347, 72
    %v349 = vpop.permute.xlu0 %348
    %vm350 = vcmask 654912
    %351 = vst.msk [vmem:[#allocation0] ss:$8 sm:$0xf] %vm350, %v349
    %352 = vst.msk [vmem:[#allocation0] ss:$8 sm:$0xf0] %vm350, %v349
    %s353 = scalar_lea.vmem %s0, 137
    %s354 = smov 3
    %v355 = vld [vmem:[%s353] ss:$16 sm:%s354]
    %s356 = scalar_lea.vmem %s0, 137
    %s357 = smov 12
    %v358 = vld [vmem:[%s356] ss:$16 sm:%s357]
    %vm359 = vcmask 1043458
    %v360 = vsel %vm359, %v358, %v355
    %s361 = scalar_lea.vmem %s0, 137
    %s362 = smov 48
    %v363 = vld [vmem:[%s361] ss:$16 sm:%s362]
    %vm364 = vcmask 1045508
    %v365 = vsel %vm364, %v363, %v360
    %s366 = scalar_lea.vmem %s0, 137
    %s367 = smov 192
    %v368 = vld [vmem:[%s366] ss:$16 sm:%s367]
    %vm369 = vcmask 1047558
    %v370 = vsel %vm369, %v368, %v365
    %371 = vrot.lane.b32.xlu0 %v370, 72
    %v372 = vpop.permute.xlu0 %371
    %vm373 = vcmask 654912
    %s374 = scalar_lea.vmem [#allocation0], 64
    %375 = vst.msk [vmem:[%s374] ss:$8 sm:$0xf] %vm373, %v372
    %s376 = scalar_lea.vmem [#allocation0], 64
    %377 = vst.msk [vmem:[%s376] ss:$8 sm:$0xf0] %vm373, %v372
    %s378 = scalar_lea.vmem %s0, 8
    %s379 = smov 3
    %v380 = vld [vmem:[%s378] ss:$16 sm:%s379]
    %s381 = scalar_lea.vmem %s0, 8
    %s382 = smov 12
    %v383 = vld [vmem:[%s381] ss:$16 sm:%s382]
    %vm384 = vcmask 1043458
    %v385 = vsel %vm384, %v383, %v380
    %s386 = scalar_lea.vmem %s0, 8
    %s387 = smov 48
    %v388 = vld [vmem:[%s386] ss:$16 sm:%s387]
    %vm389 = vcmask 1045508
    %v390 = vsel %vm389, %v388, %v385
    %s391 = scalar_lea.vmem %s0, 8
    %s392 = smov 192
    %v393 = vld [vmem:[%s391] ss:$16 sm:%s392]
    %vm394 = vcmask 1047558
    %v395 = vsel %vm394, %v393, %v390
    %396 = vrot.lane.b32.xlu0 %v395, 64
    %v397 = vpop.permute.xlu0 %396
    %vm398 = vcmask 589312
    %399 = vst.msk [vmem:[#allocation0] ss:$8 sm:$0xf] %vm398, %v397
    %400 = vst.msk [vmem:[#allocation0] ss:$8 sm:$0xf0] %vm398, %v397
    %s401 = scalar_lea.vmem %s0, 136
    %s402 = smov 3
    %v403 = vld [vmem:[%s401] ss:$16 sm:%s402]
    %s404 = scalar_lea.vmem %s0, 136
    %s405 = smov 12
    %v406 = vld [vmem:[%s404] ss:$16 sm:%s405]
    %vm407 = vcmask 1043458
    %v408 = vsel %vm407, %v406, %v403
    %s409 = scalar_lea.vmem %s0, 136
    %s410 = smov 48
    %v411 = vld [vmem:[%s409] ss:$16 sm:%s410]
    %vm412 = vcmask 1045508
    %v413 = vsel %vm412, %v411, %v408
    %s414 = scalar_lea.vmem %s0, 136
    %s415 = smov 192
    %v416 = vld [vmem:[%s414] ss:$16 sm:%s415]
    %vm417 = vcmask 1047558
    %v418 = vsel %vm417, %v416, %v413
    %419 = vrot.lane.b32.xlu0 %v418, 64
    %v420 = vpop.permute.xlu0 %419
    %vm421 = vcmask 589312
    %s422 = scalar_lea.vmem [#allocation0], 64
    %423 = vst.msk [vmem:[%s422] ss:$8 sm:$0xf] %vm421, %v420
    %s424 = scalar_lea.vmem [#allocation0], 64
    %425 = vst.msk [vmem:[%s424] ss:$8 sm:$0xf0] %vm421, %v420
    %s426 = scalar_lea.vmem %s0, 7
    %s427 = smov 3
    %v428 = vld [vmem:[%s426] ss:$16 sm:%s427]
    %s429 = scalar_lea.vmem %s0, 7
    %s430 = smov 12
    %v431 = vld [vmem:[%s429] ss:$16 sm:%s430]
    %vm432 = vcmask 1043458
    %v433 = vsel %vm432, %v431, %v428
    %s434 = scalar_lea.vmem %s0, 7
    %s435 = smov 48
    %v436 = vld [vmem:[%s434] ss:$16 sm:%s435]
    %vm437 = vcmask 1045508
    %v438 = vsel %vm437, %v436, %v433
    %s439 = scalar_lea.vmem %s0, 7
    %s440 = smov 192
    %v441 = vld [vmem:[%s439] ss:$16 sm:%s440]
    %vm442 = vcmask 1047558
    %v443 = vsel %vm442, %v441, %v438
    %444 = vrot.lane.b32.xlu0 %v443, 56
    %v445 = vpop.permute.xlu0 %444
    %vm446 = vcmask 523712
    %447 = vst.msk [vmem:[#allocation0] ss:$8 sm:$0xf] %vm446, %v445
    %448 = vst.msk [vmem:[#allocation0] ss:$8 sm:$0xf0] %vm446, %v445
    %s449 = scalar_lea.vmem %s0, 135
    %s450 = smov 3
    %v451 = vld [vmem:[%s449] ss:$16 sm:%s450]
    %s452 = scalar_lea.vmem %s0, 135
    %s453 = smov 12
    %v454 = vld [vmem:[%s452] ss:$16 sm:%s453]
    %vm455 = vcmask 1043458
    %v456 = vsel %vm455, %v454, %v451
    %s457 = scalar_lea.vmem %s0, 135
    %s458 = smov 48
    %v459 = vld [vmem:[%s457] ss:$16 sm:%s458]
    %vm460 = vcmask 1045508
    %v461 = vsel %vm460, %v459, %v456
    %s462 = scalar_lea.vmem %s0, 135
    %s463 = smov 192
    %v464 = vld [vmem:[%s462] ss:$16 sm:%s463]
    %vm465 = vcmask 1047558
    %v466 = vsel %vm465, %v464, %v461
    %467 = vrot.lane.b32.xlu0 %v466, 56
    %v468 = vpop.permute.xlu0 %467
    %vm469 = vcmask 523712
    %s470 = scalar_lea.vmem [#allocation0], 64
    %471 = vst.msk [vmem:[%s470] ss:$8 sm:$0xf] %vm469, %v468
    %s472 = scalar_lea.vmem [#allocation0], 64
    %473 = vst.msk [vmem:[%s472] ss:$8 sm:$0xf0] %vm469, %v468
    %s474 = scalar_lea.vmem %s0, 6
    %s475 = smov 3
    %v476 = vld [vmem:[%s474] ss:$16 sm:%s475]
    %s477 = scalar_lea.vmem %s0, 6
    %s478 = smov 12
    %v479 = vld [vmem:[%s477] ss:$16 sm:%s478]
    %vm480 = vcmask 1043458
    %v481 = vsel %vm480, %v479, %v476
    %s482 = scalar_lea.vmem %s0, 6
    %s483 = smov 48
    %v484 = vld [vmem:[%s482] ss:$16 sm:%s483]
    %vm485 = vcmask 1045508
    %v486 = vsel %vm485, %v484, %v481
    %s487 = scalar_lea.vmem %s0, 6
    %s488 = smov 192
    %v489 = vld [vmem:[%s487] ss:$16 sm:%s488]
    %vm490 = vcmask 1047558
    %v491 = vsel %vm490, %v489, %v486
    %492 = vrot.lane.b32.xlu0 %v491, 48
    %v493 = vpop.permute.xlu0 %492
    %vm494 = vcmask 458112
    %495 = vst.msk [vmem:[#allocation0] ss:$8 sm:$0xf] %vm494, %v493
    %496 = vst.msk [vmem:[#allocation0] ss:$8 sm:$0xf0] %vm494, %v493
    %s497 = scalar_lea.vmem %s0, 134
    %s498 = smov 3
    %v499 = vld [vmem:[%s497] ss:$16 sm:%s498]
    %s500 = scalar_lea.vmem %s0, 134
    %s501 = smov 12
    %v502 = vld [vmem:[%s500] ss:$16 sm:%s501]
    %vm503 = vcmask 1043458
    %v504 = vsel %vm503, %v502, %v499
    %s505 = scalar_lea.vmem %s0, 134
    %s506 = smov 48
    %v507 = vld [vmem:[%s505] ss:$16 sm:%s506]
    %vm508 = vcmask 1045508
    %v509 = vsel %vm508, %v507, %v504
    %s510 = scalar_lea.vmem %s0, 134
    %s511 = smov 192
    %v512 = vld [vmem:[%s510] ss:$16 sm:%s511]
    %vm513 = vcmask 1047558
    %v514 = vsel %vm513, %v512, %v509
    %515 = vrot.lane.b32.xlu0 %v514, 48
    %v516 = vpop.permute.xlu0 %515
    %vm517 = vcmask 458112
    %s518 = scalar_lea.vmem [#allocation0], 64
    %519 = vst.msk [vmem:[%s518] ss:$8 sm:$0xf] %vm517, %v516
    %s520 = scalar_lea.vmem [#allocation0], 64
    %521 = vst.msk [vmem:[%s520] ss:$8 sm:$0xf0] %vm517, %v516
    %s522 = scalar_lea.vmem %s0, 5
    %s523 = smov 3
    %v524 = vld [vmem:[%s522] ss:$16 sm:%s523]
    %s525 = scalar_lea.vmem %s0, 5
    %s526 = smov 12
    %v527 = vld [vmem:[%s525] ss:$16 sm:%s526]
    %vm528 = vcmask 1043458
    %v529 = vsel %vm528, %v527, %v524
    %s530 = scalar_lea.vmem %s0, 5
    %s531 = smov 48
    %v532 = vld [vmem:[%s530] ss:$16 sm:%s531]
    %vm533 = vcmask 1045508
    %v534 = vsel %vm533, %v532, %v529
    %s535 = scalar_lea.vmem %s0, 5
    %s536 = smov 192
    %v537 = vld [vmem:[%s535] ss:$16 sm:%s536]
    %vm538 = vcmask 1047558
    %v539 = vsel %vm538, %v537, %v534
    %540 = vrot.lane.b32.xlu0 %v539, 40
    %v541 = vpop.permute.xlu0 %540
    %vm542 = vcmask 392512
    %543 = vst.msk [vmem:[#allocation0] ss:$8 sm:$0xf] %vm542, %v541
    %544 = vst.msk [vmem:[#allocation0] ss:$8 sm:$0xf0] %vm542, %v541
    %s545 = scalar_lea.vmem %s0, 133
    %s546 = smov 3
    %v547 = vld [vmem:[%s545] ss:$16 sm:%s546]
    %s548 = scalar_lea.vmem %s0, 133
    %s549 = smov 12
    %v550 = vld [vmem:[%s548] ss:$16 sm:%s549]
    %vm551 = vcmask 1043458
    %v552 = vsel %vm551, %v550, %v547
    %s553 = scalar_lea.vmem %s0, 133
    %s554 = smov 48
    %v555 = vld [vmem:[%s553] ss:$16 sm:%s554]
    %vm556 = vcmask 1045508
    %v557 = vsel %vm556, %v555, %v552
    %s558 = scalar_lea.vmem %s0, 133
    %s559 = smov 192
    %v560 = vld [vmem:[%s558] ss:$16 sm:%s559]
    %vm561 = vcmask 1047558
    %v562 = vsel %vm561, %v560, %v557
    %563 = vrot.lane.b32.xlu0 %v562, 40
    %v564 = vpop.permute.xlu0 %563
    %vm565 = vcmask 392512
    %s566 = scalar_lea.vmem [#allocation0], 64
    %567 = vst.msk [vmem:[%s566] ss:$8 sm:$0xf] %vm565, %v564
    %s568 = scalar_lea.vmem [#allocation0], 64
    %569 = vst.msk [vmem:[%s568] ss:$8 sm:$0xf0] %vm565, %v564
    %s570 = scalar_lea.vmem %s0, 4
    %s571 = smov 3
    %v572 = vld [vmem:[%s570] ss:$16 sm:%s571]
    %s573 = scalar_lea.vmem %s0, 4
    %s574 = smov 12
    %v575 = vld [vmem:[%s573] ss:$16 sm:%s574]
    %vm576 = vcmask 1043458
    %v577 = vsel %vm576, %v575, %v572
    %s578 = scalar_lea.vmem %s0, 4
    %s579 = smov 48
    %v580 = vld [vmem:[%s578] ss:$16 sm:%s579]
    %vm581 = vcmask 1045508
    %v582 = vsel %vm581, %v580, %v577
    %s583 = scalar_lea.vmem %s0, 4
    %s584 = smov 192
    %v585 = vld [vmem:[%s583] ss:$16 sm:%s584]
    %vm586 = vcmask 1047558
    %v587 = vsel %vm586, %v585, %v582
    %588 = vrot.lane.b32.xlu0 %v587, 32
    %v589 = vpop.permute.xlu0 %588
    %vm590 = vcmask 326912
    %591 = vst.msk [vmem:[#allocation0] ss:$8 sm:$0xf] %vm590, %v589
    %592 = vst.msk [vmem:[#allocation0] ss:$8 sm:$0xf0] %vm590, %v589
    %s593 = scalar_lea.vmem %s0, 132
    %s594 = smov 3
    %v595 = vld [vmem:[%s593] ss:$16 sm:%s594]
    %s596 = scalar_lea.vmem %s0, 132
    %s597 = smov 12
    %v598 = vld [vmem:[%s596] ss:$16 sm:%s597]
    %vm599 = vcmask 1043458
    %v600 = vsel %vm599, %v598, %v595
    %s601 = scalar_lea.vmem %s0, 132
    %s602 = smov 48
    %v603 = vld [vmem:[%s601] ss:$16 sm:%s602]
    %vm604 = vcmask 1045508
    %v605 = vsel %vm604, %v603, %v600
    %s606 = scalar_lea.vmem %s0, 132
    %s607 = smov 192
    %v608 = vld [vmem:[%s606] ss:$16 sm:%s607]
    %vm609 = vcmask 1047558
    %v610 = vsel %vm609, %v608, %v605
    %611 = vrot.lane.b32.xlu0 %v610, 32
    %v612 = vpop.permute.xlu0 %611
    %vm613 = vcmask 326912
    %s614 = scalar_lea.vmem [#allocation0], 64
    %615 = vst.msk [vmem:[%s614] ss:$8 sm:$0xf] %vm613, %v612
    %s616 = scalar_lea.vmem [#allocation0], 64
    %617 = vst.msk [vmem:[%s616] ss:$8 sm:$0xf0] %vm613, %v612
    %s618 = scalar_lea.vmem %s0, 3
    %s619 = smov 3
    %v620 = vld [vmem:[%s618] ss:$16 sm:%s619]
    %s621 = scalar_lea.vmem %s0, 3
    %s622 = smov 12
    %v623 = vld [vmem:[%s621] ss:$16 sm:%s622]
    %vm624 = vcmask 1043458
    %v625 = vsel %vm624, %v623, %v620
    %s626 = scalar_lea.vmem %s0, 3
    %s627 = smov 48
    %v628 = vld [vmem:[%s626] ss:$16 sm:%s627]
    %vm629 = vcmask 1045508
    %v630 = vsel %vm629, %v628, %v625
    %s631 = scalar_lea.vmem %s0, 3
    %s632 = smov 192
    %v633 = vld [vmem:[%s631] ss:$16 sm:%s632]
    %vm634 = vcmask 1047558
    %v635 = vsel %vm634, %v633, %v630
    %636 = vrot.lane.b32.xlu0 %v635, 24
    %v637 = vpop.permute.xlu0 %636
    %vm638 = vcmask 261312
    %639 = vst.msk [vmem:[#allocation0] ss:$8 sm:$0xf] %vm638, %v637
    %640 = vst.msk [vmem:[#allocation0] ss:$8 sm:$0xf0] %vm638, %v637
    %s641 = scalar_lea.vmem %s0, 131
    %s642 = smov 3
    %v643 = vld [vmem:[%s641] ss:$16 sm:%s642]
    %s644 = scalar_lea.vmem %s0, 131
    %s645 = smov 12
    %v646 = vld [vmem:[%s644] ss:$16 sm:%s645]
    %vm647 = vcmask 1043458
    %v648 = vsel %vm647, %v646, %v643
    %s649 = scalar_lea.vmem %s0, 131
    %s650 = smov 48
    %v651 = vld [vmem:[%s649] ss:$16 sm:%s650]
    %vm652 = vcmask 1045508
    %v653 = vsel %vm652, %v651, %v648
    %s654 = scalar_lea.vmem %s0, 131
    %s655 = smov 192
    %v656 = vld [vmem:[%s654] ss:$16 sm:%s655]
    %vm657 = vcmask 1047558
    %v658 = vsel %vm657, %v656, %v653
    %659 = vrot.lane.b32.xlu0 %v658, 24
    %v660 = vpop.permute.xlu0 %659
    %vm661 = vcmask 261312
    %s662 = scalar_lea.vmem [#allocation0], 64
    %663 = vst.msk [vmem:[%s662] ss:$8 sm:$0xf] %vm661, %v660
    %s664 = scalar_lea.vmem [#allocation0], 64
    %665 = vst.msk [vmem:[%s664] ss:$8 sm:$0xf0] %vm661, %v660
    %s666 = scalar_lea.vmem %s0, 2
    %s667 = smov 3
    %v668 = vld [vmem:[%s666] ss:$16 sm:%s667]
    %s669 = scalar_lea.vmem %s0, 2
    %s670 = smov 12
    %v671 = vld [vmem:[%s669] ss:$16 sm:%s670]
    %vm672 = vcmask 1043458
    %v673 = vsel %vm672, %v671, %v668
    %s674 = scalar_lea.vmem %s0, 2
    %s675 = smov 48
    %v676 = vld [vmem:[%s674] ss:$16 sm:%s675]
    %vm677 = vcmask 1045508
    %v678 = vsel %vm677, %v676, %v673
    %s679 = scalar_lea.vmem %s0, 2
    %s680 = smov 192
    %v681 = vld [vmem:[%s679] ss:$16 sm:%s680]
    %vm682 = vcmask 1047558
    %v683 = vsel %vm682, %v681, %v678
    %684 = vrot.lane.b32.xlu0 %v683, 16
    %v685 = vpop.permute.xlu0 %684
    %vm686 = vcmask 195712
    %687 = vst.msk [vmem:[#allocation0] ss:$8 sm:$0xf] %vm686, %v685
    %688 = vst.msk [vmem:[#allocation0] ss:$8 sm:$0xf0] %vm686, %v685
    %s689 = scalar_lea.vmem %s0, 130
    %s690 = smov 3
    %v691 = vld [vmem:[%s689] ss:$16 sm:%s690]
    %s692 = scalar_lea.vmem %s0, 130
    %s693 = smov 12
    %v694 = vld [vmem:[%s692] ss:$16 sm:%s693]
    %vm695 = vcmask 1043458
    %v696 = vsel %vm695, %v694, %v691
    %s697 = scalar_lea.vmem %s0, 130
    %s698 = smov 48
    %v699 = vld [vmem:[%s697] ss:$16 sm:%s698]
    %vm700 = vcmask 1045508
    %v701 = vsel %vm700, %v699, %v696
    %s702 = scalar_lea.vmem %s0, 130
    %s703 = smov 192
    %v704 = vld [vmem:[%s702] ss:$16 sm:%s703]
    %vm705 = vcmask 1047558
    %v706 = vsel %vm705, %v704, %v701
    %707 = vrot.lane.b32.xlu0 %v706, 16
    %v708 = vpop.permute.xlu0 %707
    %vm709 = vcmask 195712
    %s710 = scalar_lea.vmem [#allocation0], 64
    %711 = vst.msk [vmem:[%s710] ss:$8 sm:$0xf] %vm709, %v708
    %s712 = scalar_lea.vmem [#allocation0], 64
    %713 = vst.msk [vmem:[%s712] ss:$8 sm:$0xf0] %vm709, %v708
    %s714 = scalar_lea.vmem %s0, 1
    %s715 = smov 3
    %v716 = vld [vmem:[%s714] ss:$16 sm:%s715]
    %s717 = scalar_lea.vmem %s0, 1
    %s718 = smov 12
    %v719 = vld [vmem:[%s717] ss:$16 sm:%s718]
    %vm720 = vcmask 1043458
    %v721 = vsel %vm720, %v719, %v716
    %s722 = scalar_lea.vmem %s0, 1
    %s723 = smov 48
    %v724 = vld [vmem:[%s722] ss:$16 sm:%s723]
    %vm725 = vcmask 1045508
    %v726 = vsel %vm725, %v724, %v721
    %s727 = scalar_lea.vmem %s0, 1
    %s728 = smov 192
    %v729 = vld [vmem:[%s727] ss:$16 sm:%s728]
    %vm730 = vcmask 1047558
    %v731 = vsel %vm730, %v729, %v726
    %732 = vrot.lane.b32.xlu0 %v731, 8
    %v733 = vpop.permute.xlu0 %732
    %vm734 = vcmask 130112
    %735 = vst.msk [vmem:[#allocation0] ss:$8 sm:$0xf] %vm734, %v733
    %736 = vst.msk [vmem:[#allocation0] ss:$8 sm:$0xf0] %vm734, %v733
    %s737 = scalar_lea.vmem %s0, 129
    %s738 = smov 3
    %v739 = vld [vmem:[%s737] ss:$16 sm:%s738]
    %s740 = scalar_lea.vmem %s0, 129
    %s741 = smov 12
    %v742 = vld [vmem:[%s740] ss:$16 sm:%s741]
    %vm743 = vcmask 1043458
    %v744 = vsel %vm743, %v742, %v739
    %s745 = scalar_lea.vmem %s0, 129
    %s746 = smov 48
    %v747 = vld [vmem:[%s745] ss:$16 sm:%s746]
    %vm748 = vcmask 1045508
    %v749 = vsel %vm748, %v747, %v744
    %s750 = scalar_lea.vmem %s0, 129
    %s751 = smov 192
    %v752 = vld [vmem:[%s750] ss:$16 sm:%s751]
    %vm753 = vcmask 1047558
    %v754 = vsel %vm753, %v752, %v749
    %755 = vrot.lane.b32.xlu0 %v754, 8
    %v756 = vpop.permute.xlu0 %755
    %vm757 = vcmask 130112
    %s758 = scalar_lea.vmem [#allocation0], 64
    %759 = vst.msk [vmem:[%s758] ss:$8 sm:$0xf] %vm757, %v756
    %s760 = scalar_lea.vmem [#allocation0], 64
    %761 = vst.msk [vmem:[%s760] ss:$8 sm:$0xf0] %vm757, %v756
    %s763 = sshllo.u32 0, 1
    %v765 = vld [vmem:[#allocation0] sm:%s763]
    %s766 = sshllo.u32 0, 1
    %767 = vst [vmem:[%s1] sm:%s766] %v765
    %s768 = scalar_lea.vmem [#allocation0], 8
    %v769 = vld [vmem:[%s768] sm:%s763]
    %s770 = sshllo.u32 0, 1
    %s771 = scalar_lea.vmem %s1, 1
    %772 = vst [vmem:[%s771] sm:%s770] %v769
    %s773 = scalar_lea.vmem [#allocation0], 16
    %v774 = vld [vmem:[%s773] sm:%s763]
    %s775 = sshllo.u32 0, 1
    %s776 = smul.addr 1, 2
    %s777 = scalar_lea.vmem %s1, %s776
    %778 = vst [vmem:[%s777] sm:%s775] %v774
    %s779 = scalar_lea.vmem [#allocation0], 24
    %v780 = vld [vmem:[%s779] sm:%s763]
    %s781 = sshllo.u32 0, 1
    %s782 = smul.addr 1, 3
    %s783 = scalar_lea.vmem %s1, %s782
    %784 = vst [vmem:[%s783] sm:%s781] %v780
    %s785 = scalar_lea.vmem [#allocation0], 32
    %v786 = vld [vmem:[%s785] sm:%s763]
    %s787 = sshllo.u32 0, 1
    %s788 = smul.addr 1, 4
    %s789 = scalar_lea.vmem %s1, %s788
    %790 = vst [vmem:[%s789] sm:%s787] %v786
    %s791 = scalar_lea.vmem [#allocation0], 40
    %v792 = vld [vmem:[%s791] sm:%s763]
    %s793 = sshllo.u32 0, 1
    %s794 = smul.addr 1, 5
    %s795 = scalar_lea.vmem %s1, %s794
    %796 = vst [vmem:[%s795] sm:%s793] %v792
    %s797 = scalar_lea.vmem [#allocation0], 48
    %v798 = vld [vmem:[%s797] sm:%s763]
    %s799 = sshllo.u32 0, 1
    %s800 = smul.addr 1, 6
    %s801 = scalar_lea.vmem %s1, %s800
    %802 = vst [vmem:[%s801] sm:%s799] %v798
    %s803 = scalar_lea.vmem [#allocation0], 56
    %v804 = vld [vmem:[%s803] sm:%s763]
    %s805 = sshllo.u32 0, 1
    %s806 = smul.addr 1, 7
    %s807 = scalar_lea.vmem %s1, %s806
    %808 = vst [vmem:[%s807] sm:%s805] %v804
    %s809 = scalar_lea.vmem [#allocation0], 64
    %v810 = vld [vmem:[%s809] sm:%s763]
    %s811 = sshllo.u32 0, 1
    %s812 = smul.addr 1, 8
    %s813 = scalar_lea.vmem %s1, %s812
    %814 = vst [vmem:[%s813] sm:%s811] %v810
    %s815 = scalar_lea.vmem [#allocation0], 72
    %v816 = vld [vmem:[%s815] sm:%s763]
    %s817 = sshllo.u32 0, 1
    %s818 = smul.addr 1, 9
    %s819 = scalar_lea.vmem %s1, %s818
    %820 = vst [vmem:[%s819] sm:%s817] %v816
    %s821 = scalar_lea.vmem [#allocation0], 80
    %v822 = vld [vmem:[%s821] sm:%s763]
    %s823 = sshllo.u32 0, 1
    %s824 = smul.addr 1, 10
    %s825 = scalar_lea.vmem %s1, %s824
    %826 = vst [vmem:[%s825] sm:%s823] %v822
    %s827 = scalar_lea.vmem [#allocation0], 88
    %v828 = vld [vmem:[%s827] sm:%s763]
    %s829 = sshllo.u32 0, 1
    %s830 = smul.addr 1, 11
    %s831 = scalar_lea.vmem %s1, %s830
    %832 = vst [vmem:[%s831] sm:%s829] %v828
    %s833 = scalar_lea.vmem [#allocation0], 96
    %v834 = vld [vmem:[%s833] sm:%s763]
    %s835 = sshllo.u32 0, 1
    %s836 = smul.addr 1, 12
    %s837 = scalar_lea.vmem %s1, %s836
    %838 = vst [vmem:[%s837] sm:%s835] %v834
    %s839 = scalar_lea.vmem [#allocation0], 104
    %v840 = vld [vmem:[%s839] sm:%s763]
    %s841 = sshllo.u32 0, 1
    %s842 = smul.addr 1, 13
    %s843 = scalar_lea.vmem %s1, %s842
    %844 = vst [vmem:[%s843] sm:%s841] %v840
    %s845 = scalar_lea.vmem [#allocation0], 112
    %v846 = vld [vmem:[%s845] sm:%s763]
    %s847 = sshllo.u32 0, 1
    %s848 = smul.addr 1, 14
    %s849 = scalar_lea.vmem %s1, %s848
    %850 = vst [vmem:[%s849] sm:%s847] %v846
    %s851 = scalar_lea.vmem [#allocation0], 120
    %v852 = vld [vmem:[%s851] sm:%s763]
    %s853 = sshllo.u32 0, 1
    %s854 = smul.addr 1, 15
    %s855 = scalar_lea.vmem %s1, %s854
    %856 = vst [vmem:[%s855] sm:%s853] %v852

// kernel: _forward_impl.3
$region0: #{_forward_impl.3}
  #allocation0 [shape = 'u32[]', space=smem, size = 0x4, offset = 0x4, fixed_abs, tag = 'smem constant byte address 0x4 - core index']
  #allocation1 [shape = 'u32[144,128]{1,0:T(1,128)}', space=vmem, size = 0x12000, scoped, tag = 'internal scratch']
  %s0 = inlined_call_operand.vmem [shape: f32[2,2048], index: 0, kind: input, shape index: {}, may-alias: {0,3}]
  %s1 = inlined_call_operand.vmem [shape: f32[1,2048], index: 1, kind: input, shape index: {}]
  %s2 = inlined_call_operand.vmem [shape: f32[1,2048], index: 2, kind: input, shape index: {}]
  %s3 = inlined_call_operand.vmem [shape: f32[2,2048], index: 3, kind: output, shape index: {}, may-alias: {0,3}]
  %s4 = sld [smem:[#allocation0]]
  $region22: #{_forward_impl.3} parent=0
    _
  %s6 = ssub.s32 1, %s4
  %s7 = scalar_select 0, %s6, %s4
  // Predicated region
  $region2: #{_forward_impl.3} parent=0 // pred_check
    _
  $region3: #{_forward_impl.3} parent=0 // pred_check_branch
    %9 = sbr.rel (0) target = $region5
  $region4: #{_forward_impl.3} parent=0 // pred_region
    _
  $region5: #{_forward_impl.3} parent=0 // pred_fallthru
    _
  // Predicated region
  $region6: #{_forward_impl.3} parent=0 // pred_check
    _
  $region7: #{_forward_impl.3} parent=0 // pred_check_branch
    %11 = sbr.rel (0) target = $region9
  $region8: #{_forward_impl.3} parent=0 // pred_region
    _
  $region9: #{_forward_impl.3} parent=0 // pred_fallthru
    _
  // Predicated region
  $region10: #{_forward_impl.3} parent=0 // pred_check
    _
  $region11: #{_forward_impl.3} parent=0 // pred_check_branch
    %13 = sbr.rel (0) target = $region13
  $region12: #{_forward_impl.3} parent=0 // pred_region
    _
  $region13: #{_forward_impl.3} parent=0 // pred_fallthru
    _
  %v14 = vld [vmem:[%s0] sm:$0xff]
  %v15 = vld [vmem:[%s0 + $0x8] sm:$0xff]
  %v16 = vld [vmem:[%s0 + $0x10] sm:$0xff]
  %v17 = vld [vmem:[%s0 + $0x18] sm:$0xff]
  %v18 = vld [vmem:[%s1] sm:$0xff]
  %v19 = vld [vmem:[%s1 + $0x8] sm:$0xff]
  %v22 = vlaneseq
  %v23 = vshrl.u32 %v22, 7
  %v24 = vsub.s32 0, %v23
  %v25 = vrot.slane %v18, %v24
  %v26 = vlaneseq
  %v27 = vshrl.u32 %v26, 7
  %v28 = vsub.s32 1, %v27
  %v29 = vrot.slane %v18, %v28
  %v30 = vlaneseq
  %v31 = vshrl.u32 %v30, 7
  %v32 = vsub.s32 2, %v31
  %v33 = vrot.slane %v18, %v32
  %v34 = vlaneseq
  %v35 = vshrl.u32 %v34, 7
  %v36 = vsub.s32 3, %v35
  %v37 = vrot.slane %v18, %v36
  %v38 = vlaneseq
  %v39 = vshrl.u32 %v38, 7
  %v40 = vsub.s32 4, %v39
  %v41 = vrot.slane %v18, %v40
  %v42 = vlaneseq
  %v43 = vshrl.u32 %v42, 7
  %v44 = vsub.s32 5, %v43
  %v45 = vrot.slane %v18, %v44
  %v46 = vlaneseq
  %v47 = vshrl.u32 %v46, 7
  %v48 = vsub.s32 6, %v47
  %v49 = vrot.slane %v18, %v48
  %v50 = vlaneseq
  %v51 = vshrl.u32 %v50, 7
  %v52 = vsub.s32 7, %v51
  %v53 = vrot.slane %v18, %v52
  %v54 = vlaneseq
  %v55 = vshrl.u32 %v54, 7
  %v56 = vsub.s32 0, %v55
  %v57 = vrot.slane %v19, %v56
  %v58 = vlaneseq
  %v59 = vshrl.u32 %v58, 7
  %v60 = vsub.s32 1, %v59
  %v61 = vrot.slane %v19, %v60
  %v62 = vlaneseq
  %v63 = vshrl.u32 %v62, 7
  %v64 = vsub.s32 2, %v63
  %v65 = vrot.slane %v19, %v64
  %v66 = vlaneseq
  %v67 = vshrl.u32 %v66, 7
  %v68 = vsub.s32 3, %v67
  %v69 = vrot.slane %v19, %v68
  %v70 = vlaneseq
  %v71 = vshrl.u32 %v70, 7
  %v72 = vsub.s32 4, %v71
  %v73 = vrot.slane %v19, %v72
  %v74 = vlaneseq
  %v75 = vshrl.u32 %v74, 7
  %v76 = vsub.s32 5, %v75
  %v77 = vrot.slane %v19, %v76
  %v78 = vlaneseq
  %v79 = vshrl.u32 %v78, 7
  %v80 = vsub.s32 6, %v79
  %v81 = vrot.slane %v19, %v80
  %v82 = vlaneseq
  %v83 = vshrl.u32 %v82, 7
  %v84 = vsub.s32 7, %v83
  %v85 = vrot.slane %v19, %v84
  %v86 = vcombine.low %v25, %v29
  %v87 = vcombine.low %v33, %v37
  %v89 = vunpack.c.l.s4 1983009808
  %v90 = vunpack.c.0.s8 %v89
  %v91 = vlaneseq
  %v92 = vshrl.u32 %v91, 7
  %v93 = vsub.s32 %v90, %v92
  %v94 = vrot.slane %v86, %v93
  %v96 = vunpack.c.l.s4 1983009808
  %v97 = vunpack.c.0.s8 %v96
  %v98 = vlaneseq
  %v99 = vshrl.u32 %v98, 7
  %v100 = vsub.s32 %v97, %v99
  %v101 = vrot.slane %v87, %v100
  %v102 = vcombine.low %v94, %v101
  %v103 = vcombine.low %v41, %v45
  %v104 = vcombine.low %v49, %v53
  %v106 = vunpack.c.l.s4 1983009808
  %v107 = vunpack.c.0.s8 %v106
  %v108 = vlaneseq
  %v109 = vshrl.u32 %v108, 7
  %v110 = vsub.s32 %v107, %v109
  %v111 = vrot.slane %v103, %v110
  %v113 = vunpack.c.l.s4 1983009808
  %v114 = vunpack.c.0.s8 %v113
  %v115 = vlaneseq
  %v116 = vshrl.u32 %v115, 7
  %v117 = vsub.s32 %v114, %v116
  %v118 = vrot.slane %v104, %v117
  %v119 = vcombine.low %v111, %v118
  %v120 = vcombine.low %v57, %v61
  %v121 = vcombine.low %v65, %v69
  %v123 = vunpack.c.l.s4 1983009808
  %v124 = vunpack.c.0.s8 %v123
  %v125 = vlaneseq
  %v126 = vshrl.u32 %v125, 7
  %v127 = vsub.s32 %v124, %v126
  %v128 = vrot.slane %v120, %v127
  %v130 = vunpack.c.l.s4 1983009808
  %v131 = vunpack.c.0.s8 %v130
  %v132 = vlaneseq
  %v133 = vshrl.u32 %v132, 7
  %v134 = vsub.s32 %v131, %v133
  %v135 = vrot.slane %v121, %v134
  %v136 = vcombine.low %v128, %v135
  %v137 = vcombine.low %v73, %v77
  %v138 = vcombine.low %v81, %v85
  %v140 = vunpack.c.l.s4 1983009808
  %v141 = vunpack.c.0.s8 %v140
  %v142 = vlaneseq
  %v143 = vshrl.u32 %v142, 7
  %v144 = vsub.s32 %v141, %v143
  %v145 = vrot.slane %v137, %v144
  %v147 = vunpack.c.l.s4 1983009808
  %v148 = vunpack.c.0.s8 %v147
  %v149 = vlaneseq
  %v150 = vshrl.u32 %v149, 7
  %v151 = vsub.s32 %v148, %v150
  %v152 = vrot.slane %v138, %v151
  %v153 = vcombine.low %v145, %v152
  %v158 = vmul.f32 %v14, %v102
  %v159 = vmul.f32 %v15, %v119
  %v160 = vmul.f32 %v16, %v136
  %v161 = vmul.f32 %v17, %v153
  %v162 = vld [vmem:[%s2] sm:$0xff]
  %v163 = vld [vmem:[%s2 + $0x8] sm:$0xff]
  %v166 = vlaneseq
  %v167 = vshrl.u32 %v166, 7
  %v168 = vsub.s32 0, %v167
  %v169 = vrot.slane %v162, %v168
  %v170 = vlaneseq
  %v171 = vshrl.u32 %v170, 7
  %v172 = vsub.s32 1, %v171
  %v173 = vrot.slane %v162, %v172
  %v174 = vlaneseq
  %v175 = vshrl.u32 %v174, 7
  %v176 = vsub.s32 2, %v175
  %v177 = vrot.slane %v162, %v176
  %v178 = vlaneseq
  %v179 = vshrl.u32 %v178, 7
  %v180 = vsub.s32 3, %v179
  %v181 = vrot.slane %v162, %v180
  %v182 = vlaneseq
  %v183 = vshrl.u32 %v182, 7
  %v184 = vsub.s32 4, %v183
  %v185 = vrot.slane %v162, %v184
  %v186 = vlaneseq
  %v187 = vshrl.u32 %v186, 7
  %v188 = vsub.s32 5, %v187
  %v189 = vrot.slane %v162, %v188
  %v190 = vlaneseq
  %v191 = vshrl.u32 %v190, 7
  %v192 = vsub.s32 6, %v191
  %v193 = vrot.slane %v162, %v192
  %v194 = vlaneseq
  %v195 = vshrl.u32 %v194, 7
  %v196 = vsub.s32 7, %v195
  %v197 = vrot.slane %v162, %v196
  %v198 = vlaneseq
  %v199 = vshrl.u32 %v198, 7
  %v200 = vsub.s32 0, %v199
  %v201 = vrot.slane %v163, %v200
  %v202 = vlaneseq
  %v203 = vshrl.u32 %v202, 7
  %v204 = vsub.s32 1, %v203
  %v205 = vrot.slane %v163, %v204
  %v206 = vlaneseq
  %v207 = vshrl.u32 %v206, 7
  %v208 = vsub.s32 2, %v207
  %v209 = vrot.slane %v163, %v208
  %v210 = vlaneseq
  %v211 = vshrl.u32 %v210, 7
  %v212 = vsub.s32 3, %v211
  %v213 = vrot.slane %v163, %v212
  %v214 = vlaneseq
  %v215 = vshrl.u32 %v214, 7
  %v216 = vsub.s32 4, %v215
  %v217 = vrot.slane %v163, %v216
  %v218 = vlaneseq
  %v219 = vshrl.u32 %v218, 7
  %v220 = vsub.s32 5, %v219
  %v221 = vrot.slane %v163, %v220
  %v222 = vlaneseq
  %v223 = vshrl.u32 %v222, 7
  %v224 = vsub.s32 6, %v223
  %v225 = vrot.slane %v163, %v224
  %v226 = vlaneseq
  %v227 = vshrl.u32 %v226, 7
  %v228 = vsub.s32 7, %v227
  %v229 = vrot.slane %v163, %v228
  %v230 = vcombine.low %v169, %v173
  %v231 = vcombine.low %v177, %v181
  %v233 = vunpack.c.l.s4 1983009808
  %v234 = vunpack.c.0.s8 %v233
  %v235 = vlaneseq
  %v236 = vshrl.u32 %v235, 7
  %v237 = vsub.s32 %v234, %v236
  %v238 = vrot.slane %v230, %v237
  %v240 = vunpack.c.l.s4 1983009808
  %v241 = vunpack.c.0.s8 %v240
  %v242 = vlaneseq
  %v243 = vshrl.u32 %v242, 7
  %v244 = vsub.s32 %v241, %v243
  %v245 = vrot.slane %v231, %v244
  %v246 = vcombine.low %v238, %v245
  %v247 = vcombine.low %v185, %v189
  %v248 = vcombine.low %v193, %v197
  %v250 = vunpack.c.l.s4 1983009808
  %v251 = vunpack.c.0.s8 %v250
  %v252 = vlaneseq
  %v253 = vshrl.u32 %v252, 7
  %v254 = vsub.s32 %v251, %v253
  %v255 = vrot.slane %v247, %v254
  %v257 = vunpack.c.l.s4 1983009808
  %v258 = vunpack.c.0.s8 %v257
  %v259 = vlaneseq
  %v260 = vshrl.u32 %v259, 7
  %v261 = vsub.s32 %v258, %v260
  %v262 = vrot.slane %v248, %v261
  %v263 = vcombine.low %v255, %v262
  %v264 = vcombine.low %v201, %v205
  %v265 = vcombine.low %v209, %v213
  %v267 = vunpack.c.l.s4 1983009808
  %v268 = vunpack.c.0.s8 %v267
  %v269 = vlaneseq
  %v270 = vshrl.u32 %v269, 7
  %v271 = vsub.s32 %v268, %v270
  %v272 = vrot.slane %v264, %v271
  %v274 = vunpack.c.l.s4 1983009808
  %v275 = vunpack.c.0.s8 %v274
  %v276 = vlaneseq
  %v277 = vshrl.u32 %v276, 7
  %v278 = vsub.s32 %v275, %v277
  %v279 = vrot.slane %v265, %v278
  %v280 = vcombine.low %v272, %v279
  %v281 = vcombine.low %v217, %v221
  %v282 = vcombine.low %v225, %v229
  %v284 = vunpack.c.l.s4 1983009808
  %v285 = vunpack.c.0.s8 %v284
  %v286 = vlaneseq
  %v287 = vshrl.u32 %v286, 7
  %v288 = vsub.s32 %v285, %v287
  %v289 = vrot.slane %v281, %v288
  %v291 = vunpack.c.l.s4 1983009808
  %v292 = vunpack.c.0.s8 %v291
  %v293 = vlaneseq
  %v294 = vshrl.u32 %v293, 7
  %v295 = vsub.s32 %v292, %v294
  %v296 = vrot.slane %v282, %v295
  %v297 = vcombine.low %v289, %v296
  %v302 = vadd.f32 %v158, %v246
  %v303 = vadd.f32 %v159, %v263
  %v304 = vadd.f32 %v160, %v280
  %v305 = vadd.f32 %v161, %v297
  %v306 = vmax.f32 %v302, 0.0
  %v307 = vmax.f32 %v303, 0.0
  %v308 = vmax.f32 %v304, 0.0
  %v309 = vmax.f32 %v305, 0.0
  %310 = vst [vmem:[%s3] sm:$0xff] %v306
  %311 = vst [vmem:[%s3 + $0x8] sm:$0xff] %v307
  %312 = vst [vmem:[%s3 + $0x10] sm:$0xff] %v308
  %313 = vst [vmem:[%s3 + $0x18] sm:$0xff] %v309
  // Predicated region
  $region14: #{_forward_impl.3} parent=0 // pred_check
    _
  $region15: #{_forward_impl.3} parent=0 // pred_check_branch
    %315 = sbr.rel (0) target = $region17
  $region16: #{_forward_impl.3} parent=0 // pred_region
    _
  $region17: #{_forward_impl.3} parent=0 // pred_fallthru
    _
  // Predicated region
  $region18: #{_forward_impl.3} parent=0 // pred_check
    _
  $region19: #{_forward_impl.3} parent=0 // pred_check_branch
    %317 = sbr.rel (0) target = $region21
  $region20: #{_forward_impl.3} parent=0 // pred_region
    _
  $region21: #{_forward_impl.3} parent=0 // pred_fallthru
    _

// kernel: _forward_impl.2
$region0: #{_forward_impl.2}
  #allocation0 [shape = 'u32[]', space=smem, size = 0x4, offset = 0x4, fixed_abs, tag = 'smem constant byte address 0x4 - core index']
  #allocation1 [shape = 'u32[144,128]{1,0:T(1,128)}', space=vmem, size = 0x12000, scoped, tag = 'internal scratch']
  #allocation2 [shape = 'f32[18,18,4]{2,1,0:T(8,128)}', space=vmem, size = 0x36000, scoped, tag = 'scratch operand']
  #allocation3 [shape = 'f32[256,8]{1,0:T(8,128)}', space=vmem, size = 0x20000, scoped, tag = 'scratch operand']
  %s0 = inlined_call_operand.vmem [shape: f32[2,16,16,4], index: 0, kind: input, shape index: {}]
  %s1 = inlined_call_operand.vmem [shape: f32[3,3,4,8], index: 1, kind: input, shape index: {}]
  %s2 = inlined_call_operand.vmem [shape: f32[1,8], index: 2, kind: input, shape index: {}]
  %s3 = inlined_call_operand.vmem [shape: f32[2,256,8], index: 3, kind: output, shape index: {0}]
  %s4 = inlined_call_operand.vmem [shape: f32[2,1,8], index: 4, kind: output, shape index: {1}]
  %s5 = inlined_call_operand.vmem [shape: f32[2,1,8], index: 5, kind: output, shape index: {2}]
  %6 = xla_tuple %s3, %s4, %s5
  %s7 = sld [smem:[#allocation0]]
  $region61: #{_forward_impl.2} parent=0
    _
  %s9 = ssub.s32 1, %s7
  %s10 = scalar_select 0, %s9, %s7
  loop: start=0, step=1, limit=4
  $region2: #{_forward_impl.2} parent=0 // loop_pre_header
    _
  $region3: #{_forward_impl.2} parent=0 // loop_header
    %s12 = sphi 0, %s16
    %p13 = scmp.ge.s32.totalorder %s12, 4
    %s22 = sphi 0, %s24
    %s25 = sphi 0, %s22
    %s26 = sphi 0, %s25
    %s42 = sphi 0, %s26
    %s46 = sphi 0, %s46
    %s48 = sphi 0, %s46
    %s49 = sphi 0, %s48
    %s63 = sphi 0, %s49
    %s67 = sphi 0, %s67
    %s69 = sphi 0, %s67
    %s70 = sphi 0, %s69
    %s84 = sphi 0, %s70
    %s90 = sphi 0, %s92
    %s93 = sphi 0, %s90
    %s94 = sphi 0, %s93
    %s110 = sphi 0, %s94
    %s116 = sphi 0, %s118
    %s119 = sphi 0, %s116
    %s120 = sphi 0, %s119
    %s136 = sphi 0, %s120
    %s142 = sphi 0, %s144
    %s145 = sphi 0, %s142
    %s146 = sphi 0, %s145
    %s162 = sphi 0, %s146
  $region4: #{_forward_impl.2} parent=0 // loop_header_branch
    %15 = sbr.rel (%p13) target = $region8
  $region5: #{_forward_impl.2} parent=0 // loop_body
    %s17 = ssub.s32 %s12, 1
    %s18 = ssub.s32 %s12, 2
    %s19 = sadd.s32 %s12, 1
    %s20 = ssub.s32 %s12, %s19
    %p21 = scmp.eq.s32.totalorder %s20, 0
    %s23 = sadd.s32 %s22, 1
    %s24 = scalar_select %p21, %s22, %s23
    %p27 = pneg %p21
    %p28 = scmp.eq.s32.totalorder %s12, 1
    %p29 = por %p27, %p28
    %p30 = scmp.ne.s32.totalorder %s22, %s25
    %p31 = scmp.eq.s32.totalorder %s12, 0
    %p32 = por %p30, %p31
    %p33 = scmp.ne.s32.totalorder %s22, %s25
    %p34 = scmp.eq.s32.totalorder %s17, 1
    %p35 = por %p33, %p34
    %p36 = scmp.ne.s32.totalorder %s25, %s26
    %p37 = scmp.eq.s32.totalorder %s17, 0
    %p38 = por %p36, %p37
    %p39 = scmp.ne.s32.totalorder %s25, %s26
    %p40 = scmp.eq.s32.totalorder %s18, 1
    %p41 = por %p39, %p40
    %p43 = scmp.ne.s32.totalorder %s26, %s42
    %p44 = scmp.eq.s32.totalorder %s18, 0
    %p45 = por %p43, %p44
    %s47 = sadd.s32 %s46, 1
    %p50 = scmp.eq.s32.totalorder %s12, 1
    %p51 = scmp.ne.s32.totalorder %s46, %s48
    %p52 = scmp.eq.s32.totalorder %s12, 0
    %p53 = por %p51, %p52
    %p54 = scmp.ne.s32.totalorder %s46, %s48
    %p55 = scmp.eq.s32.totalorder %s17, 1
    %p56 = por %p54, %p55
    %p57 = scmp.ne.s32.totalorder %s48, %s49
    %p58 = scmp.eq.s32.totalorder %s17, 0
    %p59 = por %p57, %p58
    %p60 = scmp.ne.s32.totalorder %s48, %s49
    %p61 = scmp.eq.s32.totalorder %s18, 1
    %p62 = por %p60, %p61
    %p64 = scmp.ne.s32.totalorder %s49, %s63
    %p65 = scmp.eq.s32.totalorder %s18, 0
    %p66 = por %p64, %p65
    %s68 = sadd.s32 %s67, 1
    %p71 = scmp.eq.s32.totalorder %s12, 1
    %p72 = scmp.ne.s32.totalorder %s67, %s69
    %p73 = scmp.eq.s32.totalorder %s12, 0
    %p74 = por %p72, %p73
    %p75 = scmp.ne.s32.totalorder %s67, %s69
    %p76 = scmp.eq.s32.totalorder %s17, 1
    %p77 = por %p75, %p76
    %p78 = scmp.ne.s32.totalorder %s69, %s70
    %p79 = scmp.eq.s32.totalorder %s17, 0
    %p80 = por %p78, %p79
    %p81 = scmp.ne.s32.totalorder %s69, %s70
    %p82 = scmp.eq.s32.totalorder %s18, 1
    %p83 = por %p81, %p82
    %p85 = scmp.ne.s32.totalorder %s70, %s84
    %p86 = scmp.eq.s32.totalorder %s18, 0
    %p87 = por %p85, %p86
    %s88 = ssub.s32 %s12, %s19
    %p89 = scmp.eq.s32.totalorder %s88, 0
    %s91 = sadd.s32 %s90, 1
    %s92 = scalar_select %p89, %s90, %s91
    %p95 = pneg %p89
    %p96 = scmp.eq.s32.totalorder %s12, 1
    %p97 = por %p95, %p96
    %p98 = scmp.ne.s32.totalorder %s90, %s93
    %p99 = scmp.eq.s32.totalorder %s12, 0
    %p100 = por %p98, %p99
    %p101 = scmp.ne.s32.totalorder %s90, %s93
    %p102 = scmp.eq.s32.totalorder %s17, 1
    %p103 = por %p101, %p102
    %p104 = scmp.ne.s32.totalorder %s93, %s94
    %p105 = scmp.eq.s32.totalorder %s17, 0
    %p106 = por %p104, %p105
    %p107 = scmp.ne.s32.totalorder %s93, %s94
    %p108 = scmp.eq.s32.totalorder %s18, 1
    %p109 = por %p107, %p108
    %p111 = scmp.ne.s32.totalorder %s94, %s110
    %p112 = scmp.eq.s32.totalorder %s18, 0
    %p113 = por %p111, %p112
    %s114 = ssub.s32 %s12, %s19
    %p115 = scmp.eq.s32.totalorder %s114, 0
    %s117 = sadd.s32 %s116, 1
    %s118 = scalar_select %p115, %s116, %s117
    %p121 = pneg %p115
    %p122 = scmp.eq.s32.totalorder %s12, 1
    %p123 = por %p121, %p122
    %p124 = scmp.ne.s32.totalorder %s116, %s119
    %p125 = scmp.eq.s32.totalorder %s12, 0
    %p126 = por %p124, %p125
    %p127 = scmp.ne.s32.totalorder %s116, %s119
    %p128 = scmp.eq.s32.totalorder %s17, 1
    %p129 = por %p127, %p128
    %p130 = scmp.ne.s32.totalorder %s119, %s120
    %p131 = scmp.eq.s32.totalorder %s17, 0
    %p132 = por %p130, %p131
    %p133 = scmp.ne.s32.totalorder %s119, %s120
    %p134 = scmp.eq.s32.totalorder %s18, 1
    %p135 = por %p133, %p134
    %p137 = scmp.ne.s32.totalorder %s120, %s136
    %p138 = scmp.eq.s32.totalorder %s18, 0
    %p139 = por %p137, %p138
    %s140 = ssub.s32 %s12, %s19
    %p141 = scmp.eq.s32.totalorder %s140, 0
    %s143 = sadd.s32 %s142, 1
    %s144 = scalar_select %p141, %s142, %s143
    %p147 = pneg %p141
    %p148 = scmp.eq.s32.totalorder %s12, 1
    %p149 = por %p147, %p148
    %p150 = scmp.ne.s32.totalorder %s142, %s145
    %p151 = scmp.eq.s32.totalorder %s12, 0
    %p152 = por %p150, %p151
    %p153 = scmp.ne.s32.totalorder %s142, %s145
    %p154 = scmp.eq.s32.totalorder %s17, 1
    %p155 = por %p153, %p154
    %p156 = scmp.ne.s32.totalorder %s145, %s146
    %p157 = scmp.eq.s32.totalorder %s17, 0
    %p158 = por %p156, %p157
    %p159 = scmp.ne.s32.totalorder %s145, %s146
    %p160 = scmp.eq.s32.totalorder %s18, 1
    %p161 = por %p159, %p160
    %p163 = scmp.ne.s32.totalorder %s146, %s162
    %p164 = scmp.eq.s32.totalorder %s18, 0
    %p165 = por %p163, %p164
    %p166 = scmp.le.s32.totalorder 1, %s12
    %p167 = scmp.lt.s32.totalorder %s12, 3
    %p168 = pnand %p166, %p167
    %p169 = pneg %p168
    // Predicated region
    $region9: #{_forward_impl.2} parent=5 // pred_check
      _
    $region10: #{_forward_impl.2} parent=5 // pred_check_branch
      %171 = sbr.rel (%p168) target = $region12
    $region11: #{_forward_impl.2} parent=5 // pred_region
      %s172 = ssub.s32 %s12, 1
      // Predicated region
      $region13: #{_forward_impl.2} parent=11 // pred_check
        %p173 = pneg %p59
      $region14: #{_forward_impl.2} parent=11 // pred_check_branch
        %175 = sbr.rel (%p173) target = $region16
      $region15: #{_forward_impl.2} parent=11 // pred_region
        _
      $region16: #{_forward_impl.2} parent=11 // pred_fallthru
        _
      // Predicated region
      $region17: #{_forward_impl.2} parent=11 // pred_check
        %p176 = pneg %p80
      $region18: #{_forward_impl.2} parent=11 // pred_check_branch
        %178 = sbr.rel (%p176) target = $region20
      $region19: #{_forward_impl.2} parent=11 // pred_region
        _
      $region20: #{_forward_impl.2} parent=11 // pred_fallthru
        _
    $region12: #{_forward_impl.2} parent=5 // pred_fallthru
      _
    %p179 = scmp.lt.s32.totalorder %s12, 2
    // Predicated region
    $region21: #{_forward_impl.2} parent=5 // pred_check
      %p180 = pneg %p179
    $region22: #{_forward_impl.2} parent=5 // pred_check_branch
      %182 = sbr.rel (%p180) target = $region24
    $region23: #{_forward_impl.2} parent=5 // pred_region
      // Predicated region
      $region25: #{_forward_impl.2} parent=23 // pred_check
        %p183 = pneg %p32
      $region26: #{_forward_impl.2} parent=23 // pred_check_branch
        %185 = sbr.rel (%p183) target = $region28
      $region27: #{_forward_impl.2} parent=23 // pred_region
        %p186 = scmp.lt.s32.totalorder %s12, 1
        %s187 = scalar_select %p186, %s12, 1
        %s188 = smul.addr %s187, 32
        %s189 = smul.addr %s188, 8
        %s190 = scalar_lea.vmem %s0, %s189
      $region28: #{_forward_impl.2} parent=23 // pred_fallthru
        _
    $region24: #{_forward_impl.2} parent=5 // pred_fallthru
      _
    %p191 = scmp.le.s32.totalorder 1, %s12
    %p192 = scmp.lt.s32.totalorder %s12, 3
    %p193 = pnand %p191, %p192
    %p194 = pneg %p193
    // Predicated region
    $region29: #{_forward_impl.2} parent=5 // pred_check
      _
    $region30: #{_forward_impl.2} parent=5 // pred_check_branch
      %196 = sbr.rel (%p193) target = $region32
    $region31: #{_forward_impl.2} parent=5 // pred_region
      %s197 = ssub.s32 %s12, 1
      %p198 = scmp.lt.s32.totalorder %s17, 1
      %s199 = scalar_select %p198, %s17, 1
      %s200 = smul.addr %s199, 32
      %s201 = smul.addr %s200, 8
      %s202 = scalar_lea.vmem %s0, %s201
      %p203 = pneg %p38
      %p204 = pneg %p35
      %p205 = pneg %p59
      %p206 = pneg %p56
      %p207 = pneg %p80
      %p208 = pneg %p77
      %p209 = pneg %p106
      %p210 = pneg %p103
      %p211 = scmp.lt.s32.totalorder %s17, 1
      %s212 = scalar_select %p211, %s17, 1
      %s213 = smul.addr %s212, 32
      %s214 = smul.addr %s213, 8
      %s215 = scalar_lea.vmem %s3, %s214
      %p216 = pneg %p132
      %p217 = pneg %p129
      %p218 = scmp.lt.s32.totalorder %s17, 1
      %s219 = scalar_select %p218, %s17, 1
      %s220 = scalar_lea.vmem %s4, %s219
      %p221 = pneg %p158
      %p222 = pneg %p155
      %p223 = scmp.lt.s32.totalorder %s17, 1
      %s224 = scalar_select %p223, %s17, 1
      %s225 = scalar_lea.vmem %s5, %s224
      %p226 = scmp.lt.s32.totalorder %s17, 1
      %s227 = scalar_select %p226, %s17, 1
      %s228 = smul.addr %s227, 32
      %s229 = smul.addr %s228, 8
      %s230 = scalar_lea.vmem %s0, %s229
      %p231 = scmp.lt.s32.totalorder %s17, 1
      %s232 = scalar_select %p231, %s17, 1
      %s233 = smul.addr %s232, 32
      %s234 = smul.addr %s233, 8
      %s235 = scalar_lea.vmem %s3, %s234
      %p236 = scmp.lt.s32.totalorder %s17, 1
      %s237 = scalar_select %p236, %s17, 1
      %s238 = scalar_lea.vmem %s4, %s237
      %p239 = scmp.lt.s32.totalorder %s17, 1
      %s240 = scalar_select %p239, %s17, 1
      %s241 = scalar_lea.vmem %s5, %s240
      %vm242 = vcmask 31744
      %243 = vst.msk [vmem:[#allocation2] sm:$0xff] %vm242, 0.0
      %244 = vst.msk [vmem:[#allocation2 + $0x8] sm:$0xff] %vm242, 0.0
      %vm245 = vcmask 25600
      %246 = vst.msk [vmem:[#allocation2 + $0x10] sm:$0x3] %vm245, 0.0
      %247 = vst.msk [vmem:[#allocation2 + $0x18] sm:$0xff] %vm242, 0.0
      %248 = vst.msk [vmem:[#allocation2 + $0x20] sm:$0xff] %vm242, 0.0
      %249 = vst.msk [vmem:[#allocation2 + $0x28] sm:$0x3] %vm245, 0.0
      %250 = vst.msk [vmem:[#allocation2 + $0x30] sm:$0xff] %vm242, 0.0
      %251 = vst.msk [vmem:[#allocation2 + $0x38] sm:$0xff] %vm242, 0.0
      %252 = vst.msk [vmem:[#allocation2 + $0x40] sm:$0x3] %vm245, 0.0
      %253 = vst.msk [vmem:[#allocation2 + $0x48] sm:$0xff] %vm242, 0.0
      %254 = vst.msk [vmem:[#allocation2 + $0x50] sm:$0xff] %vm242, 0.0
      %255 = vst.msk [vmem:[#allocation2 + $0x58] sm:$0x3] %vm245, 0.0
      %256 = vst.msk [vmem:[#allocation2 + $0x60] sm:$0xff] %vm242, 0.0
      %257 = vst.msk [vmem:[#allocation2 + $0x68] sm:$0xff] %vm242, 0.0
      %258 = vst.msk [vmem:[#allocation2 + $0x70] sm:$0x3] %vm245, 0.0
      %259 = vst.msk [vmem:[#allocation2 + $0x78] sm:$0xff] %vm242, 0.0
      %260 = vst.msk [vmem:[#allocation2 + $0x80] sm:$0xff] %vm242, 0.0
      %261 = vst.msk [vmem:[#allocation2 + $0x88] sm:$0x3] %vm245, 0.0
      %262 = vst.msk [vmem:[#allocation2 + $0x90] sm:$0xff] %vm242, 0.0
      %263 = vst.msk [vmem:[#allocation2 + $0x98] sm:$0xff] %vm242, 0.0
      %264 = vst.msk [vmem:[#allocation2 + $0xa0] sm:$0x3] %vm245, 0.0
      %265 = vst.msk [vmem:[#allocation2 + $0xa8] sm:$0xff] %vm242, 0.0
      %266 = vst.msk [vmem:[#allocation2 + $0xb0] sm:$0xff] %vm242, 0.0
      %267 = vst.msk [vmem:[#allocation2 + $0xb8] sm:$0x3] %vm245, 0.0
      %268 = vst.msk [vmem:[#allocation2 + $0xc0] sm:$0xff] %vm242, 0.0
      %269 = vst.msk [vmem:[#allocation2 + $0xc8] sm:$0xff] %vm242, 0.0
      %270 = vst.msk [vmem:[#allocation2 + $0xd0] sm:$0x3] %vm245, 0.0
      %271 = vst.msk [vmem:[#allocation2 + $0xd8] sm:$0xff] %vm242, 0.0
      %272 = vst.msk [vmem:[#allocation2 + $0xe0] sm:$0xff] %vm242, 0.0
      %273 = vst.msk [vmem:[#allocation2 + $0xe8] sm:$0x3] %vm245, 0.0
      %274 = vst.msk [vmem:[#allocation2 + $0xf0] sm:$0xff] %vm242, 0.0
      %275 = vst.msk [vmem:[#allocation2 + $0xf8] sm:$0xff] %vm242, 0.0
      %276 = vst.msk [vmem:[#allocation2 + $0x100] sm:$0x3] %vm245, 0.0
      %277 = vst.msk [vmem:[#allocation2 + $0x108] sm:$0xff] %vm242, 0.0
      %278 = vst.msk [vmem:[#allocation2 + $0x110] sm:$0xff] %vm242, 0.0
      %279 = vst.msk [vmem:[#allocation2 + $0x118] sm:$0x3] %vm245, 0.0
      %280 = vst.msk [vmem:[#allocation2 + $0x120] sm:$0xff] %vm242, 0.0
      %281 = vst.msk [vmem:[#allocation2 + $0x128] sm:$0xff] %vm242, 0.0
      %282 = vst.msk [vmem:[#allocation2 + $0x130] sm:$0x3] %vm245, 0.0
      %283 = vst.msk [vmem:[#allocation2 + $0x138] sm:$0xff] %vm242, 0.0
      %284 = vst.msk [vmem:[#allocation2 + $0x140] sm:$0xff] %vm242, 0.0
      %285 = vst.msk [vmem:[#allocation2 + $0x148] sm:$0x3] %vm245, 0.0
      %286 = vst.msk [vmem:[#allocation2 + $0x150] sm:$0xff] %vm242, 0.0
      %287 = vst.msk [vmem:[#allocation2 + $0x158] sm:$0xff] %vm242, 0.0
      %288 = vst.msk [vmem:[#allocation2 + $0x160] sm:$0x3] %vm245, 0.0
      %289 = vst.msk [vmem:[#allocation2 + $0x168] sm:$0xff] %vm242, 0.0
      %290 = vst.msk [vmem:[#allocation2 + $0x170] sm:$0xff] %vm242, 0.0
      %291 = vst.msk [vmem:[#allocation2 + $0x178] sm:$0x3] %vm245, 0.0
      %292 = vst.msk [vmem:[#allocation2 + $0x180] sm:$0xff] %vm242, 0.0
      %293 = vst.msk [vmem:[#allocation2 + $0x188] sm:$0xff] %vm242, 0.0
      %294 = vst.msk [vmem:[#allocation2 + $0x190] sm:$0x3] %vm245, 0.0
      %295 = vst.msk [vmem:[#allocation2 + $0x198] sm:$0xff] %vm242, 0.0
      %296 = vst.msk [vmem:[#allocation2 + $0x1a0] sm:$0xff] %vm242, 0.0
      %297 = vst.msk [vmem:[#allocation2 + $0x1a8] sm:$0x3] %vm245, 0.0
      %v298 = vld [vmem:[%s230] sm:$0xff]
      %v299 = vld [vmem:[%s230 + $0x8] sm:$0xff]
      %v300 = vld [vmem:[%s230 + $0x10] sm:$0xff]
      %v301 = vld [vmem:[%s230 + $0x18] sm:$0xff]
      %v302 = vld [vmem:[%s230 + $0x20] sm:$0xff]
      %v303 = vld [vmem:[%s230 + $0x28] sm:$0xff]
      %v304 = vld [vmem:[%s230 + $0x30] sm:$0xff]
      %v305 = vld [vmem:[%s230 + $0x38] sm:$0xff]
      %v306 = vld [vmem:[%s230 + $0x40] sm:$0xff]
      %v307 = vld [vmem:[%s230 + $0x48] sm:$0xff]
      %v308 = vld [vmem:[%s230 + $0x50] sm:$0xff]
      %v309 = vld [vmem:[%s230 + $0x58] sm:$0xff]
      %v310 = vld [vmem:[%s230 + $0x60] sm:$0xff]
      %v311 = vld [vmem:[%s230 + $0x68] sm:$0xff]
      %v312 = vld [vmem:[%s230 + $0x70] sm:$0xff]
      %v313 = vld [vmem:[%s230 + $0x78] sm:$0xff]
      %v314 = vld [vmem:[%s230 + $0x80] sm:$0xff]
      %v315 = vld [vmem:[%s230 + $0x88] sm:$0xff]
      %v316 = vld [vmem:[%s230 + $0x90] sm:$0xff]
      %v317 = vld [vmem:[%s230 + $0x98] sm:$0xff]
      %v318 = vld [vmem:[%s230 + $0xa0] sm:$0xff]
      %v319 = vld [vmem:[%s230 + $0xa8] sm:$0xff]
      %v320 = vld [vmem:[%s230 + $0xb0] sm:$0xff]
      %v321 = vld [vmem:[%s230 + $0xb8] sm:$0xff]
      %v322 = vld [vmem:[%s230 + $0xc0] sm:$0xff]
      %v323 = vld [vmem:[%s230 + $0xc8] sm:$0xff]
      %v324 = vld [vmem:[%s230 + $0xd0] sm:$0xff]
      %v325 = vld [vmem:[%s230 + $0xd8] sm:$0xff]
      %v326 = vld [vmem:[%s230 + $0xe0] sm:$0xff]
      %v327 = vld [vmem:[%s230 + $0xe8] sm:$0xff]
      %v328 = vld [vmem:[%s230 + $0xf0] sm:$0xff]
      %v329 = vld [vmem:[%s230 + $0xf8] sm:$0xff]
      %s330 = scalar_lea.vmem [#allocation2], 24
      %331 = vst.msk [vmem:[%s330 + $0x1] sm:$0xff] %vm242, %v298
      %332 = vst.msk [vmem:[%s330 + $0x9] sm:$0xff] %vm242, %v299
      %333 = vst.msk [vmem:[%s330 + $0x19] sm:$0xff] %vm242, %v300
      %334 = vst.msk [vmem:[%s330 + $0x21] sm:$0xff] %vm242, %v301
      %335 = vst.msk [vmem:[%s330 + $0x31] sm:$0xff] %vm242, %v302
      %336 = vst.msk [vmem:[%s330 + $0x39] sm:$0xff] %vm242, %v303
      %337 = vst.msk [vmem:[%s330 + $0x49] sm:$0xff] %vm242, %v304
      %338 = vst.msk [vmem:[%s330 + $0x51] sm:$0xff] %vm242, %v305
      %339 = vst.msk [vmem:[%s330 + $0x61] sm:$0xff] %vm242, %v306
      %340 = vst.msk [vmem:[%s330 + $0x69] sm:$0xff] %vm242, %v307
      %341 = vst.msk [vmem:[%s330 + $0x79] sm:$0xff] %vm242, %v308
      %342 = vst.msk [vmem:[%s330 + $0x81] sm:$0xff] %vm242, %v309
      %343 = vst.msk [vmem:[%s330 + $0x91] sm:$0xff] %vm242, %v310
      %344 = vst.msk [vmem:[%s330 + $0x99] sm:$0xff] %vm242, %v311
      %345 = vst.msk [vmem:[%s330 + $0xa9] sm:$0xff] %vm242, %v312
      %346 = vst.msk [vmem:[%s330 + $0xb1] sm:$0xff] %vm242, %v313
      %347 = vst.msk [vmem:[%s330 + $0xc1] sm:$0xff] %vm242, %v314
      %348 = vst.msk [vmem:[%s330 + $0xc9] sm:$0xff] %vm242, %v315
      %349 = vst.msk [vmem:[%s330 + $0xd9] sm:$0xff] %vm242, %v316
      %350 = vst.msk [vmem:[%s330 + $0xe1] sm:$0xff] %vm242, %v317
      %351 = vst.msk [vmem:[%s330 + $0xf1] sm:$0xff] %vm242, %v318
      %352 = vst.msk [vmem:[%s330 + $0xf9] sm:$0xff] %vm242, %v319
      %353 = vst.msk [vmem:[%s330 + $0x109] sm:$0xff] %vm242, %v320
      %354 = vst.msk [vmem:[%s330 + $0x111] sm:$0xff] %vm242, %v321
      %355 = vst.msk [vmem:[%s330 + $0x121] sm:$0xff] %vm242, %v322
      %356 = vst.msk [vmem:[%s330 + $0x129] sm:$0xff] %vm242, %v323
      %357 = vst.msk [vmem:[%s330 + $0x139] sm:$0xff] %vm242, %v324
      %358 = vst.msk [vmem:[%s330 + $0x141] sm:$0xff] %vm242, %v325
      %359 = vst.msk [vmem:[%s330 + $0x151] sm:$0xff] %vm242, %v326
      %360 = vst.msk [vmem:[%s330 + $0x159] sm:$0xff] %vm242, %v327
      %361 = vst.msk [vmem:[%s330 + $0x169] sm:$0xff] %vm242, %v328
      %362 = vst.msk [vmem:[%s330 + $0x171] sm:$0xff] %vm242, %v329
      %v363 = vld [vmem:[#allocation2] sm:$0xff]
      %v364 = vld [vmem:[#allocation2 + $0x8] sm:$0xff]
      %v365 = vld [vmem:[#allocation2 + $0x18] sm:$0xff]
      %v366 = vld [vmem:[#allocation2 + $0x20] sm:$0xff]
      %v367 = vld [vmem:[#allocation2 + $0x30] sm:$0xff]
      %v368 = vld [vmem:[#allocation2 + $0x38] sm:$0xff]
      %v369 = vld [vmem:[#allocation2 + $0x48] sm:$0xff]
      %v370 = vld [vmem:[#allocation2 + $0x50] sm:$0xff]
      %v371 = vld [vmem:[#allocation2 + $0x60] sm:$0xff]
      %v372 = vld [vmem:[#allocation2 + $0x68] sm:$0xff]
      %v373 = vld [vmem:[#allocation2 + $0x78] sm:$0xff]
      %v374 = vld [vmem:[#allocation2 + $0x80] sm:$0xff]
      %v375 = vld [vmem:[#allocation2 + $0x90] sm:$0xff]
      %v376 = vld [vmem:[#allocation2 + $0x98] sm:$0xff]
      %v377 = vld [vmem:[#allocation2 + $0xa8] sm:$0xff]
      %v378 = vld [vmem:[#allocation2 + $0xb0] sm:$0xff]
      %v379 = vld [vmem:[#allocation2 + $0xc0] sm:$0xff]
      %v380 = vld [vmem:[#allocation2 + $0xc8] sm:$0xff]
      %v381 = vld [vmem:[#allocation2 + $0xd8] sm:$0xff]
      %v382 = vld [vmem:[#allocation2 + $0xe0] sm:$0xff]
      %v383 = vld [vmem:[#allocation2 + $0xf0] sm:$0xff]
      %v384 = vld [vmem:[#allocation2 + $0xf8] sm:$0xff]
      %v385 = vld [vmem:[#allocation2 + $0x108] sm:$0xff]
      %v386 = vld [vmem:[#allocation2 + $0x110] sm:$0xff]
      %v387 = vld [vmem:[#allocation2 + $0x120] sm:$0xff]
      %v388 = vld [vmem:[#allocation2 + $0x128] sm:$0xff]
      %v389 = vld [vmem:[#allocation2 + $0x138] sm:$0xff]
      %v390 = vld [vmem:[#allocation2 + $0x140] sm:$0xff]
      %v391 = vld [vmem:[#allocation2 + $0x150] sm:$0xff]
      %v392 = vld [vmem:[#allocation2 + $0x158] sm:$0xff]
      %v393 = vld [vmem:[#allocation2 + $0x168] sm:$0xff]
      %v394 = vld [vmem:[#allocation2 + $0x170] sm:$0xff]
      %v395 = vld [vmem:[%s1] sm:$0xf]
      %v397 = vsel %vm242, %v363, 0
      %v400 = vsel %vm242, %v364, 0
      %v403 = vsel %vm242, %v365, 0
      %v406 = vsel %vm242, %v366, 0
      %v409 = vsel %vm242, %v367, 0
      %v412 = vsel %vm242, %v368, 0
      %v415 = vsel %vm242, %v369, 0
      %v418 = vsel %vm242, %v370, 0
      %v421 = vsel %vm242, %v371, 0
      %v424 = vsel %vm242, %v372, 0
      %v427 = vsel %vm242, %v373, 0
      %v430 = vsel %vm242, %v374, 0
      %v433 = vsel %vm242, %v375, 0
      %v436 = vsel %vm242, %v376, 0
      %v439 = vsel %vm242, %v377, 0
      %v442 = vsel %vm242, %v378, 0
      %v445 = vsel %vm242, %v379, 0
      %v448 = vsel %vm242, %v380, 0
      %v451 = vsel %vm242, %v381, 0
      %v454 = vsel %vm242, %v382, 0
      %v457 = vsel %vm242, %v383, 0
      %v460 = vsel %vm242, %v384, 0
      %v463 = vsel %vm242, %v385, 0
      %v466 = vsel %vm242, %v386, 0
      %v469 = vsel %vm242, %v387, 0
      %v472 = vsel %vm242, %v388, 0
      %v475 = vsel %vm242, %v389, 0
      %v478 = vsel %vm242, %v390, 0
      %v481 = vsel %vm242, %v391, 0
      %v484 = vsel %vm242, %v392, 0
      %v487 = vsel %vm242, %v393, 0
      %v490 = vsel %vm242, %v394, 0
      %vm492 = vcmask 1043456
      %v494 = vsel %vm492, %v395, 0
      %496 = vmatprep.subr.mxu0 0.0
      %497 = vmatpush1.msra.mxu0 %v494
      %498 = vmatprep.subr.mxu0 0.0
      %499 = vmatpush1.msra.mxu0 0.0
      %500 = vmatprep.subr.mxu0 0.0
      %501 = vmatpush1.msra.mxu0 0.0
      %502 = vmatprep.subr.mxu0 0.0
      %503 = vmatpush1.msra.mxu0 0.0
      %504 = vmatprep.subr.mxu0 0.0
      %505 = vmatpush1.msra.mxu0 0.0
      %506 = vmatprep.subr.mxu0 0.0
      %507 = vmatpush1.msra.mxu0 0.0
      %508 = vmatprep.subr.mxu0 0.0
      %509 = vmatpush1.msra.mxu0 0.0
      %510 = vmatprep.subr.mxu0 0.0
      %511 = vmatpush1.msra.mxu0 0.0
      %512 = vmatprep.subr.mxu0 0.0
      %513 = vmatpush1.msra.mxu0 0.0
      %514 = vmatprep.subr.mxu0 0.0
      %515 = vmatpush1.msra.mxu0 0.0
      %516 = vmatprep.subr.mxu0 0.0
      %517 = vmatpush1.msra.mxu0 0.0
      %518 = vmatprep.subr.mxu0 0.0
      %519 = vmatpush1.msra.mxu0 0.0
      %520 = vmatprep.subr.mxu0 0.0
      %521 = vmatpush1.msra.mxu0 0.0
      %522 = vmatprep.subr.mxu0 0.0
      %523 = vmatpush1.msra.mxu0 0.0
      %524 = vmatprep.subr.mxu0 0.0
      %525 = vmatpush1.msra.mxu0 0.0
      %526 = vmatprep.subr.mxu0 0.0
      %527 = vmatpush1.msra.mxu0 0.0
      %528 = vmatprep.subr.mxu0 0.0
      %529 = vmatpush1.msra.mxu0 0.0
      %530 = vmatprep.subr.mxu0 0.0
      %531 = vmatpush1.msra.mxu0 0.0
      %532 = vmatprep.subr.mxu0 0.0
      %533 = vmatpush1.msra.mxu0 0.0
      %534 = vmatprep.subr.mxu0 0.0
      %535 = vmatpush1.msra.mxu0 0.0
      %536 = vmatprep.subr.mxu0 0.0
      %537 = vmatpush1.msra.mxu0 0.0
      %538 = vmatprep.subr.mxu0 0.0
      %539 = vmatpush1.msra.mxu0 0.0
      %540 = vmatprep.subr.mxu0 0.0
      %541 = vmatpush1.msra.mxu0 0.0
      %542 = vmatprep.subr.mxu0 0.0
      %543 = vmatpush1.msra.mxu0 0.0
      %544 = vmatprep.subr.mxu0 0.0
      %545 = vmatpush1.msra.mxu0 0.0
      %546 = vmatprep.subr.mxu0 0.0
      %547 = vmatpush1.msra.mxu0 0.0
      %548 = vmatprep.subr.mxu0 0.0
      %549 = vmatpush1.msra.mxu0 0.0
      %550 = vmatprep.subr.mxu0 0.0
      %551 = vmatpush1.msra.mxu0 0.0
      %552 = vmatprep.subr.mxu0 0.0
      %553 = vmatpush1.msra.mxu0 0.0
      %554 = vmatprep.subr.mxu0 0.0
      %555 = vmatpush1.msra.mxu0 0.0
      %556 = vmatprep.subr.mxu0 0.0
      %557 = vmatpush1.msra.mxu0 0.0
      %558 = vmatprep.subr.mxu0 0.0
      %559 = vmatpush1.msra.mxu0 0.0
      %560 = vmatprep.mubr.f32.mxu0 0.0
      %561 = vmatmul.mubr.f32.gmra.mrb[0].mxu0 %v397
      %v562 = vpop.f32.mrb[0].mxu0
      %v563 = vadd.f32 0.0, %v562
      %v564 = vpop.f32.mrb[0].mxu0
      %565 = vmatprep.mubr.f32.mxu0 0.0
      %566 = vmatmul.mubr.f32.gmra.mrb[0].mxu0 %v400
      %v567 = vpop.f32.mrb[0].mxu0
      %v568 = vadd.f32 0.0, %v567
      %v569 = vpop.f32.mrb[0].mxu0
      %570 = vmatprep.mubr.f32.mxu0 0.0
      %571 = vmatmul.mubr.f32.gmra.mrb[0].mxu0 %v403
      %v572 = vpop.f32.mrb[0].mxu0
      %v573 = vadd.f32 0.0, %v572
      %v574 = vpop.f32.mrb[0].mxu0
      %575 = vmatprep.mubr.f32.mxu0 0.0
      %576 = vmatmul.mubr.f32.gmra.mrb[0].mxu0 %v406
      %v577 = vpop.f32.mrb[0].mxu0
      %v578 = vadd.f32 0.0, %v577
      %v579 = vpop.f32.mrb[0].mxu0
      %580 = vmatprep.mubr.f32.mxu0 0.0
      %581 = vmatmul.mubr.f32.gmra.mrb[0].mxu0 %v409
      %v582 = vpop.f32.mrb[0].mxu0
      %v583 = vadd.f32 0.0, %v582
      %v584 = vpop.f32.mrb[0].mxu0
      %585 = vmatprep.mubr.f32.mxu0 0.0
      %586 = vmatmul.mubr.f32.gmra.mrb[0].mxu0 %v412
      %v587 = vpop.f32.mrb[0].mxu0
      %v588 = vadd.f32 0.0, %v587
      %v589 = vpop.f32.mrb[0].mxu0
      %590 = vmatprep.mubr.f32.mxu0 0.0
      %591 = vmatmul.mubr.f32.gmra.mrb[0].mxu0 %v415
      %v592 = vpop.f32.mrb[0].mxu0
      %v593 = vadd.f32 0.0, %v592
      %v594 = vpop.f32.mrb[0].mxu0
      %595 = vmatprep.mubr.f32.mxu0 0.0
      %596 = vmatmul.mubr.f32.gmra.mrb[0].mxu0 %v418
      %v597 = vpop.f32.mrb[0].mxu0
      %v598 = vadd.f32 0.0, %v597
      %v599 = vpop.f32.mrb[0].mxu0
      %600 = vmatprep.mubr.f32.mxu0 0.0
      %601 = vmatmul.mubr.f32.gmra.mrb[0].mxu0 %v421
      %v602 = vpop.f32.mrb[0].mxu0
      %v603 = vadd.f32 0.0, %v602
      %v604 = vpop.f32.mrb[0].mxu0
      %605 = vmatprep.mubr.f32.mxu0 0.0
      %606 = vmatmul.mubr.f32.gmra.mrb[0].mxu0 %v424
      %v607 = vpop.f32.mrb[0].mxu0
      %v608 = vadd.f32 0.0, %v607
      %v609 = vpop.f32.mrb[0].mxu0
      %610 = vmatprep.mubr.f32.mxu0 0.0
      %611 = vmatmul.mubr.f32.gmra.mrb[0].mxu0 %v427
      %v612 = vpop.f32.mrb[0].mxu0
      %v613 = vadd.f32 0.0, %v612
      %v614 = vpop.f32.mrb[0].mxu0
      %615 = vmatprep.mubr.f32.mxu0 0.0
      %616 = vmatmul.mubr.f32.gmra.mrb[0].mxu0 %v430
      %v617 = vpop.f32.mrb[0].mxu0
      %v618 = vadd.f32 0.0, %v617
      %v619 = vpop.f32.mrb[0].mxu0
      %620 = vmatprep.mubr.f32.mxu0 0.0
      %621 = vmatmul.mubr.f32.gmra.mrb[0].mxu0 %v433
      %v622 = vpop.f32.mrb[0].mxu0
      %v623 = vadd.f32 0.0, %v622
      %v624 = vpop.f32.mrb[0].mxu0
      %625 = vmatprep.mubr.f32.mxu0 0.0
      %626 = vmatmul.mubr.f32.gmra.mrb[0].mxu0 %v436
      %v627 = vpop.f32.mrb[0].mxu0
      %v628 = vadd.f32 0.0, %v627
      %v629 = vpop.f32.mrb[0].mxu0
      %630 = vmatprep.mubr.f32.mxu0 0.0
      %631 = vmatmul.mubr.f32.gmra.mrb[0].mxu0 %v439
      %v632 = vpop.f32.mrb[0].mxu0
      %v633 = vadd.f32 0.0, %v632
      %v634 = vpop.f32.mrb[0].mxu0
      %635 = vmatprep.mubr.f32.mxu0 0.0
      %636 = vmatmul.mubr.f32.gmra.mrb[0].mxu0 %v442
      %v637 = vpop.f32.mrb[0].mxu0
      %v638 = vadd.f32 0.0, %v637
      %v639 = vpop.f32.mrb[0].mxu0
      %640 = vmatprep.mubr.f32.mxu0 0.0
      %641 = vmatmul.mubr.f32.gmra.mrb[0].mxu0 %v445
      %v642 = vpop.f32.mrb[0].mxu0
      %v643 = vadd.f32 0.0, %v642
      %v644 = vpop.f32.mrb[0].mxu0
      %645 = vmatprep.mubr.f32.mxu0 0.0
      %646 = vmatmul.mubr.f32.gmra.mrb[0].mxu0 %v448
      %v647 = vpop.f32.mrb[0].mxu0
      %v648 = vadd.f32 0.0, %v647
      %v649 = vpop.f32.mrb[0].mxu0
      %650 = vmatprep.mubr.f32.mxu0 0.0
      %651 = vmatmul.mubr.f32.gmra.mrb[0].mxu0 %v451
      %v652 = vpop.f32.mrb[0].mxu0
      %v653 = vadd.f32 0.0, %v652
      %v654 = vpop.f32.mrb[0].mxu0
      %655 = vmatprep.mubr.f32.mxu0 0.0
      %656 = vmatmul.mubr.f32.gmra.mrb[0].mxu0 %v454
      %v657 = vpop.f32.mrb[0].mxu0
      %v658 = vadd.f32 0.0, %v657
      %v659 = vpop.f32.mrb[0].mxu0
      %660 = vmatprep.mubr.f32.mxu0 0.0
      %661 = vmatmul.mubr.f32.gmra.mrb[0].mxu0 %v457
      %v662 = vpop.f32.mrb[0].mxu0
      %v663 = vadd.f32 0.0, %v662
      %v664 = vpop.f32.mrb[0].mxu0
      %665 = vmatprep.mubr.f32.mxu0 0.0
      %666 = vmatmul.mubr.f32.gmra.mrb[0].mxu0 %v460
      %v667 = vpop.f32.mrb[0].mxu0
      %v668 = vadd.f32 0.0, %v667
      %v669 = vpop.f32.mrb[0].mxu0
      %670 = vmatprep.mubr.f32.mxu0 0.0
      %671 = vmatmul.mubr.f32.gmra.mrb[0].mxu0 %v463
      %v672 = vpop.f32.mrb[0].mxu0
      %v673 = vadd.f32 0.0, %v672
      %v674 = vpop.f32.mrb[0].mxu0
      %675 = vmatprep.mubr.f32.mxu0 0.0
      %676 = vmatmul.mubr.f32.gmra.mrb[0].mxu0 %v466
      %v677 = vpop.f32.mrb[0].mxu0
      %v678 = vadd.f32 0.0, %v677
      %v679 = vpop.f32.mrb[0].mxu0
      %680 = vmatprep.mubr.f32.mxu0 0.0
      %681 = vmatmul.mubr.f32.gmra.mrb[0].mxu0 %v469
      %v682 = vpop.f32.mrb[0].mxu0
      %v683 = vadd.f32 0.0, %v682
      %v684 = vpop.f32.mrb[0].mxu0
      %685 = vmatprep.mubr.f32.mxu0 0.0
      %686 = vmatmul.mubr.f32.gmra.mrb[0].mxu0 %v472
      %v687 = vpop.f32.mrb[0].mxu0
      %v688 = vadd.f32 0.0, %v687
      %v689 = vpop.f32.mrb[0].mxu0
      %690 = vmatprep.mubr.f32.mxu0 0.0
      %691 = vmatmul.mubr.f32.gmra.mrb[0].mxu0 %v475
      %v692 = vpop.f32.mrb[0].mxu0
      %v693 = vadd.f32 0.0, %v692
      %v694 = vpop.f32.mrb[0].mxu0
      %695 = vmatprep.mubr.f32.mxu0 0.0
      %696 = vmatmul.mubr.f32.gmra.mrb[0].mxu0 %v478
      %v697 = vpop.f32.mrb[0].mxu0
      %v698 = vadd.f32 0.0, %v697
      %v699 = vpop.f32.mrb[0].mxu0
      %700 = vmatprep.mubr.f32.mxu0 0.0
      %701 = vmatmul.mubr.f32.gmra.mrb[0].mxu0 %v481
      %v702 = vpop.f32.mrb[0].mxu0
      %v703 = vadd.f32 0.0, %v702
      %v704 = vpop.f32.mrb[0].mxu0
      %705 = vmatprep.mubr.f32.mxu0 0.0
      %706 = vmatmul.mubr.f32.gmra.mrb[0].mxu0 %v484
      %v707 = vpop.f32.mrb[0].mxu0
      %v708 = vadd.f32 0.0, %v707
      %v709 = vpop.f32.mrb[0].mxu0
      %710 = vmatprep.mubr.f32.mxu0 0.0
      %711 = vmatmul.mubr.f32.gmra.mrb[0].mxu0 %v487
      %v712 = vpop.f32.mrb[0].mxu0
      %v713 = vadd.f32 0.0, %v712
      %v714 = vpop.f32.mrb[0].mxu0
      %715 = vmatprep.mubr.f32.mxu0 0.0
      %716 = vmatmul.mubr.f32.gmra.mrb[0].mxu0 %v490
      %v717 = vpop.f32.mrb[0].mxu0
      %v718 = vadd.f32 0.0, %v717
      %v719 = vpop.f32.mrb[0].mxu0
      %720 = vdwg.mxu0
      %vm721 = vcmask 64512
      %722 = vst.msk [vmem:[#allocation3] sm:$0xff] %vm721, %v563
      %723 = vst.msk [vmem:[#allocation3 + $0x8] sm:$0xff] %vm721, %v568
      %724 = vst.msk [vmem:[#allocation3 + $0x10] sm:$0xff] %vm721, %v573
      %725 = vst.msk [vmem:[#allocation3 + $0x18] sm:$0xff] %vm721, %v578
      %726 = vst.msk [vmem:[#allocation3 + $0x20] sm:$0xff] %vm721, %v583
      %727 = vst.msk [vmem:[#allocation3 + $0x28] sm:$0xff] %vm721, %v588
      %728 = vst.msk [vmem:[#allocation3 + $0x30] sm:$0xff] %vm721, %v593
      %729 = vst.msk [vmem:[#allocation3 + $0x38] sm:$0xff] %vm721, %v598
      %730 = vst.msk [vmem:[#allocation3 + $0x40] sm:$0xff] %vm721, %v603
      %731 = vst.msk [vmem:[#allocation3 + $0x48] sm:$0xff] %vm721, %v608
      %732 = vst.msk [vmem:[#allocation3 + $0x50] sm:$0xff] %vm721, %v613
      %733 = vst.msk [vmem:[#allocation3 + $0x58] sm:$0xff] %vm721, %v618
      %734 = vst.msk [vmem:[#allocation3 + $0x60] sm:$0xff] %vm721, %v623
      %735 = vst.msk [vmem:[#allocation3 + $0x68] sm:$0xff] %vm721, %v628
      %736 = vst.msk [vmem:[#allocation3 + $0x70] sm:$0xff] %vm721, %v633
      %737 = vst.msk [vmem:[#allocation3 + $0x78] sm:$0xff] %vm721, %v638
      %738 = vst.msk [vmem:[#allocation3 + $0x80] sm:$0xff] %vm721, %v643
      %739 = vst.msk [vmem:[#allocation3 + $0x88] sm:$0xff] %vm721, %v648
      %740 = vst.msk [vmem:[#allocation3 + $0x90] sm:$0xff] %vm721, %v653
      %741 = vst.msk [vmem:[#allocation3 + $0x98] sm:$0xff] %vm721, %v658
      %742 = vst.msk [vmem:[#allocation3 + $0xa0] sm:$0xff] %vm721, %v663
      %743 = vst.msk [vmem:[#allocation3 + $0xa8] sm:$0xff] %vm721, %v668
      %744 = vst.msk [vmem:[#allocation3 + $0xb0] sm:$0xff] %vm721, %v673
      %745 = vst.msk [vmem:[#allocation3 + $0xb8] sm:$0xff] %vm721, %v678
      %746 = vst.msk [vmem:[#allocation3 + $0xc0] sm:$0xff] %vm721, %v683
      %747 = vst.msk [vmem:[#allocation3 + $0xc8] sm:$0xff] %vm721, %v688
      %748 = vst.msk [vmem:[#allocation3 + $0xd0] sm:$0xff] %vm721, %v693
      %749 = vst.msk [vmem:[#allocation3 + $0xd8] sm:$0xff] %vm721, %v698
      %750 = vst.msk [vmem:[#allocation3 + $0xe0] sm:$0xff] %vm721, %v703
      %751 = vst.msk [vmem:[#allocation3 + $0xe8] sm:$0xff] %vm721, %v708
      %752 = vst.msk [vmem:[#allocation3 + $0xf0] sm:$0xff] %vm721, %v713
      %753 = vst.msk [vmem:[#allocation3 + $0xf8] sm:$0xff] %vm721, %v718
      %v754 = vld [vmem:[#allocation2 + $0x1] sm:$0xff]
      %v755 = vld [vmem:[#allocation2 + $0x9] sm:$0xff]
      %v756 = vld [vmem:[#allocation2 + $0x19] sm:$0xff]
      %v757 = vld [vmem:[#allocation2 + $0x21] sm:$0xff]
      %v758 = vld [vmem:[#allocation2 + $0x31] sm:$0xff]
      %v759 = vld [vmem:[#allocation2 + $0x39] sm:$0xff]
      %v760 = vld [vmem:[#allocation2 + $0x49] sm:$0xff]
      %v761 = vld [vmem:[#allocation2 + $0x51] sm:$0xff]
      %v762 = vld [vmem:[#allocation2 + $0x61] sm:$0xff]
      %v763 = vld [vmem:[#allocation2 + $0x69] sm:$0xff]
      %v764 = vld [vmem:[#allocation2 + $0x79] sm:$0xff]
      %v765 = vld [vmem:[#allocation2 + $0x81] sm:$0xff]
      %v766 = vld [vmem:[#allocation2 + $0x91] sm:$0xff]
      %v767 = vld [vmem:[#allocation2 + $0x99] sm:$0xff]
      %v768 = vld [vmem:[#allocation2 + $0xa9] sm:$0xff]
      %v769 = vld [vmem:[#allocation2 + $0xb1] sm:$0xff]
      %v770 = vld [vmem:[#allocation2 + $0xc1] sm:$0xff]
      %v771 = vld [vmem:[#allocation2 + $0xc9] sm:$0xff]
      %v772 = vld [vmem:[#allocation2 + $0xd9] sm:$0xff]
      %v773 = vld [vmem:[#allocation2 + $0xe1] sm:$0xff]
      %v774 = vld [vmem:[#allocation2 + $0xf1] sm:$0xff]
      %v775 = vld [vmem:[#allocation2 + $0xf9] sm:$0xff]
      %v776 = vld [vmem:[#allocation2 + $0x109] sm:$0xff]
      %v777 = vld [vmem:[#allocation2 + $0x111] sm:$0xff]
      %v778 = vld [vmem:[#allocation2 + $0x121] sm:$0xff]
      %v779 = vld [vmem:[#allocation2 + $0x129] sm:$0xff]
      %v780 = vld [vmem:[#allocation2 + $0x139] sm:$0xff]
      %v781 = vld [vmem:[#allocation2 + $0x141] sm:$0xff]
      %v782 = vld [vmem:[#allocation2 + $0x151] sm:$0xff]
      %v783 = vld [vmem:[#allocation2 + $0x159] sm:$0xff]
      %v784 = vld [vmem:[#allocation2 + $0x169] sm:$0xff]
      %v785 = vld [vmem:[#allocation2 + $0x171] sm:$0xff]
      %s786 = scalar_lea.vmem %s1, 4
      %v787 = vld [vmem:[%s786] sm:$0xf]
      %v789 = vsel %vm242, %v754, 0
      %v792 = vsel %vm242, %v755, 0
      %v795 = vsel %vm242, %v756, 0
      %v798 = vsel %vm242, %v757, 0
      %v801 = vsel %vm242, %v758, 0
      %v804 = vsel %vm242, %v759, 0
      %v807 = vsel %vm242, %v760, 0
      %v810 = vsel %vm242, %v761, 0
      %v813 = vsel %vm242, %v762, 0
      %v816 = vsel %vm242, %v763, 0
      %v819 = vsel %vm242, %v764, 0
      %v822 = vsel %vm242, %v765, 0
      %v825 = vsel %vm242, %v766, 0
      %v828 = vsel %vm242, %v767, 0
      %v831 = vsel %vm242, %v768, 0
      %v834 = vsel %vm242, %v769, 0
      %v837 = vsel %vm242, %v770, 0
      %v840 = vsel %vm242, %v771, 0
      %v843 = vsel %vm242, %v772, 0
      %v846 = vsel %vm242, %v773, 0
      %v849 = vsel %vm242, %v774, 0
      %v852 = vsel %vm242, %v775, 0
      %v855 = vsel %vm242, %v776, 0
      %v858 = vsel %vm242, %v777, 0
      %v861 = vsel %vm242, %v778, 0
      %v864 = vsel %vm242, %v779, 0
      %v867 = vsel %vm242, %v780, 0
      %v870 = vsel %vm242, %v781, 0
      %v873 = vsel %vm242, %v782, 0
      %v876 = vsel %vm242, %v783, 0
      %v879 = vsel %vm242, %v784, 0
      %v882 = vsel %vm242, %v785, 0
      %v885 = vsel %vm492, %v787, 0
      %887 = vmatprep.subr.mxu0 0.0
      %888 = vmatpush1.msra.mxu0 %v885
      %889 = vmatprep.subr.mxu0 0.0
      %890 = vmatpush1.msra.mxu0 0.0
      %891 = vmatprep.subr.mxu0 0.0
      %892 = vmatpush1.msra.mxu0 0.0
      %893 = vmatprep.subr.mxu0 0.0
      %894 = vmatpush1.msra.mxu0 0.0
      %895 = vmatprep.subr.mxu0 0.0
      %896 = vmatpush1.msra.mxu0 0.0
      %897 = vmatprep.subr.mxu0 0.0
      %898 = vmatpush1.msra.mxu0 0.0
      %899 = vmatprep.subr.mxu0 0.0
      %900 = vmatpush1.msra.mxu0 0.0
      %901 = vmatprep.subr.mxu0 0.0
      %902 = vmatpush1.msra.mxu0 0.0
      %903 = vmatprep.subr.mxu0 0.0
      %904 = vmatpush1.msra.mxu0 0.0
      %905 = vmatprep.subr.mxu0 0.0
      %906 = vmatpush1.msra.mxu0 0.0
      %907 = vmatprep.subr.mxu0 0.0
      %908 = vmatpush1.msra.mxu0 0.0
      %909 = vmatprep.subr.mxu0 0.0
      %910 = vmatpush1.msra.mxu0 0.0
      %911 = vmatprep.subr.mxu0 0.0
      %912 = vmatpush1.msra.mxu0 0.0
      %913 = vmatprep.subr.mxu0 0.0
      %914 = vmatpush1.msra.mxu0 0.0
      %915 = vmatprep.subr.mxu0 0.0
      %916 = vmatpush1.msra.mxu0 0.0
      %917 = vmatprep.subr.mxu0 0.0
      %918 = vmatpush1.msra.mxu0 0.0
      %919 = vmatprep.subr.mxu0 0.0
      %920 = vmatpush1.msra.mxu0 0.0
      %921 = vmatprep.subr.mxu0 0.0
      %922 = vmatpush1.msra.mxu0 0.0
      %923 = vmatprep.subr.mxu0 0.0
      %924 = vmatpush1.msra.mxu0 0.0
      %925 = vmatprep.subr.mxu0 0.0
      %926 = vmatpush1.msra.mxu0 0.0
      %927 = vmatprep.subr.mxu0 0.0
      %928 = vmatpush1.msra.mxu0 0.0
      %929 = vmatprep.subr.mxu0 0.0
      %930 = vmatpush1.msra.mxu0 0.0
      %931 = vmatprep.subr.mxu0 0.0
      %932 = vmatpush1.msra.mxu0 0.0
      %933 = vmatprep.subr.mxu0 0.0
      %934 = vmatpush1.msra.mxu0 0.0
      %935 = vmatprep.subr.mxu0 0.0
      %936 = vmatpush1.msra.mxu0 0.0
      %937 = vmatprep.subr.mxu0 0.0
      %938 = vmatpush1.msra.mxu0 0.0
      %939 = vmatprep.subr.mxu0 0.0
      %940 = vmatpush1.msra.mxu0 0.0
      %941 = vmatprep.subr.mxu0 0.0
      %942 = vmatpush1.msra.mxu0 0.0
      %943 = vmatprep.subr.mxu0 0.0
      %944 = vmatpush1.msra.mxu0 0.0
      %945 = vmatprep.subr.mxu0 0.0
      %946 = vmatpush1.msra.mxu0 0.0
      %947 = vmatprep.subr.mxu0 0.0
      %948 = vmatpush1.msra.mxu0 0.0
      %949 = vmatprep.subr.mxu0 0.0
      %950 = vmatpush1.msra.mxu0 0.0
      %951 = vmatprep.mubr.f32.mxu0 0.0
      %952 = vmatmul.mubr.f32.gmra.mrb[0].mxu0 %v789
      %v953 = vpop.f32.mrb[0].mxu0
      %v954 = vadd.f32 0.0, %v953
      %v955 = vpop.f32.mrb[0].mxu0
      %956 = vmatprep.mubr.f32.mxu0 0.0
      %957 = vmatmul.mubr.f32.gmra.mrb[0].mxu0 %v792
      %v958 = vpop.f32.mrb[0].mxu0
      %v959 = vadd.f32 0.0, %v958
      %v960 = vpop.f32.mrb[0].mxu0
      %961 = vmatprep.mubr.f32.mxu0 0.0
      %962 = vmatmul.mubr.f32.gmra.mrb[0].mxu0 %v795
      %v963 = vpop.f32.mrb[0].mxu0
      %v964 = vadd.f32 0.0, %v963
      %v965 = vpop.f32.mrb[0].mxu0
      %966 = vmatprep.mubr.f32.mxu0 0.0
      %967 = vmatmul.mubr.f32.gmra.mrb[0].mxu0 %v798
      %v968 = vpop.f32.mrb[0].mxu0
      %v969 = vadd.f32 0.0, %v968
      %v970 = vpop.f32.mrb[0].mxu0
      %971 = vmatprep.mubr.f32.mxu0 0.0
      %972 = vmatmul.mubr.f32.gmra.mrb[0].mxu0 %v801
      %v973 = vpop.f32.mrb[0].mxu0
      %v974 = vadd.f32 0.0, %v973
      %v975 = vpop.f32.mrb[0].mxu0
      %976 = vmatprep.mubr.f32.mxu0 0.0
      %977 = vmatmul.mubr.f32.gmra.mrb[0].mxu0 %v804
      %v978 = vpop.f32.mrb[0].mxu0
      %v979 = vadd.f32 0.0, %v978
      %v980 = vpop.f32.mrb[0].mxu0
      %981 = vmatprep.mubr.f32.mxu0 0.0
      %982 = vmatmul.mubr.f32.gmra.mrb[0].mxu0 %v807
      %v983 = vpop.f32.mrb[0].mxu0
      %v984 = vadd.f32 0.0, %v983
      %v985 = vpop.f32.mrb[0].mxu0
      %986 = vmatprep.mubr.f32.mxu0 0.0
      %987 = vmatmul.mubr.f32.gmra.mrb[0].mxu0 %v810
      %v988 = vpop.f32.mrb[0].mxu0
      %v989 = vadd.f32 0.0, %v988
      %v990 = vpop.f32.mrb[0].mxu0
      %991 = vmatprep.mubr.f32.mxu0 0.0
      %992 = vmatmul.mubr.f32.gmra.mrb[0].mxu0 %v813
      %v993 = vpop.f32.mrb[0].mxu0
      %v994 = vadd.f32 0.0, %v993
      %v995 = vpop.f32.mrb[0].mxu0
      %996 = vmatprep.mubr.f32.mxu0 0.0
      %997 = vmatmul.mubr.f32.gmra.mrb[0].mxu0 %v816
      %v998 = vpop.f32.mrb[0].mxu0
      %v999 = vadd.f32 0.0, %v998
      %v1000 = vpop.f32.mrb[0].mxu0
      %1001 = vmatprep.mubr.f32.mxu0 0.0
      %1002 = vmatmul.mubr.f32.gmra.mrb[0].mxu0 %v819
      %v1003 = vpop.f32.mrb[0].mxu0
      %v1004 = vadd.f32 0.0, %v1003
      %v1005 = vpop.f32.mrb[0].mxu0
      %1006 = vmatprep.mubr.f32.mxu0 0.0
      %1007 = vmatmul.mubr.f32.gmra.mrb[0].mxu0 %v822
      %v1008 = vpop.f32.mrb[0].mxu0
      %v1009 = vadd.f32 0.0, %v1008
      %v1010 = vpop.f32.mrb[0].mxu0
      %1011 = vmatprep.mubr.f32.mxu0 0.0
      %1012 = vmatmul.mubr.f32.gmra.mrb[0].mxu0 %v825
      %v1013 = vpop.f32.mrb[0].mxu0
      %v1014 = vadd.f32 0.0, %v1013
      %v1015 = vpop.f32.mrb[0].mxu0
      %1016 = vmatprep.mubr.f32.mxu0 0.0
      %1017 = vmatmul.mubr.f32.gmra.mrb[0].mxu0 %v828
      %v1018 = vpop.f32.mrb[0].mxu0
      %v1019 = vadd.f32 0.0, %v1018
      %v1020 = vpop.f32.mrb[0].mxu0
      %1021 = vmatprep.mubr.f32.mxu0 0.0
      %1022 = vmatmul.mubr.f32.gmra.mrb[0].mxu0 %v831
      %v1023 = vpop.f32.mrb[0].mxu0
      %v1024 = vadd.f32 0.0, %v1023
      %v1025 = vpop.f32.mrb[0].mxu0
      %1026 = vmatprep.mubr.f32.mxu0 0.0
      %1027 = vmatmul.mubr.f32.gmra.mrb[0].mxu0 %v834
      %v1028 = vpop.f32.mrb[0].mxu0
      %v1029 = vadd.f32 0.0, %v1028
      %v1030 = vpop.f32.mrb[0].mxu0
      %1031 = vmatprep.mubr.f32.mxu0 0.0
      %1032 = vmatmul.mubr.f32.gmra.mrb[0].mxu0 %v837
      %v1033 = vpop.f32.mrb[0].mxu0
      %v1034 = vadd.f32 0.0, %v1033
      %v1035 = vpop.f32.mrb[0].mxu0
      %1036 = vmatprep.mubr.f32.mxu0 0.0
      %1037 = vmatmul.mubr.f32.gmra.mrb[0].mxu0 %v840
      %v1038 = vpop.f32.mrb[0].mxu0
      %v1039 = vadd.f32 0.0, %v1038
      %v1040 = vpop.f32.mrb[0].mxu0
      %1041 = vmatprep.mubr.f32.mxu0 0.0
      %1042 = vmatmul.mubr.f32.gmra.mrb[0].mxu0 %v843
      %v1043 = vpop.f32.mrb[0].mxu0
      %v1044 = vadd.f32 0.0, %v1043
      %v1045 = vpop.f32.mrb[0].mxu0
      %1046 = vmatprep.mubr.f32.mxu0 0.0
      %1047 = vmatmul.mubr.f32.gmra.mrb[0].mxu0 %v846
      %v1048 = vpop.f32.mrb[0].mxu0
      %v1049 = vadd.f32 0.0, %v1048
      %v1050 = vpop.f32.mrb[0].mxu0
      %1051 = vmatprep.mubr.f32.mxu0 0.0
      %1052 = vmatmul.mubr.f32.gmra.mrb[0].mxu0 %v849
      %v1053 = vpop.f32.mrb[0].mxu0
      %v1054 = vadd.f32 0.0, %v1053
      %v1055 = vpop.f32.mrb[0].mxu0
      %1056 = vmatprep.mubr.f32.mxu0 0.0
      %1057 = vmatmul.mubr.f32.gmra.mrb[0].mxu0 %v852
      %v1058 = vpop.f32.mrb[0].mxu0
      %v1059 = vadd.f32 0.0, %v1058
      %v1060 = vpop.f32.mrb[0].mxu0
      %1061 = vmatprep.mubr.f32.mxu0 0.0
      %1062 = vmatmul.mubr.f32.gmra.mrb[0].mxu0 %v855
      %v1063 = vpop.f32.mrb[0].mxu0
      %v1064 = vadd.f32 0.0, %v1063
      %v1065 = vpop.f32.mrb[0].mxu0
      %1066 = vmatprep.mubr.f32.mxu0 0.0
      %1067 = vmatmul.mubr.f32.gmra.mrb[0].mxu0 %v858
      %v1068 = vpop.f32.mrb[0].mxu0
      %v1069 = vadd.f32 0.0, %v1068
      %v1070 = vpop.f32.mrb[0].mxu0
      %1071 = vmatprep.mubr.f32.mxu0 0.0
      %1072 = vmatmul.mubr.f32.gmra.mrb[0].mxu0 %v861
      %v1073 = vpop.f32.mrb[0].mxu0
      %v1074 = vadd.f32 0.0, %v1073
      %v1075 = vpop.f32.mrb[0].mxu0
      %1076 = vmatprep.mubr.f32.mxu0 0.0
      %1077 = vmatmul.mubr.f32.gmra.mrb[0].mxu0 %v864
      %v1078 = vpop.f32.mrb[0].mxu0
      %v1079 = vadd.f32 0.0, %v1078
      %v1080 = vpop.f32.mrb[0].mxu0
      %1081 = vmatprep.mubr.f32.mxu0 0.0
      %1082 = vmatmul.mubr.f32.gmra.mrb[0].mxu0 %v867
      %v1083 = vpop.f32.mrb[0].mxu0
      %v1084 = vadd.f32 0.0, %v1083
      %v1085 = vpop.f32.mrb[0].mxu0
      %1086 = vmatprep.mubr.f32.mxu0 0.0
      %1087 = vmatmul.mubr.f32.gmra.mrb[0].mxu0 %v870
      %v1088 = vpop.f32.mrb[0].mxu0
      %v1089 = vadd.f32 0.0, %v1088
      %v1090 = vpop.f32.mrb[0].mxu0
      %1091 = vmatprep.mubr.f32.mxu0 0.0
      %1092 = vmatmul.mubr.f32.gmra.mrb[0].mxu0 %v873
      %v1093 = vpop.f32.mrb[0].mxu0
      %v1094 = vadd.f32 0.0, %v1093
      %v1095 = vpop.f32.mrb[0].mxu0
      %1096 = vmatprep.mubr.f32.mxu0 0.0
      %1097 = vmatmul.mubr.f32.gmra.mrb[0].mxu0 %v876
      %v1098 = vpop.f32.mrb[0].mxu0
      %v1099 = vadd.f32 0.0, %v1098
      %v1100 = vpop.f32.mrb[0].mxu0
      %1101 = vmatprep.mubr.f32.mxu0 0.0
      %1102 = vmatmul.mubr.f32.gmra.mrb[0].mxu0 %v879
      %v1103 = vpop.f32.mrb[0].mxu0
      %v1104 = vadd.f32 0.0, %v1103
      %v1105 = vpop.f32.mrb[0].mxu0
      %1106 = vmatprep.mubr.f32.mxu0 0.0
      %1107 = vmatmul.mubr.f32.gmra.mrb[0].mxu0 %v882
      %v1108 = vpop.f32.mrb[0].mxu0
      %v1109 = vadd.f32 0.0, %v1108
      %v1110 = vpop.f32.mrb[0].mxu0
      %1111 = vdwg.mxu0
      %v1112 = vld [vmem:[#allocation3] sm:$0xff]
      %v1113 = vld [vmem:[#allocation3 + $0x8] sm:$0xff]
      %v1114 = vld [vmem:[#allocation3 + $0x10] sm:$0xff]
      %v1115 = vld [vmem:[#allocation3 + $0x18] sm:$0xff]
      %v1116 = vld [vmem:[#allocation3 + $0x20] sm:$0xff]
      %v1117 = vld [vmem:[#allocation3 + $0x28] sm:$0xff]
      %v1118 = vld [vmem:[#allocation3 + $0x30] sm:$0xff]
      %v1119 = vld [vmem:[#allocation3 + $0x38] sm:$0xff]
      %v1120 = vld [vmem:[#allocation3 + $0x40] sm:$0xff]
      %v1121 = vld [vmem:[#allocation3 + $0x48] sm:$0xff]
      %v1122 = vld [vmem:[#allocation3 + $0x50] sm:$0xff]
      %v1123 = vld [vmem:[#allocation3 + $0x58] sm:$0xff]
      %v1124 = vld [vmem:[#allocation3 + $0x60] sm:$0xff]
      %v1125 = vld [vmem:[#allocation3 + $0x68] sm:$0xff]
      %v1126 = vld [vmem:[#allocation3 + $0x70] sm:$0xff]
      %v1127 = vld [vmem:[#allocation3 + $0x78] sm:$0xff]
      %v1128 = vld [vmem:[#allocation3 + $0x80] sm:$0xff]
      %v1129 = vld [vmem:[#allocation3 + $0x88] sm:$0xff]
      %v1130 = vld [vmem:[#allocation3 + $0x90] sm:$0xff]
      %v1131 = vld [vmem:[#allocation3 + $0x98] sm:$0xff]
      %v1132 = vld [vmem:[#allocation3 + $0xa0] sm:$0xff]
      %v1133 = vld [vmem:[#allocation3 + $0xa8] sm:$0xff]
      %v1134 = vld [vmem:[#allocation3 + $0xb0] sm:$0xff]
      %v1135 = vld [vmem:[#allocation3 + $0xb8] sm:$0xff]
      %v1136 = vld [vmem:[#allocation3 + $0xc0] sm:$0xff]
      %v1137 = vld [vmem:[#allocation3 + $0xc8] sm:$0xff]
      %v1138 = vld [vmem:[#allocation3 + $0xd0] sm:$0xff]
      %v1139 = vld [vmem:[#allocation3 + $0xd8] sm:$0xff]
      %v1140 = vld [vmem:[#allocation3 + $0xe0] sm:$0xff]
      %v1141 = vld [vmem:[#allocation3 + $0xe8] sm:$0xff]
      %v1142 = vld [vmem:[#allocation3 + $0xf0] sm:$0xff]
      %v1143 = vld [vmem:[#allocation3 + $0xf8] sm:$0xff]
      %v1144 = vadd.f32 %v1112, %v954
      %v1145 = vadd.f32 %v1113, %v959
      %v1146 = vadd.f32 %v1114, %v964
      %v1147 = vadd.f32 %v1115, %v969
      %v1148 = vadd.f32 %v1116, %v974
      %v1149 = vadd.f32 %v1117, %v979
      %v1150 = vadd.f32 %v1118, %v984
      %v1151 = vadd.f32 %v1119, %v989
      %v1152 = vadd.f32 %v1120, %v994
      %v1153 = vadd.f32 %v1121, %v999
      %v1154 = vadd.f32 %v1122, %v1004
      %v1155 = vadd.f32 %v1123, %v1009
      %v1156 = vadd.f32 %v1124, %v1014
      %v1157 = vadd.f32 %v1125, %v1019
      %v1158 = vadd.f32 %v1126, %v1024
      %v1159 = vadd.f32 %v1127, %v1029
      %v1160 = vadd.f32 %v1128, %v1034
      %v1161 = vadd.f32 %v1129, %v1039
      %v1162 = vadd.f32 %v1130, %v1044
      %v1163 = vadd.f32 %v1131, %v1049
      %v1164 = vadd.f32 %v1132, %v1054
      %v1165 = vadd.f32 %v1133, %v1059
      %v1166 = vadd.f32 %v1134, %v1064
      %v1167 = vadd.f32 %v1135, %v1069
      %v1168 = vadd.f32 %v1136, %v1074
      %v1169 = vadd.f32 %v1137, %v1079
      %v1170 = vadd.f32 %v1138, %v1084
      %v1171 = vadd.f32 %v1139, %v1089
      %v1172 = vadd.f32 %v1140, %v1094
      %v1173 = vadd.f32 %v1141, %v1099
      %v1174 = vadd.f32 %v1142, %v1104
      %v1175 = vadd.f32 %v1143, %v1109
      %1176 = vst.msk [vmem:[#allocation3] sm:$0xff] %vm721, %v1144
      %1177 = vst.msk [vmem:[#allocation3 + $0x8] sm:$0xff] %vm721, %v1145
      %1178 = vst.msk [vmem:[#allocation3 + $0x10] sm:$0xff] %vm721, %v1146
      %1179 = vst.msk [vmem:[#allocation3 + $0x18] sm:$0xff] %vm721, %v1147
      %1180 = vst.msk [vmem:[#allocation3 + $0x20] sm:$0xff] %vm721, %v1148
      %1181 = vst.msk [vmem:[#allocation3 + $0x28] sm:$0xff] %vm721, %v1149
      %1182 = vst.msk [vmem:[#allocation3 + $0x30] sm:$0xff] %vm721, %v1150
      %1183 = vst.msk [vmem:[#allocation3 + $0x38] sm:$0xff] %vm721, %v1151
      %1184 = vst.msk [vmem:[#allocation3 + $0x40] sm:$0xff] %vm721, %v1152
      %1185 = vst.msk [vmem:[#allocation3 + $0x48] sm:$0xff] %vm721, %v1153
      %1186 = vst.msk [vmem:[#allocation3 + $0x50] sm:$0xff] %vm721, %v1154
      %1187 = vst.msk [vmem:[#allocation3 + $0x58] sm:$0xff] %vm721, %v1155
      %1188 = vst.msk [vmem:[#allocation3 + $0x60] sm:$0xff] %vm721, %v1156
      %1189 = vst.msk [vmem:[#allocation3 + $0x68] sm:$0xff] %vm721, %v1157
      %1190 = vst.msk [vmem:[#allocation3 + $0x70] sm:$0xff] %vm721, %v1158
      %1191 = vst.msk [vmem:[#allocation3 + $0x78] sm:$0xff] %vm721, %v1159
      %1192 = vst.msk [vmem:[#allocation3 + $0x80] sm:$0xff] %vm721, %v1160
      %1193 = vst.msk [vmem:[#allocation3 + $0x88] sm:$0xff] %vm721, %v1161
      %1194 = vst.msk [vmem:[#allocation3 + $0x90] sm:$0xff] %vm721, %v1162
      %1195 = vst.msk [vmem:[#allocation3 + $0x98] sm:$0xff] %vm721, %v1163
      %1196 = vst.msk [vmem:[#allocation3 + $0xa0] sm:$0xff] %vm721, %v1164
      %1197 = vst.msk [vmem:[#allocation3 + $0xa8] sm:$0xff] %vm721, %v1165
      %1198 = vst.msk [vmem:[#allocation3 + $0xb0] sm:$0xff] %vm721, %v1166
      %1199 = vst.msk [vmem:[#allocation3 + $0xb8] sm:$0xff] %vm721, %v1167
      %1200 = vst.msk [vmem:[#allocation3 + $0xc0] sm:$0xff] %vm721, %v1168
      %1201 = vst.msk [vmem:[#allocation3 + $0xc8] sm:$0xff] %vm721, %v1169
      %1202 = vst.msk [vmem:[#allocation3 + $0xd0] sm:$0xff] %vm721, %v1170
      %1203 = vst.msk [vmem:[#allocation3 + $0xd8] sm:$0xff] %vm721, %v1171
      %1204 = vst.msk [vmem:[#allocation3 + $0xe0] sm:$0xff] %vm721, %v1172
      %1205 = vst.msk [vmem:[#allocation3 + $0xe8] sm:$0xff] %vm721, %v1173
      %1206 = vst.msk [vmem:[#allocation3 + $0xf0] sm:$0xff] %vm721, %v1174
      %1207 = vst.msk [vmem:[#allocation3 + $0xf8] sm:$0xff] %vm721, %v1175
      %v1208 = vld [vmem:[#allocation2 + $0x2] sm:$0xff]
      %v1209 = vld [vmem:[#allocation2 + $0xa] sm:$0xff]
      %v1210 = vld [vmem:[#allocation2 + $0x1a] sm:$0xff]
      %v1211 = vld [vmem:[#allocation2 + $0x22] sm:$0xff]
      %v1212 = vld [vmem:[#allocation2 + $0x32] sm:$0xff]
      %v1213 = vld [vmem:[#allocation2 + $0x3a] sm:$0xff]
      %v1214 = vld [vmem:[#allocation2 + $0x4a] sm:$0xff]
      %v1215 = vld [vmem:[#allocation2 + $0x52] sm:$0xff]
      %v1216 = vld [vmem:[#allocation2 + $0x62] sm:$0xff]
      %v1217 = vld [vmem:[#allocation2 + $0x6a] sm:$0xff]
      %v1218 = vld [vmem:[#allocation2 + $0x7a] sm:$0xff]
      %v1219 = vld [vmem:[#allocation2 + $0x82] sm:$0xff]
      %v1220 = vld [vmem:[#allocation2 + $0x92] sm:$0xff]
      %v1221 = vld [vmem:[#allocation2 + $0x9a] sm:$0xff]
      %v1222 = vld [vmem:[#allocation2 + $0xaa] sm:$0xff]
      %v1223 = vld [vmem:[#allocation2 + $0xb2] sm:$0xff]
      %v1224 = vld [vmem:[#allocation2 + $0xc2] sm:$0xff]
      %v1225 = vld [vmem:[#allocation2 + $0xca] sm:$0xff]
      %v1226 = vld [vmem:[#allocation2 + $0xda] sm:$0xff]
      %v1227 = vld [vmem:[#allocation2 + $0xe2] sm:$0xff]
      %v1228 = vld [vmem:[#allocation2 + $0xf2] sm:$0xff]
      %v1229 = vld [vmem:[#allocation2 + $0xfa] sm:$0xff]
      %v1230 = vld [vmem:[#allocation2 + $0x10a] sm:$0xff]
      %v1231 = vld [vmem:[#allocation2 + $0x112] sm:$0xff]
      %v1232 = vld [vmem:[#allocation2 + $0x122] sm:$0xff]
      %v1233 = vld [vmem:[#allocation2 + $0x12a] sm:$0xff]
      %v1234 = vld [vmem:[#allocation2 + $0x13a] sm:$0xff]
      %v1235 = vld [vmem:[#allocation2 + $0x142] sm:$0xff]
      %v1236 = vld [vmem:[#allocation2 + $0x152] sm:$0xff]
      %v1237 = vld [vmem:[#allocation2 + $0x15a] sm:$0xff]
      %v1238 = vld [vmem:[#allocation2 + $0x16a] sm:$0xff]
      %v1239 = vld [vmem:[#allocation2 + $0x172] sm:$0xff]
      %s1240 = scalar_lea.vmem %s1, 8
      %v1241 = vld [vmem:[%s1240] sm:$0xf]
      %v1243 = vsel %vm242, %v1208, 0
      %v1246 = vsel %vm242, %v1209, 0
      %v1249 = vsel %vm242, %v1210, 0
      %v1252 = vsel %vm242, %v1211, 0
      %v1255 = vsel %vm242, %v1212, 0
      %v1258 = vsel %vm242, %v1213, 0
      %v1261 = vsel %vm242, %v1214, 0
      %v1264 = vsel %vm242, %v1215, 0
      %v1267 = vsel %vm242, %v1216, 0
      %v1270 = vsel %vm242, %v1217, 0
      %v1273 = vsel %vm242, %v1218, 0
      %v1276 = vsel %vm242, %v1219, 0
      %v1279 = vsel %vm242, %v1220, 0
      %v1282 = vsel %vm242, %v1221, 0
      %v1285 = vsel %vm242, %v1222, 0
      %v1288 = vsel %vm242, %v1223, 0
      %v1291 = vsel %vm242, %v1224, 0
      %v1294 = vsel %vm242, %v1225, 0
      %v1297 = vsel %vm242, %v1226, 0
      %v1300 = vsel %vm242, %v1227, 0
      %v1303 = vsel %vm242, %v1228, 0
      %v1306 = vsel %vm242, %v1229, 0
      %v1309 = vsel %vm242, %v1230, 0
      %v1312 = vsel %vm242, %v1231, 0
      %v1315 = vsel %vm242, %v1232, 0
      %v1318 = vsel %vm242, %v1233, 0
      %v1321 = vsel %vm242, %v1234, 0
      %v1324 = vsel %vm242, %v1235, 0
      %v1327 = vsel %vm242, %v1236, 0
      %v1330 = vsel %vm242, %v1237, 0
      %v1333 = vsel %vm242, %v1238, 0
      %v1336 = vsel %vm242, %v1239, 0
      %v1339 = vsel %vm492, %v1241, 0
      %1341 = vmatprep.subr.mxu0 0.0
      %1342 = vmatpush1.msra.mxu0 %v1339
      %1343 = vmatprep.subr.mxu0 0.0
      %1344 = vmatpush1.msra.mxu0 0.0
      %1345 = vmatprep.subr.mxu0 0.0
      %1346 = vmatpush1.msra.mxu0 0.0
      %1347 = vmatprep.subr.mxu0 0.0
      %1348 = vmatpush1.msra.mxu0 0.0
      %1349 = vmatprep.subr.mxu0 0.0
      %1350 = vmatpush1.msra.mxu0 0.0
      %1351 = vmatprep.subr.mxu0 0.0
      %1352 = vmatpush1.msra.mxu0 0.0
      %1353 = vmatprep.subr.mxu0 0.0
      %1354 = vmatpush1.msra.mxu0 0.0
      %1355 = vmatprep.subr.mxu0 0.0
      %1356 = vmatpush1.msra.mxu0 0.0
      %1357 = vmatprep.subr.mxu0 0.0
      %1358 = vmatpush1.msra.mxu0 0.0
      %1359 = vmatprep.subr.mxu0 0.0
      %1360 = vmatpush1.msra.mxu0 0.0
      %1361 = vmatprep.subr.mxu0 0.0
      %1362 = vmatpush1.msra.mxu0 0.0
      %1363 = vmatprep.subr.mxu0 0.0
      %1364 = vmatpush1.msra.mxu0 0.0
      %1365 = vmatprep.subr.mxu0 0.0
      %1366 = vmatpush1.msra.mxu0 0.0
      %1367 = vmatprep.subr.mxu0 0.0
      %1368 = vmatpush1.msra.mxu0 0.0
      %1369 = vmatprep.subr.mxu0 0.0
      %1370 = vmatpush1.msra.mxu0 0.0
      %1371 = vmatprep.subr.mxu0 0.0
      %1372 = vmatpush1.msra.mxu0 0.0
      %1373 = vmatprep.subr.mxu0 0.0
      %1374 = vmatpush1.msra.mxu0 0.0
      %1375 = vmatprep.subr.mxu0 0.0
      %1376 = vmatpush1.msra.mxu0 0.0
      %1377 = vmatprep.subr.mxu0 0.0
      %1378 = vmatpush1.msra.mxu0 0.0
      %1379 = vmatprep.subr.mxu0 0.0
      %1380 = vmatpush1.msra.mxu0 0.0
      %1381 = vmatprep.subr.mxu0 0.0
      %1382 = vmatpush1.msra.mxu0 0.0
      %1383 = vmatprep.subr.mxu0 0.0
      %1384 = vmatpush1.msra.mxu0 0.0
      %1385 = vmatprep.subr.mxu0 0.0
      %1386 = vmatpush1.msra.mxu0 0.0
      %1387 = vmatprep.subr.mxu0 0.0
      %1388 = vmatpush1.msra.mxu0 0.0
      %1389 = vmatprep.subr.mxu0 0.0
      %1390 = vmatpush1.msra.mxu0 0.0
      %1391 = vmatprep.subr.mxu0 0.0
      %1392 = vmatpush1.msra.mxu0 0.0
      %1393 = vmatprep.subr.mxu0 0.0
      %1394 = vmatpush1.msra.mxu0 0.0
      %1395 = vmatprep.subr.mxu0 0.0
      %1396 = vmatpush1.msra.mxu0 0.0
      %1397 = vmatprep.subr.mxu0 0.0
      %1398 = vmatpush1.msra.mxu0 0.0
      %1399 = vmatprep.subr.mxu0 0.0
      %1400 = vmatpush1.msra.mxu0 0.0
      %1401 = vmatprep.subr.mxu0 0.0
      %1402 = vmatpush1.msra.mxu0 0.0
      %1403 = vmatprep.subr.mxu0 0.0
      %1404 = vmatpush1.msra.mxu0 0.0
      %1405 = vmatprep.mubr.f32.mxu0 0.0
      %1406 = vmatmul.mubr.f32.gmra.mrb[0].mxu0 %v1243
      %v1407 = vpop.f32.mrb[0].mxu0
      %v1408 = vadd.f32 0.0, %v1407
      %v1409 = vpop.f32.mrb[0].mxu0
      %1410 = vmatprep.mubr.f32.mxu0 0.0
      %1411 = vmatmul.mubr.f32.gmra.mrb[0].mxu0 %v1246
      %v1412 = vpop.f32.mrb[0].mxu0
      %v1413 = vadd.f32 0.0, %v1412
      %v1414 = vpop.f32.mrb[0].mxu0
      %1415 = vmatprep.mubr.f32.mxu0 0.0
      %1416 = vmatmul.mubr.f32.gmra.mrb[0].mxu0 %v1249
      %v1417 = vpop.f32.mrb[0].mxu0
      %v1418 = vadd.f32 0.0, %v1417
      %v1419 = vpop.f32.mrb[0].mxu0
      %1420 = vmatprep.mubr.f32.mxu0 0.0
      %1421 = vmatmul.mubr.f32.gmra.mrb[0].mxu0 %v1252
      %v1422 = vpop.f32.mrb[0].mxu0
      %v1423 = vadd.f32 0.0, %v1422
      %v1424 = vpop.f32.mrb[0].mxu0
      %1425 = vmatprep.mubr.f32.mxu0 0.0
      %1426 = vmatmul.mubr.f32.gmra.mrb[0].mxu0 %v1255
      %v1427 = vpop.f32.mrb[0].mxu0
      %v1428 = vadd.f32 0.0, %v1427
      %v1429 = vpop.f32.mrb[0].mxu0
      %1430 = vmatprep.mubr.f32.mxu0 0.0
      %1431 = vmatmul.mubr.f32.gmra.mrb[0].mxu0 %v1258
      %v1432 = vpop.f32.mrb[0].mxu0
      %v1433 = vadd.f32 0.0, %v1432
      %v1434 = vpop.f32.mrb[0].mxu0
      %1435 = vmatprep.mubr.f32.mxu0 0.0
      %1436 = vmatmul.mubr.f32.gmra.mrb[0].mxu0 %v1261
      %v1437 = vpop.f32.mrb[0].mxu0
      %v1438 = vadd.f32 0.0, %v1437
      %v1439 = vpop.f32.mrb[0].mxu0
      %1440 = vmatprep.mubr.f32.mxu0 0.0
      %1441 = vmatmul.mubr.f32.gmra.mrb[0].mxu0 %v1264
      %v1442 = vpop.f32.mrb[0].mxu0
      %v1443 = vadd.f32 0.0, %v1442
      %v1444 = vpop.f32.mrb[0].mxu0
      %1445 = vmatprep.mubr.f32.mxu0 0.0
      %1446 = vmatmul.mubr.f32.gmra.mrb[0].mxu0 %v1267
      %v1447 = vpop.f32.mrb[0].mxu0
      %v1448 = vadd.f32 0.0, %v1447
      %v1449 = vpop.f32.mrb[0].mxu0
      %1450 = vmatprep.mubr.f32.mxu0 0.0
      %1451 = vmatmul.mubr.f32.gmra.mrb[0].mxu0 %v1270
      %v1452 = vpop.f32.mrb[0].mxu0
      %v1453 = vadd.f32 0.0, %v1452
      %v1454 = vpop.f32.mrb[0].mxu0
      %1455 = vmatprep.mubr.f32.mxu0 0.0
      %1456 = vmatmul.mubr.f32.gmra.mrb[0].mxu0 %v1273
      %v1457 = vpop.f32.mrb[0].mxu0
      %v1458 = vadd.f32 0.0, %v1457
      %v1459 = vpop.f32.mrb[0].mxu0
      %1460 = vmatprep.mubr.f32.mxu0 0.0
      %1461 = vmatmul.mubr.f32.gmra.mrb[0].mxu0 %v1276
      %v1462 = vpop.f32.mrb[0].mxu0
      %v1463 = vadd.f32 0.0, %v1462
      %v1464 = vpop.f32.mrb[0].mxu0
      %1465 = vmatprep.mubr.f32.mxu0 0.0
      %1466 = vmatmul.mubr.f32.gmra.mrb[0].mxu0 %v1279
      %v1467 = vpop.f32.mrb[0].mxu0
      %v1468 = vadd.f32 0.0, %v1467
      %v1469 = vpop.f32.mrb[0].mxu0
      %1470 = vmatprep.mubr.f32.mxu0 0.0
      %1471 = vmatmul.mubr.f32.gmra.mrb[0].mxu0 %v1282
      %v1472 = vpop.f32.mrb[0].mxu0
      %v1473 = vadd.f32 0.0, %v1472
      %v1474 = vpop.f32.mrb[0].mxu0
      %1475 = vmatprep.mubr.f32.mxu0 0.0
      %1476 = vmatmul.mubr.f32.gmra.mrb[0].mxu0 %v1285
      %v1477 = vpop.f32.mrb[0].mxu0
      %v1478 = vadd.f32 0.0, %v1477
      %v1479 = vpop.f32.mrb[0].mxu0
      %1480 = vmatprep.mubr.f32.mxu0 0.0
      %1481 = vmatmul.mubr.f32.gmra.mrb[0].mxu0 %v1288
      %v1482 = vpop.f32.mrb[0].mxu0
      %v1483 = vadd.f32 0.0, %v1482
      %v1484 = vpop.f32.mrb[0].mxu0
      %1485 = vmatprep.mubr.f32.mxu0 0.0
      %1486 = vmatmul.mubr.f32.gmra.mrb[0].mxu0 %v1291
      %v1487 = vpop.f32.mrb[0].mxu0
      %v1488 = vadd.f32 0.0, %v1487
      %v1489 = vpop.f32.mrb[0].mxu0
      %1490 = vmatprep.mubr.f32.mxu0 0.0
      %1491 = vmatmul.mubr.f32.gmra.mrb[0].mxu0 %v1294
      %v1492 = vpop.f32.mrb[0].mxu0
      %v1493 = vadd.f32 0.0, %v1492
      %v1494 = vpop.f32.mrb[0].mxu0
      %1495 = vmatprep.mubr.f32.mxu0 0.0
      %1496 = vmatmul.mubr.f32.gmra.mrb[0].mxu0 %v1297
      %v1497 = vpop.f32.mrb[0].mxu0
      %v1498 = vadd.f32 0.0, %v1497
      %v1499 = vpop.f32.mrb[0].mxu0
      %1500 = vmatprep.mubr.f32.mxu0 0.0
      %1501 = vmatmul.mubr.f32.gmra.mrb[0].mxu0 %v1300
      %v1502 = vpop.f32.mrb[0].mxu0
      %v1503 = vadd.f32 0.0, %v1502
      %v1504 = vpop.f32.mrb[0].mxu0
      %1505 = vmatprep.mubr.f32.mxu0 0.0
      %1506 = vmatmul.mubr.f32.gmra.mrb[0].mxu0 %v1303
      %v1507 = vpop.f32.mrb[0].mxu0
      %v1508 = vadd.f32 0.0, %v1507
      %v1509 = vpop.f32.mrb[0].mxu0
      %1510 = vmatprep.mubr.f32.mxu0 0.0
      %1511 = vmatmul.mubr.f32.gmra.mrb[0].mxu0 %v1306
      %v1512 = vpop.f32.mrb[0].mxu0
      %v1513 = vadd.f32 0.0, %v1512
      %v1514 = vpop.f32.mrb[0].mxu0
      %1515 = vmatprep.mubr.f32.mxu0 0.0
      %1516 = vmatmul.mubr.f32.gmra.mrb[0].mxu0 %v1309
      %v1517 = vpop.f32.mrb[0].mxu0
      %v1518 = vadd.f32 0.0, %v1517
      %v1519 = vpop.f32.mrb[0].mxu0
      %1520 = vmatprep.mubr.f32.mxu0 0.0
      %1521 = vmatmul.mubr.f32.gmra.mrb[0].mxu0 %v1312
      %v1522 = vpop.f32.mrb[0].mxu0
      %v1523 = vadd.f32 0.0, %v1522
      %v1524 = vpop.f32.mrb[0].mxu0
      %1525 = vmatprep.mubr.f32.mxu0 0.0
      %1526 = vmatmul.mubr.f32.gmra.mrb[0].mxu0 %v1315
      %v1527 = vpop.f32.mrb[0].mxu0
      %v1528 = vadd.f32 0.0, %v1527
      %v1529 = vpop.f32.mrb[0].mxu0
      %1530 = vmatprep.mubr.f32.mxu0 0.0
      %1531 = vmatmul.mubr.f32.gmra.mrb[0].mxu0 %v1318
      %v1532 = vpop.f32.mrb[0].mxu0
      %v1533 = vadd.f32 0.0, %v1532
      %v1534 = vpop.f32.mrb[0].mxu0
      %1535 = vmatprep.mubr.f32.mxu0 0.0
      %1536 = vmatmul.mubr.f32.gmra.mrb[0].mxu0 %v1321
      %v1537 = vpop.f32.mrb[0].mxu0
      %v1538 = vadd.f32 0.0, %v1537
      %v1539 = vpop.f32.mrb[0].mxu0
      %1540 = vmatprep.mubr.f32.mxu0 0.0
      %1541 = vmatmul.mubr.f32.gmra.mrb[0].mxu0 %v1324
      %v1542 = vpop.f32.mrb[0].mxu0
      %v1543 = vadd.f32 0.0, %v1542
      %v1544 = vpop.f32.mrb[0].mxu0
      %1545 = vmatprep.mubr.f32.mxu0 0.0
      %1546 = vmatmul.mubr.f32.gmra.mrb[0].mxu0 %v1327
      %v1547 = vpop.f32.mrb[0].mxu0
      %v1548 = vadd.f32 0.0, %v1547
      %v1549 = vpop.f32.mrb[0].mxu0
      %1550 = vmatprep.mubr.f32.mxu0 0.0
      %1551 = vmatmul.mubr.f32.gmra.mrb[0].mxu0 %v1330
      %v1552 = vpop.f32.mrb[0].mxu0
      %v1553 = vadd.f32 0.0, %v1552
      %v1554 = vpop.f32.mrb[0].mxu0
      %1555 = vmatprep.mubr.f32.mxu0 0.0
      %1556 = vmatmul.mubr.f32.gmra.mrb[0].mxu0 %v1333
      %v1557 = vpop.f32.mrb[0].mxu0
      %v1558 = vadd.f32 0.0, %v1557
      %v1559 = vpop.f32.mrb[0].mxu0
      %1560 = vmatprep.mubr.f32.mxu0 0.0
      %1561 = vmatmul.mubr.f32.gmra.mrb[0].mxu0 %v1336
      %v1562 = vpop.f32.mrb[0].mxu0
      %v1563 = vadd.f32 0.0, %v1562
      %v1564 = vpop.f32.mrb[0].mxu0
      %1565 = vdwg.mxu0
      %v1566 = vld [vmem:[#allocation3] sm:$0xff]
      %v1567 = vld [vmem:[#allocation3 + $0x8] sm:$0xff]
      %v1568 = vld [vmem:[#allocation3 + $0x10] sm:$0xff]
      %v1569 = vld [vmem:[#allocation3 + $0x18] sm:$0xff]
      %v1570 = vld [vmem:[#allocation3 + $0x20] sm:$0xff]
      %v1571 = vld [vmem:[#allocation3 + $0x28] sm:$0xff]
      %v1572 = vld [vmem:[#allocation3 + $0x30] sm:$0xff]
      %v1573 = vld [vmem:[#allocation3 + $0x38] sm:$0xff]
      %v1574 = vld [vmem:[#allocation3 + $0x40] sm:$0xff]
      %v1575 = vld [vmem:[#allocation3 + $0x48] sm:$0xff]
      %v1576 = vld [vmem:[#allocation3 + $0x50] sm:$0xff]
      %v1577 = vld [vmem:[#allocation3 + $0x58] sm:$0xff]
      %v1578 = vld [vmem:[#allocation3 + $0x60] sm:$0xff]
      %v1579 = vld [vmem:[#allocation3 + $0x68] sm:$0xff]
      %v1580 = vld [vmem:[#allocation3 + $0x70] sm:$0xff]
      %v1581 = vld [vmem:[#allocation3 + $0x78] sm:$0xff]
      %v1582 = vld [vmem:[#allocation3 + $0x80] sm:$0xff]
      %v1583 = vld [vmem:[#allocation3 + $0x88] sm:$0xff]
      %v1584 = vld [vmem:[#allocation3 + $0x90] sm:$0xff]
      %v1585 = vld [vmem:[#allocation3 + $0x98] sm:$0xff]
      %v1586 = vld [vmem:[#allocation3 + $0xa0] sm:$0xff]
      %v1587 = vld [vmem:[#allocation3 + $0xa8] sm:$0xff]
      %v1588 = vld [vmem:[#allocation3 + $0xb0] sm:$0xff]
      %v1589 = vld [vmem:[#allocation3 + $0xb8] sm:$0xff]
      %v1590 = vld [vmem:[#allocation3 + $0xc0] sm:$0xff]
      %v1591 = vld [vmem:[#allocation3 + $0xc8] sm:$0xff]
      %v1592 = vld [vmem:[#allocation3 + $0xd0] sm:$0xff]
      %v1593 = vld [vmem:[#allocation3 + $0xd8] sm:$0xff]
      %v1594 = vld [vmem:[#allocation3 + $0xe0] sm:$0xff]
      %v1595 = vld [vmem:[#allocation3 + $0xe8] sm:$0xff]
      %v1596 = vld [vmem:[#allocation3 + $0xf0] sm:$0xff]
      %v1597 = vld [vmem:[#allocation3 + $0xf8] sm:$0xff]
      %v1598 = vadd.f32 %v1566, %v1408
      %v1599 = vadd.f32 %v1567, %v1413
      %v1600 = vadd.f32 %v1568, %v1418
      %v1601 = vadd.f32 %v1569, %v1423
      %v1602 = vadd.f32 %v1570, %v1428
      %v1603 = vadd.f32 %v1571, %v1433
      %v1604 = vadd.f32 %v1572, %v1438
      %v1605 = vadd.f32 %v1573, %v1443
      %v1606 = vadd.f32 %v1574, %v1448
      %v1607 = vadd.f32 %v1575, %v1453
      %v1608 = vadd.f32 %v1576, %v1458
      %v1609 = vadd.f32 %v1577, %v1463
      %v1610 = vadd.f32 %v1578, %v1468
      %v1611 = vadd.f32 %v1579, %v1473
      %v1612 = vadd.f32 %v1580, %v1478
      %v1613 = vadd.f32 %v1581, %v1483
      %v1614 = vadd.f32 %v1582, %v1488
      %v1615 = vadd.f32 %v1583, %v1493
      %v1616 = vadd.f32 %v1584, %v1498
      %v1617 = vadd.f32 %v1585, %v1503
      %v1618 = vadd.f32 %v1586, %v1508
      %v1619 = vadd.f32 %v1587, %v1513
      %v1620 = vadd.f32 %v1588, %v1518
      %v1621 = vadd.f32 %v1589, %v1523
      %v1622 = vadd.f32 %v1590, %v1528
      %v1623 = vadd.f32 %v1591, %v1533
      %v1624 = vadd.f32 %v1592, %v1538
      %v1625 = vadd.f32 %v1593, %v1543
      %v1626 = vadd.f32 %v1594, %v1548
      %v1627 = vadd.f32 %v1595, %v1553
      %v1628 = vadd.f32 %v1596, %v1558
      %v1629 = vadd.f32 %v1597, %v1563
      %1630 = vst.msk [vmem:[#allocation3] sm:$0xff] %vm721, %v1598
      %1631 = vst.msk [vmem:[#allocation3 + $0x8] sm:$0xff] %vm721, %v1599
      %1632 = vst.msk [vmem:[#allocation3 + $0x10] sm:$0xff] %vm721, %v1600
      %1633 = vst.msk [vmem:[#allocation3 + $0x18] sm:$0xff] %vm721, %v1601
      %1634 = vst.msk [vmem:[#allocation3 + $0x20] sm:$0xff] %vm721, %v1602
      %1635 = vst.msk [vmem:[#allocation3 + $0x28] sm:$0xff] %vm721, %v1603
      %1636 = vst.msk [vmem:[#allocation3 + $0x30] sm:$0xff] %vm721, %v1604
      %1637 = vst.msk [vmem:[#allocation3 + $0x38] sm:$0xff] %vm721, %v1605
      %1638 = vst.msk [vmem:[#allocation3 + $0x40] sm:$0xff] %vm721, %v1606
      %1639 = vst.msk [vmem:[#allocation3 + $0x48] sm:$0xff] %vm721, %v1607
      %1640 = vst.msk [vmem:[#allocation3 + $0x50] sm:$0xff] %vm721, %v1608
      %1641 = vst.msk [vmem:[#allocation3 + $0x58] sm:$0xff] %vm721, %v1609
      %1642 = vst.msk [vmem:[#allocation3 + $0x60] sm:$0xff] %vm721, %v1610
      %1643 = vst.msk [vmem:[#allocation3 + $0x68] sm:$0xff] %vm721, %v1611
      %1644 = vst.msk [vmem:[#allocation3 + $0x70] sm:$0xff] %vm721, %v1612
      %1645 = vst.msk [vmem:[#allocation3 + $0x78] sm:$0xff] %vm721, %v1613
      %1646 = vst.msk [vmem:[#allocation3 + $0x80] sm:$0xff] %vm721, %v1614
      %1647 = vst.msk [vmem:[#allocation3 + $0x88] sm:$0xff] %vm721, %v1615
      %1648 = vst.msk [vmem:[#allocation3 + $0x90] sm:$0xff] %vm721, %v1616
      %1649 = vst.msk [vmem:[#allocation3 + $0x98] sm:$0xff] %vm721, %v1617
      %1650 = vst.msk [vmem:[#allocation3 + $0xa0] sm:$0xff] %vm721, %v1618
      %1651 = vst.msk [vmem:[#allocation3 + $0xa8] sm:$0xff] %vm721, %v1619
      %1652 = vst.msk [vmem:[#allocation3 + $0xb0] sm:$0xff] %vm721, %v1620
      %1653 = vst.msk [vmem:[#allocation3 + $0xb8] sm:$0xff] %vm721, %v1621
      %1654 = vst.msk [vmem:[#allocation3 + $0xc0] sm:$0xff] %vm721, %v1622
      %1655 = vst.msk [vmem:[#allocation3 + $0xc8] sm:$0xff] %vm721, %v1623
      %1656 = vst.msk [vmem:[#allocation3 + $0xd0] sm:$0xff] %vm721, %v1624
      %1657 = vst.msk [vmem:[#allocation3 + $0xd8] sm:$0xff] %vm721, %v1625
      %1658 = vst.msk [vmem:[#allocation3 + $0xe0] sm:$0xff] %vm721, %v1626
      %1659 = vst.msk [vmem:[#allocation3 + $0xe8] sm:$0xff] %vm721, %v1627
      %1660 = vst.msk [vmem:[#allocation3 + $0xf0] sm:$0xff] %vm721, %v1628
      %1661 = vst.msk [vmem:[#allocation3 + $0xf8] sm:$0xff] %vm721, %v1629
      %v1662 = vld [vmem:[%s330] sm:$0xff]
      %v1663 = vld [vmem:[%s330 + $0x8] sm:$0xff]
      %v1664 = vld [vmem:[%s330 + $0x18] sm:$0xff]
      %v1665 = vld [vmem:[%s330 + $0x20] sm:$0xff]
      %v1666 = vld [vmem:[%s330 + $0x30] sm:$0xff]
      %v1667 = vld [vmem:[%s330 + $0x38] sm:$0xff]
      %v1668 = vld [vmem:[%s330 + $0x48] sm:$0xff]
      %v1669 = vld [vmem:[%s330 + $0x50] sm:$0xff]
      %v1670 = vld [vmem:[%s330 + $0x60] sm:$0xff]
      %v1671 = vld [vmem:[%s330 + $0x68] sm:$0xff]
      %v1672 = vld [vmem:[%s330 + $0x78] sm:$0xff]
      %v1673 = vld [vmem:[%s330 + $0x80] sm:$0xff]
      %v1674 = vld [vmem:[%s330 + $0x90] sm:$0xff]
      %v1675 = vld [vmem:[%s330 + $0x98] sm:$0xff]
      %v1676 = vld [vmem:[%s330 + $0xa8] sm:$0xff]
      %v1677 = vld [vmem:[%s330 + $0xb0] sm:$0xff]
      %v1678 = vld [vmem:[%s330 + $0xc0] sm:$0xff]
      %v1679 = vld [vmem:[%s330 + $0xc8] sm:$0xff]
      %v1680 = vld [vmem:[%s330 + $0xd8] sm:$0xff]
      %v1681 = vld [vmem:[%s330 + $0xe0] sm:$0xff]
      %v1682 = vld [vmem:[%s330 + $0xf0] sm:$0xff]
      %v1683 = vld [vmem:[%s330 + $0xf8] sm:$0xff]
      %v1684 = vld [vmem:[%s330 + $0x108] sm:$0xff]
      %v1685 = vld [vmem:[%s330 + $0x110] sm:$0xff]
      %v1686 = vld [vmem:[%s330 + $0x120] sm:$0xff]
      %v1687 = vld [vmem:[%s330 + $0x128] sm:$0xff]
      %v1688 = vld [vmem:[%s330 + $0x138] sm:$0xff]
      %v1689 = vld [vmem:[%s330 + $0x140] sm:$0xff]
      %v1690 = vld [vmem:[%s330 + $0x150] sm:$0xff]
      %v1691 = vld [vmem:[%s330 + $0x158] sm:$0xff]
      %v1692 = vld [vmem:[%s330 + $0x168] sm:$0xff]
      %v1693 = vld [vmem:[%s330 + $0x170] sm:$0xff]
      %s1694 = scalar_lea.vmem %s1, 12
      %v1695 = vld [vmem:[%s1694] sm:$0xf]
      %v1697 = vsel %vm242, %v1662, 0
      %v1700 = vsel %vm242, %v1663, 0
      %v1703 = vsel %vm242, %v1664, 0
      %v1706 = vsel %vm242, %v1665, 0
      %v1709 = vsel %vm242, %v1666, 0
      %v1712 = vsel %vm242, %v1667, 0
      %v1715 = vsel %vm242, %v1668, 0
      %v1718 = vsel %vm242, %v1669, 0
      %v1721 = vsel %vm242, %v1670, 0
      %v1724 = vsel %vm242, %v1671, 0
      %v1727 = vsel %vm242, %v1672, 0
      %v1730 = vsel %vm242, %v1673, 0
      %v1733 = vsel %vm242, %v1674, 0
      %v1736 = vsel %vm242, %v1675, 0
      %v1739 = vsel %vm242, %v1676, 0
      %v1742 = vsel %vm242, %v1677, 0
      %v1745 = vsel %vm242, %v1678, 0
      %v1748 = vsel %vm242, %v1679, 0
      %v1751 = vsel %vm242, %v1680, 0
      %v1754 = vsel %vm242, %v1681, 0
      %v1757 = vsel %vm242, %v1682, 0
      %v1760 = vsel %vm242, %v1683, 0
      %v1763 = vsel %vm242, %v1684, 0
      %v1766 = vsel %vm242, %v1685, 0
      %v1769 = vsel %vm242, %v1686, 0
      %v1772 = vsel %vm242, %v1687, 0
      %v1775 = vsel %vm242, %v1688, 0
      %v1778 = vsel %vm242, %v1689, 0
      %v1781 = vsel %vm242, %v1690, 0
      %v1784 = vsel %vm242, %v1691, 0
      %v1787 = vsel %vm242, %v1692, 0
      %v1790 = vsel %vm242, %v1693, 0
      %v1793 = vsel %vm492, %v1695, 0
      %1795 = vmatprep.subr.mxu0 0.0
      %1796 = vmatpush1.msra.mxu0 %v1793
      %1797 = vmatprep.subr.mxu0 0.0
      %1798 = vmatpush1.msra.mxu0 0.0
      %1799 = vmatprep.subr.mxu0 0.0
      %1800 = vmatpush1.msra.mxu0 0.0
      %1801 = vmatprep.subr.mxu0 0.0
      %1802 = vmatpush1.msra.mxu0 0.0
      %1803 = vmatprep.subr.mxu0 0.0
      %1804 = vmatpush1.msra.mxu0 0.0
      %1805 = vmatprep.subr.mxu0 0.0
      %1806 = vmatpush1.msra.mxu0 0.0
      %1807 = vmatprep.subr.mxu0 0.0
      %1808 = vmatpush1.msra.mxu0 0.0
      %1809 = vmatprep.subr.mxu0 0.0
      %1810 = vmatpush1.msra.mxu0 0.0
      %1811 = vmatprep.subr.mxu0 0.0
      %1812 = vmatpush1.msra.mxu0 0.0
      %1813 = vmatprep.subr.mxu0 0.0
      %1814 = vmatpush1.msra.mxu0 0.0
      %1815 = vmatprep.subr.mxu0 0.0
      %1816 = vmatpush1.msra.mxu0 0.0
      %1817 = vmatprep.subr.mxu0 0.0
      %1818 = vmatpush1.msra.mxu0 0.0
      %1819 = vmatprep.subr.mxu0 0.0
      %1820 = vmatpush1.msra.mxu0 0.0
      %1821 = vmatprep.subr.mxu0 0.0
      %1822 = vmatpush1.msra.mxu0 0.0
      %1823 = vmatprep.subr.mxu0 0.0
      %1824 = vmatpush1.msra.mxu0 0.0
      %1825 = vmatprep.subr.mxu0 0.0
      %1826 = vmatpush1.msra.mxu0 0.0
      %1827 = vmatprep.subr.mxu0 0.0
      %1828 = vmatpush1.msra.mxu0 0.0
      %1829 = vmatprep.subr.mxu0 0.0
      %1830 = vmatpush1.msra.mxu0 0.0
      %1831 = vmatprep.subr.mxu0 0.0
      %1832 = vmatpush1.msra.mxu0 0.0
      %1833 = vmatprep.subr.mxu0 0.0
      %1834 = vmatpush1.msra.mxu0 0.0
      %1835 = vmatprep.subr.mxu0 0.0
      %1836 = vmatpush1.msra.mxu0 0.0
      %1837 = vmatprep.subr.mxu0 0.0
      %1838 = vmatpush1.msra.mxu0 0.0
      %1839 = vmatprep.subr.mxu0 0.0
      %1840 = vmatpush1.msra.mxu0 0.0
      %1841 = vmatprep.subr.mxu0 0.0
      %1842 = vmatpush1.msra.mxu0 0.0
      %1843 = vmatprep.subr.mxu0 0.0
      %1844 = vmatpush1.msra.mxu0 0.0
      %1845 = vmatprep.subr.mxu0 0.0
      %1846 = vmatpush1.msra.mxu0 0.0
      %1847 = vmatprep.subr.mxu0 0.0
      %1848 = vmatpush1.msra.mxu0 0.0
      %1849 = vmatprep.subr.mxu0 0.0
      %1850 = vmatpush1.msra.mxu0 0.0
      %1851 = vmatprep.subr.mxu0 0.0
      %1852 = vmatpush1.msra.mxu0 0.0
      %1853 = vmatprep.subr.mxu0 0.0
      %1854 = vmatpush1.msra.mxu0 0.0
      %1855 = vmatprep.subr.mxu0 0.0
      %1856 = vmatpush1.msra.mxu0 0.0
      %1857 = vmatprep.subr.mxu0 0.0
      %1858 = vmatpush1.msra.mxu0 0.0
      %1859 = vmatprep.mubr.f32.mxu0 0.0
      %1860 = vmatmul.mubr.f32.gmra.mrb[0].mxu0 %v1697
      %v1861 = vpop.f32.mrb[0].mxu0
      %v1862 = vadd.f32 0.0, %v1861
      %v1863 = vpop.f32.mrb[0].mxu0
      %1864 = vmatprep.mubr.f32.mxu0 0.0
      %1865 = vmatmul.mubr.f32.gmra.mrb[0].mxu0 %v1700
      %v1866 = vpop.f32.mrb[0].mxu0
      %v1867 = vadd.f32 0.0, %v1866
      %v1868 = vpop.f32.mrb[0].mxu0
      %1869 = vmatprep.mubr.f32.mxu0 0.0
      %1870 = vmatmul.mubr.f32.gmra.mrb[0].mxu0 %v1703
      %v1871 = vpop.f32.mrb[0].mxu0
      %v1872 = vadd.f32 0.0, %v1871
      %v1873 = vpop.f32.mrb[0].mxu0
      %1874 = vmatprep.mubr.f32.mxu0 0.0
      %1875 = vmatmul.mubr.f32.gmra.mrb[0].mxu0 %v1706
      %v1876 = vpop.f32.mrb[0].mxu0
      %v1877 = vadd.f32 0.0, %v1876
      %v1878 = vpop.f32.mrb[0].mxu0
      %1879 = vmatprep.mubr.f32.mxu0 0.0
      %1880 = vmatmul.mubr.f32.gmra.mrb[0].mxu0 %v1709
      %v1881 = vpop.f32.mrb[0].mxu0
      %v1882 = vadd.f32 0.0, %v1881
      %v1883 = vpop.f32.mrb[0].mxu0
      %1884 = vmatprep.mubr.f32.mxu0 0.0
      %1885 = vmatmul.mubr.f32.gmra.mrb[0].mxu0 %v1712
      %v1886 = vpop.f32.mrb[0].mxu0
      %v1887 = vadd.f32 0.0, %v1886
      %v1888 = vpop.f32.mrb[0].mxu0
      %1889 = vmatprep.mubr.f32.mxu0 0.0
      %1890 = vmatmul.mubr.f32.gmra.mrb[0].mxu0 %v1715
      %v1891 = vpop.f32.mrb[0].mxu0
      %v1892 = vadd.f32 0.0, %v1891
      %v1893 = vpop.f32.mrb[0].mxu0
      %1894 = vmatprep.mubr.f32.mxu0 0.0
      %1895 = vmatmul.mubr.f32.gmra.mrb[0].mxu0 %v1718
      %v1896 = vpop.f32.mrb[0].mxu0
      %v1897 = vadd.f32 0.0, %v1896
      %v1898 = vpop.f32.mrb[0].mxu0
      %1899 = vmatprep.mubr.f32.mxu0 0.0
      %1900 = vmatmul.mubr.f32.gmra.mrb[0].mxu0 %v1721
      %v1901 = vpop.f32.mrb[0].mxu0
      %v1902 = vadd.f32 0.0, %v1901
      %v1903 = vpop.f32.mrb[0].mxu0
      %1904 = vmatprep.mubr.f32.mxu0 0.0
      %1905 = vmatmul.mubr.f32.gmra.mrb[0].mxu0 %v1724
      %v1906 = vpop.f32.mrb[0].mxu0
      %v1907 = vadd.f32 0.0, %v1906
      %v1908 = vpop.f32.mrb[0].mxu0
      %1909 = vmatprep.mubr.f32.mxu0 0.0
      %1910 = vmatmul.mubr.f32.gmra.mrb[0].mxu0 %v1727
      %v1911 = vpop.f32.mrb[0].mxu0
      %v1912 = vadd.f32 0.0, %v1911
      %v1913 = vpop.f32.mrb[0].mxu0
      %1914 = vmatprep.mubr.f32.mxu0 0.0
      %1915 = vmatmul.mubr.f32.gmra.mrb[0].mxu0 %v1730
      %v1916 = vpop.f32.mrb[0].mxu0
      %v1917 = vadd.f32 0.0, %v1916
      %v1918 = vpop.f32.mrb[0].mxu0
      %1919 = vmatprep.mubr.f32.mxu0 0.0
      %1920 = vmatmul.mubr.f32.gmra.mrb[0].mxu0 %v1733
      %v1921 = vpop.f32.mrb[0].mxu0
      %v1922 = vadd.f32 0.0, %v1921
      %v1923 = vpop.f32.mrb[0].mxu0
      %1924 = vmatprep.mubr.f32.mxu0 0.0
      %1925 = vmatmul.mubr.f32.gmra.mrb[0].mxu0 %v1736
      %v1926 = vpop.f32.mrb[0].mxu0
      %v1927 = vadd.f32 0.0, %v1926
      %v1928 = vpop.f32.mrb[0].mxu0
      %1929 = vmatprep.mubr.f32.mxu0 0.0
      %1930 = vmatmul.mubr.f32.gmra.mrb[0].mxu0 %v1739
      %v1931 = vpop.f32.mrb[0].mxu0
      %v1932 = vadd.f32 0.0, %v1931
      %v1933 = vpop.f32.mrb[0].mxu0
      %1934 = vmatprep.mubr.f32.mxu0 0.0
      %1935 = vmatmul.mubr.f32.gmra.mrb[0].mxu0 %v1742
      %v1936 = vpop.f32.mrb[0].mxu0
      %v1937 = vadd.f32 0.0, %v1936
      %v1938 = vpop.f32.mrb[0].mxu0
      %1939 = vmatprep.mubr.f32.mxu0 0.0
      %1940 = vmatmul.mubr.f32.gmra.mrb[0].mxu0 %v1745
      %v1941 = vpop.f32.mrb[0].mxu0
      %v1942 = vadd.f32 0.0, %v1941
      %v1943 = vpop.f32.mrb[0].mxu0
      %1944 = vmatprep.mubr.f32.mxu0 0.0
      %1945 = vmatmul.mubr.f32.gmra.mrb[0].mxu0 %v1748
      %v1946 = vpop.f32.mrb[0].mxu0
      %v1947 = vadd.f32 0.0, %v1946
      %v1948 = vpop.f32.mrb[0].mxu0
      %1949 = vmatprep.mubr.f32.mxu0 0.0
      %1950 = vmatmul.mubr.f32.gmra.mrb[0].mxu0 %v1751
      %v1951 = vpop.f32.mrb[0].mxu0
      %v1952 = vadd.f32 0.0, %v1951
      %v1953 = vpop.f32.mrb[0].mxu0
      %1954 = vmatprep.mubr.f32.mxu0 0.0
      %1955 = vmatmul.mubr.f32.gmra.mrb[0].mxu0 %v1754
      %v1956 = vpop.f32.mrb[0].mxu0
      %v1957 = vadd.f32 0.0, %v1956
      %v1958 = vpop.f32.mrb[0].mxu0
      %1959 = vmatprep.mubr.f32.mxu0 0.0
      %1960 = vmatmul.mubr.f32.gmra.mrb[0].mxu0 %v1757
      %v1961 = vpop.f32.mrb[0].mxu0
      %v1962 = vadd.f32 0.0, %v1961
      %v1963 = vpop.f32.mrb[0].mxu0
      %1964 = vmatprep.mubr.f32.mxu0 0.0
      %1965 = vmatmul.mubr.f32.gmra.mrb[0].mxu0 %v1760
      %v1966 = vpop.f32.mrb[0].mxu0
      %v1967 = vadd.f32 0.0, %v1966
      %v1968 = vpop.f32.mrb[0].mxu0
      %1969 = vmatprep.mubr.f32.mxu0 0.0
      %1970 = vmatmul.mubr.f32.gmra.mrb[0].mxu0 %v1763
      %v1971 = vpop.f32.mrb[0].mxu0
      %v1972 = vadd.f32 0.0, %v1971
      %v1973 = vpop.f32.mrb[0].mxu0
      %1974 = vmatprep.mubr.f32.mxu0 0.0
      %1975 = vmatmul.mubr.f32.gmra.mrb[0].mxu0 %v1766
      %v1976 = vpop.f32.mrb[0].mxu0
      %v1977 = vadd.f32 0.0, %v1976
      %v1978 = vpop.f32.mrb[0].mxu0
      %1979 = vmatprep.mubr.f32.mxu0 0.0
      %1980 = vmatmul.mubr.f32.gmra.mrb[0].mxu0 %v1769
      %v1981 = vpop.f32.mrb[0].mxu0
      %v1982 = vadd.f32 0.0, %v1981
      %v1983 = vpop.f32.mrb[0].mxu0
      %1984 = vmatprep.mubr.f32.mxu0 0.0
      %1985 = vmatmul.mubr.f32.gmra.mrb[0].mxu0 %v1772
      %v1986 = vpop.f32.mrb[0].mxu0
      %v1987 = vadd.f32 0.0, %v1986
      %v1988 = vpop.f32.mrb[0].mxu0
      %1989 = vmatprep.mubr.f32.mxu0 0.0
      %1990 = vmatmul.mubr.f32.gmra.mrb[0].mxu0 %v1775
      %v1991 = vpop.f32.mrb[0].mxu0
      %v1992 = vadd.f32 0.0, %v1991
      %v1993 = vpop.f32.mrb[0].mxu0
      %1994 = vmatprep.mubr.f32.mxu0 0.0
      %1995 = vmatmul.mubr.f32.gmra.mrb[0].mxu0 %v1778
      %v1996 = vpop.f32.mrb[0].mxu0
      %v1997 = vadd.f32 0.0, %v1996
      %v1998 = vpop.f32.mrb[0].mxu0
      %1999 = vmatprep.mubr.f32.mxu0 0.0
      %2000 = vmatmul.mubr.f32.gmra.mrb[0].mxu0 %v1781
      %v2001 = vpop.f32.mrb[0].mxu0
      %v2002 = vadd.f32 0.0, %v2001
      %v2003 = vpop.f32.mrb[0].mxu0
      %2004 = vmatprep.mubr.f32.mxu0 0.0
      %2005 = vmatmul.mubr.f32.gmra.mrb[0].mxu0 %v1784
      %v2006 = vpop.f32.mrb[0].mxu0
      %v2007 = vadd.f32 0.0, %v2006
      %v2008 = vpop.f32.mrb[0].mxu0
      %2009 = vmatprep.mubr.f32.mxu0 0.0
      %2010 = vmatmul.mubr.f32.gmra.mrb[0].mxu0 %v1787
      %v2011 = vpop.f32.mrb[0].mxu0
      %v2012 = vadd.f32 0.0, %v2011
      %v2013 = vpop.f32.mrb[0].mxu0
      %2014 = vmatprep.mubr.f32.mxu0 0.0
      %2015 = vmatmul.mubr.f32.gmra.mrb[0].mxu0 %v1790
      %v2016 = vpop.f32.mrb[0].mxu0
      %v2017 = vadd.f32 0.0, %v2016
      %v2018 = vpop.f32.mrb[0].mxu0
      %2019 = vdwg.mxu0
      %v2020 = vld [vmem:[#allocation3] sm:$0xff]
      %v2021 = vld [vmem:[#allocation3 + $0x8] sm:$0xff]
      %v2022 = vld [vmem:[#allocation3 + $0x10] sm:$0xff]
      %v2023 = vld [vmem:[#allocation3 + $0x18] sm:$0xff]
      %v2024 = vld [vmem:[#allocation3 + $0x20] sm:$0xff]
      %v2025 = vld [vmem:[#allocation3 + $0x28] sm:$0xff]
      %v2026 = vld [vmem:[#allocation3 + $0x30] sm:$0xff]
      %v2027 = vld [vmem:[#allocation3 + $0x38] sm:$0xff]
      %v2028 = vld [vmem:[#allocation3 + $0x40] sm:$0xff]
      %v2029 = vld [vmem:[#allocation3 + $0x48] sm:$0xff]
      %v2030 = vld [vmem:[#allocation3 + $0x50] sm:$0xff]
      %v2031 = vld [vmem:[#allocation3 + $0x58] sm:$0xff]
      %v2032 = vld [vmem:[#allocation3 + $0x60] sm:$0xff]
      %v2033 = vld [vmem:[#allocation3 + $0x68] sm:$0xff]
      %v2034 = vld [vmem:[#allocation3 + $0x70] sm:$0xff]
      %v2035 = vld [vmem:[#allocation3 + $0x78] sm:$0xff]
      %v2036 = vld [vmem:[#allocation3 + $0x80] sm:$0xff]
      %v2037 = vld [vmem:[#allocation3 + $0x88] sm:$0xff]
      %v2038 = vld [vmem:[#allocation3 + $0x90] sm:$0xff]
      %v2039 = vld [vmem:[#allocation3 + $0x98] sm:$0xff]
      %v2040 = vld [vmem:[#allocation3 + $0xa0] sm:$0xff]
      %v2041 = vld [vmem:[#allocation3 + $0xa8] sm:$0xff]
      %v2042 = vld [vmem:[#allocation3 + $0xb0] sm:$0xff]
      %v2043 = vld [vmem:[#allocation3 + $0xb8] sm:$0xff]
      %v2044 = vld [vmem:[#allocation3 + $0xc0] sm:$0xff]
      %v2045 = vld [vmem:[#allocation3 + $0xc8] sm:$0xff]
      %v2046 = vld [vmem:[#allocation3 + $0xd0] sm:$0xff]
      %v2047 = vld [vmem:[#allocation3 + $0xd8] sm:$0xff]
      %v2048 = vld [vmem:[#allocation3 + $0xe0] sm:$0xff]
      %v2049 = vld [vmem:[#allocation3 + $0xe8] sm:$0xff]
      %v2050 = vld [vmem:[#allocation3 + $0xf0] sm:$0xff]
      %v2051 = vld [vmem:[#allocation3 + $0xf8] sm:$0xff]
      %v2052 = vadd.f32 %v2020, %v1862
      %v2053 = vadd.f32 %v2021, %v1867
      %v2054 = vadd.f32 %v2022, %v1872
      %v2055 = vadd.f32 %v2023, %v1877
      %v2056 = vadd.f32 %v2024, %v1882
      %v2057 = vadd.f32 %v2025, %v1887
      %v2058 = vadd.f32 %v2026, %v1892
      %v2059 = vadd.f32 %v2027, %v1897
      %v2060 = vadd.f32 %v2028, %v1902
      %v2061 = vadd.f32 %v2029, %v1907
      %v2062 = vadd.f32 %v2030, %v1912
      %v2063 = vadd.f32 %v2031, %v1917
      %v2064 = vadd.f32 %v2032, %v1922
      %v2065 = vadd.f32 %v2033, %v1927
      %v2066 = vadd.f32 %v2034, %v1932
      %v2067 = vadd.f32 %v2035, %v1937
      %v2068 = vadd.f32 %v2036, %v1942
      %v2069 = vadd.f32 %v2037, %v1947
      %v2070 = vadd.f32 %v2038, %v1952
      %v2071 = vadd.f32 %v2039, %v1957
      %v2072 = vadd.f32 %v2040, %v1962
      %v2073 = vadd.f32 %v2041, %v1967
      %v2074 = vadd.f32 %v2042, %v1972
      %v2075 = vadd.f32 %v2043, %v1977
      %v2076 = vadd.f32 %v2044, %v1982
      %v2077 = vadd.f32 %v2045, %v1987
      %v2078 = vadd.f32 %v2046, %v1992
      %v2079 = vadd.f32 %v2047, %v1997
      %v2080 = vadd.f32 %v2048, %v2002
      %v2081 = vadd.f32 %v2049, %v2007
      %v2082 = vadd.f32 %v2050, %v2012
      %v2083 = vadd.f32 %v2051, %v2017
      %2084 = vst.msk [vmem:[#allocation3] sm:$0xff] %vm721, %v2052
      %2085 = vst.msk [vmem:[#allocation3 + $0x8] sm:$0xff] %vm721, %v2053
      %2086 = vst.msk [vmem:[#allocation3 + $0x10] sm:$0xff] %vm721, %v2054
      %2087 = vst.msk [vmem:[#allocation3 + $0x18] sm:$0xff] %vm721, %v2055
      %2088 = vst.msk [vmem:[#allocation3 + $0x20] sm:$0xff] %vm721, %v2056
      %2089 = vst.msk [vmem:[#allocation3 + $0x28] sm:$0xff] %vm721, %v2057
      %2090 = vst.msk [vmem:[#allocation3 + $0x30] sm:$0xff] %vm721, %v2058
      %2091 = vst.msk [vmem:[#allocation3 + $0x38] sm:$0xff] %vm721, %v2059
      %2092 = vst.msk [vmem:[#allocation3 + $0x40] sm:$0xff] %vm721, %v2060
      %2093 = vst.msk [vmem:[#allocation3 + $0x48] sm:$0xff] %vm721, %v2061
      %2094 = vst.msk [vmem:[#allocation3 + $0x50] sm:$0xff] %vm721, %v2062
      %2095 = vst.msk [vmem:[#allocation3 + $0x58] sm:$0xff] %vm721, %v2063
      %2096 = vst.msk [vmem:[#allocation3 + $0x60] sm:$0xff] %vm721, %v2064
      %2097 = vst.msk [vmem:[#allocation3 + $0x68] sm:$0xff] %vm721, %v2065
      %2098 = vst.msk [vmem:[#allocation3 + $0x70] sm:$0xff] %vm721, %v2066
      %2099 = vst.msk [vmem:[#allocation3 + $0x78] sm:$0xff] %vm721, %v2067
      %2100 = vst.msk [vmem:[#allocation3 + $0x80] sm:$0xff] %vm721, %v2068
      %2101 = vst.msk [vmem:[#allocation3 + $0x88] sm:$0xff] %vm721, %v2069
      %2102 = vst.msk [vmem:[#allocation3 + $0x90] sm:$0xff] %vm721, %v2070
      %2103 = vst.msk [vmem:[#allocation3 + $0x98] sm:$0xff] %vm721, %v2071
      %2104 = vst.msk [vmem:[#allocation3 + $0xa0] sm:$0xff] %vm721, %v2072
      %2105 = vst.msk [vmem:[#allocation3 + $0xa8] sm:$0xff] %vm721, %v2073
      %2106 = vst.msk [vmem:[#allocation3 + $0xb0] sm:$0xff] %vm721, %v2074
      %2107 = vst.msk [vmem:[#allocation3 + $0xb8] sm:$0xff] %vm721, %v2075
      %2108 = vst.msk [vmem:[#allocation3 + $0xc0] sm:$0xff] %vm721, %v2076
      %2109 = vst.msk [vmem:[#allocation3 + $0xc8] sm:$0xff] %vm721, %v2077
      %2110 = vst.msk [vmem:[#allocation3 + $0xd0] sm:$0xff] %vm721, %v2078
      %2111 = vst.msk [vmem:[#allocation3 + $0xd8] sm:$0xff] %vm721, %v2079
      %2112 = vst.msk [vmem:[#allocation3 + $0xe0] sm:$0xff] %vm721, %v2080
      %2113 = vst.msk [vmem:[#allocation3 + $0xe8] sm:$0xff] %vm721, %v2081
      %2114 = vst.msk [vmem:[#allocation3 + $0xf0] sm:$0xff] %vm721, %v2082
      %2115 = vst.msk [vmem:[#allocation3 + $0xf8] sm:$0xff] %vm721, %v2083
      %v2116 = vld [vmem:[%s330 + $0x1] sm:$0xff]
      %v2117 = vld [vmem:[%s330 + $0x9] sm:$0xff]
      %v2118 = vld [vmem:[%s330 + $0x19] sm:$0xff]
      %v2119 = vld [vmem:[%s330 + $0x21] sm:$0xff]
      %v2120 = vld [vmem:[%s330 + $0x31] sm:$0xff]
      %v2121 = vld [vmem:[%s330 + $0x39] sm:$0xff]
      %v2122 = vld [vmem:[%s330 + $0x49] sm:$0xff]
      %v2123 = vld [vmem:[%s330 + $0x51] sm:$0xff]
      %v2124 = vld [vmem:[%s330 + $0x61] sm:$0xff]
      %v2125 = vld [vmem:[%s330 + $0x69] sm:$0xff]
      %v2126 = vld [vmem:[%s330 + $0x79] sm:$0xff]
      %v2127 = vld [vmem:[%s330 + $0x81] sm:$0xff]
      %v2128 = vld [vmem:[%s330 + $0x91] sm:$0xff]
      %v2129 = vld [vmem:[%s330 + $0x99] sm:$0xff]
      %v2130 = vld [vmem:[%s330 + $0xa9] sm:$0xff]
      %v2131 = vld [vmem:[%s330 + $0xb1] sm:$0xff]
      %v2132 = vld [vmem:[%s330 + $0xc1] sm:$0xff]
      %v2133 = vld [vmem:[%s330 + $0xc9] sm:$0xff]
      %v2134 = vld [vmem:[%s330 + $0xd9] sm:$0xff]
      %v2135 = vld [vmem:[%s330 + $0xe1] sm:$0xff]
      %v2136 = vld [vmem:[%s330 + $0xf1] sm:$0xff]
      %v2137 = vld [vmem:[%s330 + $0xf9] sm:$0xff]
      %v2138 = vld [vmem:[%s330 + $0x109] sm:$0xff]
      %v2139 = vld [vmem:[%s330 + $0x111] sm:$0xff]
      %v2140 = vld [vmem:[%s330 + $0x121] sm:$0xff]
      %v2141 = vld [vmem:[%s330 + $0x129] sm:$0xff]
      %v2142 = vld [vmem:[%s330 + $0x139] sm:$0xff]
      %v2143 = vld [vmem:[%s330 + $0x141] sm:$0xff]
      %v2144 = vld [vmem:[%s330 + $0x151] sm:$0xff]
      %v2145 = vld [vmem:[%s330 + $0x159] sm:$0xff]
      %v2146 = vld [vmem:[%s330 + $0x169] sm:$0xff]
      %v2147 = vld [vmem:[%s330 + $0x171] sm:$0xff]
      %s2148 = scalar_lea.vmem %s1, 16
      %v2149 = vld [vmem:[%s2148] sm:$0xf]
      %v2151 = vsel %vm242, %v2116, 0
      %v2154 = vsel %vm242, %v2117, 0
      %v2157 = vsel %vm242, %v2118, 0
      %v2160 = vsel %vm242, %v2119, 0
      %v2163 = vsel %vm242, %v2120, 0
      %v2166 = vsel %vm242, %v2121, 0
      %v2169 = vsel %vm242, %v2122, 0
      %v2172 = vsel %vm242, %v2123, 0
      %v2175 = vsel %vm242, %v2124, 0
      %v2178 = vsel %vm242, %v2125, 0
      %v2181 = vsel %vm242, %v2126, 0
      %v2184 = vsel %vm242, %v2127, 0
      %v2187 = vsel %vm242, %v2128, 0
      %v2190 = vsel %vm242, %v2129, 0
      %v2193 = vsel %vm242, %v2130, 0
      %v2196 = vsel %vm242, %v2131, 0
      %v2199 = vsel %vm242, %v2132, 0
      %v2202 = vsel %vm242, %v2133, 0
      %v2205 = vsel %vm242, %v2134, 0
      %v2208 = vsel %vm242, %v2135, 0
      %v2211 = vsel %vm242, %v2136, 0
      %v2214 = vsel %vm242, %v2137, 0
      %v2217 = vsel %vm242, %v2138, 0
      %v2220 = vsel %vm242, %v2139, 0
      %v2223 = vsel %vm242, %v2140, 0
      %v2226 = vsel %vm242, %v2141, 0
      %v2229 = vsel %vm242, %v2142, 0
      %v2232 = vsel %vm242, %v2143, 0
      %v2235 = vsel %vm242, %v2144, 0
      %v2238 = vsel %vm242, %v2145, 0
      %v2241 = vsel %vm242, %v2146, 0
      %v2244 = vsel %vm242, %v2147, 0
      %v2247 = vsel %vm492, %v2149, 0
      %2249 = vmatprep.subr.mxu0 0.0
      %2250 = vmatpush1.msra.mxu0 %v2247
      %2251 = vmatprep.subr.mxu0 0.0
      %2252 = vmatpush1.msra.mxu0 0.0
      %2253 = vmatprep.subr.mxu0 0.0
      %2254 = vmatpush1.msra.mxu0 0.0
      %2255 = vmatprep.subr.mxu0 0.0
      %2256 = vmatpush1.msra.mxu0 0.0
      %2257 = vmatprep.subr.mxu0 0.0
      %2258 = vmatpush1.msra.mxu0 0.0
      %2259 = vmatprep.subr.mxu0 0.0
      %2260 = vmatpush1.msra.mxu0 0.0
      %2261 = vmatprep.subr.mxu0 0.0
      %2262 = vmatpush1.msra.mxu0 0.0
      %2263 = vmatprep.subr.mxu0 0.0
      %2264 = vmatpush1.msra.mxu0 0.0
      %2265 = vmatprep.subr.mxu0 0.0
      %2266 = vmatpush1.msra.mxu0 0.0
      %2267 = vmatprep.subr.mxu0 0.0
      %2268 = vmatpush1.msra.mxu0 0.0
      %2269 = vmatprep.subr.mxu0 0.0
      %2270 = vmatpush1.msra.mxu0 0.0
      %2271 = vmatprep.subr.mxu0 0.0
      %2272 = vmatpush1.msra.mxu0 0.0
      %2273 = vmatprep.subr.mxu0 0.0
      %2274 = vmatpush1.msra.mxu0 0.0
      %2275 = vmatprep.subr.mxu0 0.0
      %2276 = vmatpush1.msra.mxu0 0.0
      %2277 = vmatprep.subr.mxu0 0.0
      %2278 = vmatpush1.msra.mxu0 0.0
      %2279 = vmatprep.subr.mxu0 0.0
      %2280 = vmatpush1.msra.mxu0 0.0
      %2281 = vmatprep.subr.mxu0 0.0
      %2282 = vmatpush1.msra.mxu0 0.0
      %2283 = vmatprep.subr.mxu0 0.0
      %2284 = vmatpush1.msra.mxu0 0.0
      %2285 = vmatprep.subr.mxu0 0.0
      %2286 = vmatpush1.msra.mxu0 0.0
      %2287 = vmatprep.subr.mxu0 0.0
      %2288 = vmatpush1.msra.mxu0 0.0
      %2289 = vmatprep.subr.mxu0 0.0
      %2290 = vmatpush1.msra.mxu0 0.0
      %2291 = vmatprep.subr.mxu0 0.0
      %2292 = vmatpush1.msra.mxu0 0.0
      %2293 = vmatprep.subr.mxu0 0.0
      %2294 = vmatpush1.msra.mxu0 0.0
      %2295 = vmatprep.subr.mxu0 0.0
      %2296 = vmatpush1.msra.mxu0 0.0
      %2297 = vmatprep.subr.mxu0 0.0
      %2298 = vmatpush1.msra.mxu0 0.0
      %2299 = vmatprep.subr.mxu0 0.0
      %2300 = vmatpush1.msra.mxu0 0.0
      %2301 = vmatprep.subr.mxu0 0.0
      %2302 = vmatpush1.msra.mxu0 0.0
      %2303 = vmatprep.subr.mxu0 0.0
      %2304 = vmatpush1.msra.mxu0 0.0
      %2305 = vmatprep.subr.mxu0 0.0
      %2306 = vmatpush1.msra.mxu0 0.0
      %2307 = vmatprep.subr.mxu0 0.0
      %2308 = vmatpush1.msra.mxu0 0.0
      %2309 = vmatprep.subr.mxu0 0.0
      %2310 = vmatpush1.msra.mxu0 0.0
      %2311 = vmatprep.subr.mxu0 0.0
      %2312 = vmatpush1.msra.mxu0 0.0
      %2313 = vmatprep.mubr.f32.mxu0 0.0
      %2314 = vmatmul.mubr.f32.gmra.mrb[0].mxu0 %v2151
      %v2315 = vpop.f32.mrb[0].mxu0
      %v2316 = vadd.f32 0.0, %v2315
      %v2317 = vpop.f32.mrb[0].mxu0
      %2318 = vmatprep.mubr.f32.mxu0 0.0
      %2319 = vmatmul.mubr.f32.gmra.mrb[0].mxu0 %v2154
      %v2320 = vpop.f32.mrb[0].mxu0
      %v2321 = vadd.f32 0.0, %v2320
      %v2322 = vpop.f32.mrb[0].mxu0
      %2323 = vmatprep.mubr.f32.mxu0 0.0
      %2324 = vmatmul.mubr.f32.gmra.mrb[0].mxu0 %v2157
      %v2325 = vpop.f32.mrb[0].mxu0
      %v2326 = vadd.f32 0.0, %v2325
      %v2327 = vpop.f32.mrb[0].mxu0
      %2328 = vmatprep.mubr.f32.mxu0 0.0
      %2329 = vmatmul.mubr.f32.gmra.mrb[0].mxu0 %v2160
      %v2330 = vpop.f32.mrb[0].mxu0
      %v2331 = vadd.f32 0.0, %v2330
      %v2332 = vpop.f32.mrb[0].mxu0
      %2333 = vmatprep.mubr.f32.mxu0 0.0
      %2334 = vmatmul.mubr.f32.gmra.mrb[0].mxu0 %v2163
      %v2335 = vpop.f32.mrb[0].mxu0
      %v2336 = vadd.f32 0.0, %v2335
      %v2337 = vpop.f32.mrb[0].mxu0
      %2338 = vmatprep.mubr.f32.mxu0 0.0
      %2339 = vmatmul.mubr.f32.gmra.mrb[0].mxu0 %v2166
      %v2340 = vpop.f32.mrb[0].mxu0
      %v2341 = vadd.f32 0.0, %v2340
      %v2342 = vpop.f32.mrb[0].mxu0
      %2343 = vmatprep.mubr.f32.mxu0 0.0
      %2344 = vmatmul.mubr.f32.gmra.mrb[0].mxu0 %v2169
      %v2345 = vpop.f32.mrb[0].mxu0
      %v2346 = vadd.f32 0.0, %v2345
      %v2347 = vpop.f32.mrb[0].mxu0
      %2348 = vmatprep.mubr.f32.mxu0 0.0
      %2349 = vmatmul.mubr.f32.gmra.mrb[0].mxu0 %v2172
      %v2350 = vpop.f32.mrb[0].mxu0
      %v2351 = vadd.f32 0.0, %v2350
      %v2352 = vpop.f32.mrb[0].mxu0
      %2353 = vmatprep.mubr.f32.mxu0 0.0
      %2354 = vmatmul.mubr.f32.gmra.mrb[0].mxu0 %v2175
      %v2355 = vpop.f32.mrb[0].mxu0
      %v2356 = vadd.f32 0.0, %v2355
      %v2357 = vpop.f32.mrb[0].mxu0
      %2358 = vmatprep.mubr.f32.mxu0 0.0
      %2359 = vmatmul.mubr.f32.gmra.mrb[0].mxu0 %v2178
      %v2360 = vpop.f32.mrb[0].mxu0
      %v2361 = vadd.f32 0.0, %v2360
      %v2362 = vpop.f32.mrb[0].mxu0
      %2363 = vmatprep.mubr.f32.mxu0 0.0
      %2364 = vmatmul.mubr.f32.gmra.mrb[0].mxu0 %v2181
      %v2365 = vpop.f32.mrb[0].mxu0
      %v2366 = vadd.f32 0.0, %v2365
      %v2367 = vpop.f32.mrb[0].mxu0
      %2368 = vmatprep.mubr.f32.mxu0 0.0
      %2369 = vmatmul.mubr.f32.gmra.mrb[0].mxu0 %v2184
      %v2370 = vpop.f32.mrb[0].mxu0
      %v2371 = vadd.f32 0.0, %v2370
      %v2372 = vpop.f32.mrb[0].mxu0
      %2373 = vmatprep.mubr.f32.mxu0 0.0
      %2374 = vmatmul.mubr.f32.gmra.mrb[0].mxu0 %v2187
      %v2375 = vpop.f32.mrb[0].mxu0
      %v2376 = vadd.f32 0.0, %v2375
      %v2377 = vpop.f32.mrb[0].mxu0
      %2378 = vmatprep.mubr.f32.mxu0 0.0
      %2379 = vmatmul.mubr.f32.gmra.mrb[0].mxu0 %v2190
      %v2380 = vpop.f32.mrb[0].mxu0
      %v2381 = vadd.f32 0.0, %v2380
      %v2382 = vpop.f32.mrb[0].mxu0
      %2383 = vmatprep.mubr.f32.mxu0 0.0
      %2384 = vmatmul.mubr.f32.gmra.mrb[0].mxu0 %v2193
      %v2385 = vpop.f32.mrb[0].mxu0
      %v2386 = vadd.f32 0.0, %v2385
      %v2387 = vpop.f32.mrb[0].mxu0
      %2388 = vmatprep.mubr.f32.mxu0 0.0
      %2389 = vmatmul.mubr.f32.gmra.mrb[0].mxu0 %v2196
      %v2390 = vpop.f32.mrb[0].mxu0
      %v2391 = vadd.f32 0.0, %v2390
      %v2392 = vpop.f32.mrb[0].mxu0
      %2393 = vmatprep.mubr.f32.mxu0 0.0
      %2394 = vmatmul.mubr.f32.gmra.mrb[0].mxu0 %v2199
      %v2395 = vpop.f32.mrb[0].mxu0
      %v2396 = vadd.f32 0.0, %v2395
      %v2397 = vpop.f32.mrb[0].mxu0
      %2398 = vmatprep.mubr.f32.mxu0 0.0
      %2399 = vmatmul.mubr.f32.gmra.mrb[0].mxu0 %v2202
      %v2400 = vpop.f32.mrb[0].mxu0
      %v2401 = vadd.f32 0.0, %v2400
      %v2402 = vpop.f32.mrb[0].mxu0
      %2403 = vmatprep.mubr.f32.mxu0 0.0
      %2404 = vmatmul.mubr.f32.gmra.mrb[0].mxu0 %v2205
      %v2405 = vpop.f32.mrb[0].mxu0
      %v2406 = vadd.f32 0.0, %v2405
      %v2407 = vpop.f32.mrb[0].mxu0
      %2408 = vmatprep.mubr.f32.mxu0 0.0
      %2409 = vmatmul.mubr.f32.gmra.mrb[0].mxu0 %v2208
      %v2410 = vpop.f32.mrb[0].mxu0
      %v2411 = vadd.f32 0.0, %v2410
      %v2412 = vpop.f32.mrb[0].mxu0
      %2413 = vmatprep.mubr.f32.mxu0 0.0
      %2414 = vmatmul.mubr.f32.gmra.mrb[0].mxu0 %v2211
      %v2415 = vpop.f32.mrb[0].mxu0
      %v2416 = vadd.f32 0.0, %v2415
      %v2417 = vpop.f32.mrb[0].mxu0
      %2418 = vmatprep.mubr.f32.mxu0 0.0
      %2419 = vmatmul.mubr.f32.gmra.mrb[0].mxu0 %v2214
      %v2420 = vpop.f32.mrb[0].mxu0
      %v2421 = vadd.f32 0.0, %v2420
      %v2422 = vpop.f32.mrb[0].mxu0
      %2423 = vmatprep.mubr.f32.mxu0 0.0
      %2424 = vmatmul.mubr.f32.gmra.mrb[0].mxu0 %v2217
      %v2425 = vpop.f32.mrb[0].mxu0
      %v2426 = vadd.f32 0.0, %v2425
      %v2427 = vpop.f32.mrb[0].mxu0
      %2428 = vmatprep.mubr.f32.mxu0 0.0
      %2429 = vmatmul.mubr.f32.gmra.mrb[0].mxu0 %v2220
      %v2430 = vpop.f32.mrb[0].mxu0
      %v2431 = vadd.f32 0.0, %v2430
      %v2432 = vpop.f32.mrb[0].mxu0
      %2433 = vmatprep.mubr.f32.mxu0 0.0
      %2434 = vmatmul.mubr.f32.gmra.mrb[0].mxu0 %v2223
      %v2435 = vpop.f32.mrb[0].mxu0
      %v2436 = vadd.f32 0.0, %v2435
      %v2437 = vpop.f32.mrb[0].mxu0
      %2438 = vmatprep.mubr.f32.mxu0 0.0
      %2439 = vmatmul.mubr.f32.gmra.mrb[0].mxu0 %v2226
      %v2440 = vpop.f32.mrb[0].mxu0
      %v2441 = vadd.f32 0.0, %v2440
      %v2442 = vpop.f32.mrb[0].mxu0
      %2443 = vmatprep.mubr.f32.mxu0 0.0
      %2444 = vmatmul.mubr.f32.gmra.mrb[0].mxu0 %v2229
      %v2445 = vpop.f32.mrb[0].mxu0
      %v2446 = vadd.f32 0.0, %v2445
      %v2447 = vpop.f32.mrb[0].mxu0
      %2448 = vmatprep.mubr.f32.mxu0 0.0
      %2449 = vmatmul.mubr.f32.gmra.mrb[0].mxu0 %v2232
      %v2450 = vpop.f32.mrb[0].mxu0
      %v2451 = vadd.f32 0.0, %v2450
      %v2452 = vpop.f32.mrb[0].mxu0
      %2453 = vmatprep.mubr.f32.mxu0 0.0
      %2454 = vmatmul.mubr.f32.gmra.mrb[0].mxu0 %v2235
      %v2455 = vpop.f32.mrb[0].mxu0
      %v2456 = vadd.f32 0.0, %v2455
      %v2457 = vpop.f32.mrb[0].mxu0
      %2458 = vmatprep.mubr.f32.mxu0 0.0
      %2459 = vmatmul.mubr.f32.gmra.mrb[0].mxu0 %v2238
      %v2460 = vpop.f32.mrb[0].mxu0
      %v2461 = vadd.f32 0.0, %v2460
      %v2462 = vpop.f32.mrb[0].mxu0
      %2463 = vmatprep.mubr.f32.mxu0 0.0
      %2464 = vmatmul.mubr.f32.gmra.mrb[0].mxu0 %v2241
      %v2465 = vpop.f32.mrb[0].mxu0
      %v2466 = vadd.f32 0.0, %v2465
      %v2467 = vpop.f32.mrb[0].mxu0
      %2468 = vmatprep.mubr.f32.mxu0 0.0
      %2469 = vmatmul.mubr.f32.gmra.mrb[0].mxu0 %v2244
      %v2470 = vpop.f32.mrb[0].mxu0
      %v2471 = vadd.f32 0.0, %v2470
      %v2472 = vpop.f32.mrb[0].mxu0
      %2473 = vdwg.mxu0
      %v2474 = vld [vmem:[#allocation3] sm:$0xff]
      %v2475 = vld [vmem:[#allocation3 + $0x8] sm:$0xff]
      %v2476 = vld [vmem:[#allocation3 + $0x10] sm:$0xff]
      %v2477 = vld [vmem:[#allocation3 + $0x18] sm:$0xff]
      %v2478 = vld [vmem:[#allocation3 + $0x20] sm:$0xff]
      %v2479 = vld [vmem:[#allocation3 + $0x28] sm:$0xff]
      %v2480 = vld [vmem:[#allocation3 + $0x30] sm:$0xff]
      %v2481 = vld [vmem:[#allocation3 + $0x38] sm:$0xff]
      %v2482 = vld [vmem:[#allocation3 + $0x40] sm:$0xff]
      %v2483 = vld [vmem:[#allocation3 + $0x48] sm:$0xff]
      %v2484 = vld [vmem:[#allocation3 + $0x50] sm:$0xff]
      %v2485 = vld [vmem:[#allocation3 + $0x58] sm:$0xff]
      %v2486 = vld [vmem:[#allocation3 + $0x60] sm:$0xff]
      %v2487 = vld [vmem:[#allocation3 + $0x68] sm:$0xff]
      %v2488 = vld [vmem:[#allocation3 + $0x70] sm:$0xff]
      %v2489 = vld [vmem:[#allocation3 + $0x78] sm:$0xff]
      %v2490 = vld [vmem:[#allocation3 + $0x80] sm:$0xff]
      %v2491 = vld [vmem:[#allocation3 + $0x88] sm:$0xff]
      %v2492 = vld [vmem:[#allocation3 + $0x90] sm:$0xff]
      %v2493 = vld [vmem:[#allocation3 + $0x98] sm:$0xff]
      %v2494 = vld [vmem:[#allocation3 + $0xa0] sm:$0xff]
      %v2495 = vld [vmem:[#allocation3 + $0xa8] sm:$0xff]
      %v2496 = vld [vmem:[#allocation3 + $0xb0] sm:$0xff]
      %v2497 = vld [vmem:[#allocation3 + $0xb8] sm:$0xff]
      %v2498 = vld [vmem:[#allocation3 + $0xc0] sm:$0xff]
      %v2499 = vld [vmem:[#allocation3 + $0xc8] sm:$0xff]
      %v2500 = vld [vmem:[#allocation3 + $0xd0] sm:$0xff]
      %v2501 = vld [vmem:[#allocation3 + $0xd8] sm:$0xff]
      %v2502 = vld [vmem:[#allocation3 + $0xe0] sm:$0xff]
      %v2503 = vld [vmem:[#allocation3 + $0xe8] sm:$0xff]
      %v2504 = vld [vmem:[#allocation3 + $0xf0] sm:$0xff]
      %v2505 = vld [vmem:[#allocation3 + $0xf8] sm:$0xff]
      %v2506 = vadd.f32 %v2474, %v2316
      %v2507 = vadd.f32 %v2475, %v2321
      %v2508 = vadd.f32 %v2476, %v2326
      %v2509 = vadd.f32 %v2477, %v2331
      %v2510 = vadd.f32 %v2478, %v2336
      %v2511 = vadd.f32 %v2479, %v2341
      %v2512 = vadd.f32 %v2480, %v2346
      %v2513 = vadd.f32 %v2481, %v2351
      %v2514 = vadd.f32 %v2482, %v2356
      %v2515 = vadd.f32 %v2483, %v2361
      %v2516 = vadd.f32 %v2484, %v2366
      %v2517 = vadd.f32 %v2485, %v2371
      %v2518 = vadd.f32 %v2486, %v2376
      %v2519 = vadd.f32 %v2487, %v2381
      %v2520 = vadd.f32 %v2488, %v2386
      %v2521 = vadd.f32 %v2489, %v2391
      %v2522 = vadd.f32 %v2490, %v2396
      %v2523 = vadd.f32 %v2491, %v2401
      %v2524 = vadd.f32 %v2492, %v2406
      %v2525 = vadd.f32 %v2493, %v2411
      %v2526 = vadd.f32 %v2494, %v2416
      %v2527 = vadd.f32 %v2495, %v2421
      %v2528 = vadd.f32 %v2496, %v2426
      %v2529 = vadd.f32 %v2497, %v2431
      %v2530 = vadd.f32 %v2498, %v2436
      %v2531 = vadd.f32 %v2499, %v2441
      %v2532 = vadd.f32 %v2500, %v2446
      %v2533 = vadd.f32 %v2501, %v2451
      %v2534 = vadd.f32 %v2502, %v2456
      %v2535 = vadd.f32 %v2503, %v2461
      %v2536 = vadd.f32 %v2504, %v2466
      %v2537 = vadd.f32 %v2505, %v2471
      %2538 = vst.msk [vmem:[#allocation3] sm:$0xff] %vm721, %v2506
      %2539 = vst.msk [vmem:[#allocation3 + $0x8] sm:$0xff] %vm721, %v2507
      %2540 = vst.msk [vmem:[#allocation3 + $0x10] sm:$0xff] %vm721, %v2508
      %2541 = vst.msk [vmem:[#allocation3 + $0x18] sm:$0xff] %vm721, %v2509
      %2542 = vst.msk [vmem:[#allocation3 + $0x20] sm:$0xff] %vm721, %v2510
      %2543 = vst.msk [vmem:[#allocation3 + $0x28] sm:$0xff] %vm721, %v2511
      %2544 = vst.msk [vmem:[#allocation3 + $0x30] sm:$0xff] %vm721, %v2512
      %2545 = vst.msk [vmem:[#allocation3 + $0x38] sm:$0xff] %vm721, %v2513
      %2546 = vst.msk [vmem:[#allocation3 + $0x40] sm:$0xff] %vm721, %v2514
      %2547 = vst.msk [vmem:[#allocation3 + $0x48] sm:$0xff] %vm721, %v2515
      %2548 = vst.msk [vmem:[#allocation3 + $0x50] sm:$0xff] %vm721, %v2516
      %2549 = vst.msk [vmem:[#allocation3 + $0x58] sm:$0xff] %vm721, %v2517
      %2550 = vst.msk [vmem:[#allocation3 + $0x60] sm:$0xff] %vm721, %v2518
      %2551 = vst.msk [vmem:[#allocation3 + $0x68] sm:$0xff] %vm721, %v2519
      %2552 = vst.msk [vmem:[#allocation3 + $0x70] sm:$0xff] %vm721, %v2520
      %2553 = vst.msk [vmem:[#allocation3 + $0x78] sm:$0xff] %vm721, %v2521
      %2554 = vst.msk [vmem:[#allocation3 + $0x80] sm:$0xff] %vm721, %v2522
      %2555 = vst.msk [vmem:[#allocation3 + $0x88] sm:$0xff] %vm721, %v2523
      %2556 = vst.msk [vmem:[#allocation3 + $0x90] sm:$0xff] %vm721, %v2524
      %2557 = vst.msk [vmem:[#allocation3 + $0x98] sm:$0xff] %vm721, %v2525
      %2558 = vst.msk [vmem:[#allocation3 + $0xa0] sm:$0xff] %vm721, %v2526
      %2559 = vst.msk [vmem:[#allocation3 + $0xa8] sm:$0xff] %vm721, %v2527
      %2560 = vst.msk [vmem:[#allocation3 + $0xb0] sm:$0xff] %vm721, %v2528
      %2561 = vst.msk [vmem:[#allocation3 + $0xb8] sm:$0xff] %vm721, %v2529
      %2562 = vst.msk [vmem:[#allocation3 + $0xc0] sm:$0xff] %vm721, %v2530
      %2563 = vst.msk [vmem:[#allocation3 + $0xc8] sm:$0xff] %vm721, %v2531
      %2564 = vst.msk [vmem:[#allocation3 + $0xd0] sm:$0xff] %vm721, %v2532
      %2565 = vst.msk [vmem:[#allocation3 + $0xd8] sm:$0xff] %vm721, %v2533
      %2566 = vst.msk [vmem:[#allocation3 + $0xe0] sm:$0xff] %vm721, %v2534
      %2567 = vst.msk [vmem:[#allocation3 + $0xe8] sm:$0xff] %vm721, %v2535
      %2568 = vst.msk [vmem:[#allocation3 + $0xf0] sm:$0xff] %vm721, %v2536
      %2569 = vst.msk [vmem:[#allocation3 + $0xf8] sm:$0xff] %vm721, %v2537
      %v2570 = vld [vmem:[%s330 + $0x2] sm:$0xff]
      %v2571 = vld [vmem:[%s330 + $0xa] sm:$0xff]
      %v2572 = vld [vmem:[%s330 + $0x1a] sm:$0xff]
      %v2573 = vld [vmem:[%s330 + $0x22] sm:$0xff]
      %v2574 = vld [vmem:[%s330 + $0x32] sm:$0xff]
      %v2575 = vld [vmem:[%s330 + $0x3a] sm:$0xff]
      %v2576 = vld [vmem:[%s330 + $0x4a] sm:$0xff]
      %v2577 = vld [vmem:[%s330 + $0x52] sm:$0xff]
      %v2578 = vld [vmem:[%s330 + $0x62] sm:$0xff]
      %v2579 = vld [vmem:[%s330 + $0x6a] sm:$0xff]
      %v2580 = vld [vmem:[%s330 + $0x7a] sm:$0xff]
      %v2581 = vld [vmem:[%s330 + $0x82] sm:$0xff]
      %v2582 = vld [vmem:[%s330 + $0x92] sm:$0xff]
      %v2583 = vld [vmem:[%s330 + $0x9a] sm:$0xff]
      %v2584 = vld [vmem:[%s330 + $0xaa] sm:$0xff]
      %v2585 = vld [vmem:[%s330 + $0xb2] sm:$0xff]
      %v2586 = vld [vmem:[%s330 + $0xc2] sm:$0xff]
      %v2587 = vld [vmem:[%s330 + $0xca] sm:$0xff]
      %v2588 = vld [vmem:[%s330 + $0xda] sm:$0xff]
      %v2589 = vld [vmem:[%s330 + $0xe2] sm:$0xff]
      %v2590 = vld [vmem:[%s330 + $0xf2] sm:$0xff]
      %v2591 = vld [vmem:[%s330 + $0xfa] sm:$0xff]
      %v2592 = vld [vmem:[%s330 + $0x10a] sm:$0xff]
      %v2593 = vld [vmem:[%s330 + $0x112] sm:$0xff]
      %v2594 = vld [vmem:[%s330 + $0x122] sm:$0xff]
      %v2595 = vld [vmem:[%s330 + $0x12a] sm:$0xff]
      %v2596 = vld [vmem:[%s330 + $0x13a] sm:$0xff]
      %v2597 = vld [vmem:[%s330 + $0x142] sm:$0xff]
      %v2598 = vld [vmem:[%s330 + $0x152] sm:$0xff]
      %v2599 = vld [vmem:[%s330 + $0x15a] sm:$0xff]
      %v2600 = vld [vmem:[%s330 + $0x16a] sm:$0xff]
      %v2601 = vld [vmem:[%s330 + $0x172] sm:$0xff]
      %s2602 = scalar_lea.vmem %s1, 20
      %v2603 = vld [vmem:[%s2602] sm:$0xf]
      %v2605 = vsel %vm242, %v2570, 0
      %v2608 = vsel %vm242, %v2571, 0
      %v2611 = vsel %vm242, %v2572, 0
      %v2614 = vsel %vm242, %v2573, 0
      %v2617 = vsel %vm242, %v2574, 0
      %v2620 = vsel %vm242, %v2575, 0
      %v2623 = vsel %vm242, %v2576, 0
      %v2626 = vsel %vm242, %v2577, 0
      %v2629 = vsel %vm242, %v2578, 0
      %v2632 = vsel %vm242, %v2579, 0
      %v2635 = vsel %vm242, %v2580, 0
      %v2638 = vsel %vm242, %v2581, 0
      %v2641 = vsel %vm242, %v2582, 0
      %v2644 = vsel %vm242, %v2583, 0
      %v2647 = vsel %vm242, %v2584, 0
      %v2650 = vsel %vm242, %v2585, 0
      %v2653 = vsel %vm242, %v2586, 0
      %v2656 = vsel %vm242, %v2587, 0
      %v2659 = vsel %vm242, %v2588, 0
      %v2662 = vsel %vm242, %v2589, 0
      %v2665 = vsel %vm242, %v2590, 0
      %v2668 = vsel %vm242, %v2591, 0
      %v2671 = vsel %vm242, %v2592, 0
      %v2674 = vsel %vm242, %v2593, 0
      %v2677 = vsel %vm242, %v2594, 0
      %v2680 = vsel %vm242, %v2595, 0
      %v2683 = vsel %vm242, %v2596, 0
      %v2686 = vsel %vm242, %v2597, 0
      %v2689 = vsel %vm242, %v2598, 0
      %v2692 = vsel %vm242, %v2599, 0
      %v2695 = vsel %vm242, %v2600, 0
      %v2698 = vsel %vm242, %v2601, 0
      %v2701 = vsel %vm492, %v2603, 0
      %2703 = vmatprep.subr.mxu0 0.0
      %2704 = vmatpush1.msra.mxu0 %v2701
      %2705 = vmatprep.subr.mxu0 0.0
      %2706 = vmatpush1.msra.mxu0 0.0
      %2707 = vmatprep.subr.mxu0 0.0
      %2708 = vmatpush1.msra.mxu0 0.0
      %2709 = vmatprep.subr.mxu0 0.0
      %2710 = vmatpush1.msra.mxu0 0.0
      %2711 = vmatprep.subr.mxu0 0.0
      %2712 = vmatpush1.msra.mxu0 0.0
      %2713 = vmatprep.subr.mxu0 0.0
      %2714 = vmatpush1.msra.mxu0 0.0
      %2715 = vmatprep.subr.mxu0 0.0
      %2716 = vmatpush1.msra.mxu0 0.0
      %2717 = vmatprep.subr.mxu0 0.0
      %2718 = vmatpush1.msra.mxu0 0.0
      %2719 = vmatprep.subr.mxu0 0.0
      %2720 = vmatpush1.msra.mxu0 0.0
      %2721 = vmatprep.subr.mxu0 0.0
      %2722 = vmatpush1.msra.mxu0 0.0
      %2723 = vmatprep.subr.mxu0 0.0
      %2724 = vmatpush1.msra.mxu0 0.0
      %2725 = vmatprep.subr.mxu0 0.0
      %2726 = vmatpush1.msra.mxu0 0.0
      %2727 = vmatprep.subr.mxu0 0.0
      %2728 = vmatpush1.msra.mxu0 0.0
      %2729 = vmatprep.subr.mxu0 0.0
      %2730 = vmatpush1.msra.mxu0 0.0
      %2731 = vmatprep.subr.mxu0 0.0
      %2732 = vmatpush1.msra.mxu0 0.0
      %2733 = vmatprep.subr.mxu0 0.0
      %2734 = vmatpush1.msra.mxu0 0.0
      %2735 = vmatprep.subr.mxu0 0.0
      %2736 = vmatpush1.msra.mxu0 0.0
      %2737 = vmatprep.subr.mxu0 0.0
      %2738 = vmatpush1.msra.mxu0 0.0
      %2739 = vmatprep.subr.mxu0 0.0
      %2740 = vmatpush1.msra.mxu0 0.0
      %2741 = vmatprep.subr.mxu0 0.0
      %2742 = vmatpush1.msra.mxu0 0.0
      %2743 = vmatprep.subr.mxu0 0.0
      %2744 = vmatpush1.msra.mxu0 0.0
      %2745 = vmatprep.subr.mxu0 0.0
      %2746 = vmatpush1.msra.mxu0 0.0
      %2747 = vmatprep.subr.mxu0 0.0
      %2748 = vmatpush1.msra.mxu0 0.0
      %2749 = vmatprep.subr.mxu0 0.0
      %2750 = vmatpush1.msra.mxu0 0.0
      %2751 = vmatprep.subr.mxu0 0.0
      %2752 = vmatpush1.msra.mxu0 0.0
      %2753 = vmatprep.subr.mxu0 0.0
      %2754 = vmatpush1.msra.mxu0 0.0
      %2755 = vmatprep.subr.mxu0 0.0
      %2756 = vmatpush1.msra.mxu0 0.0
      %2757 = vmatprep.subr.mxu0 0.0
      %2758 = vmatpush1.msra.mxu0 0.0
      %2759 = vmatprep.subr.mxu0 0.0
      %2760 = vmatpush1.msra.mxu0 0.0
      %2761 = vmatprep.subr.mxu0 0.0
      %2762 = vmatpush1.msra.mxu0 0.0
      %2763 = vmatprep.subr.mxu0 0.0
      %2764 = vmatpush1.msra.mxu0 0.0
      %2765 = vmatprep.subr.mxu0 0.0
      %2766 = vmatpush1.msra.mxu0 0.0
      %2767 = vmatprep.mubr.f32.mxu0 0.0
      %2768 = vmatmul.mubr.f32.gmra.mrb[0].mxu0 %v2605
      %v2769 = vpop.f32.mrb[0].mxu0
      %v2770 = vadd.f32 0.0, %v2769
      %v2771 = vpop.f32.mrb[0].mxu0
      %2772 = vmatprep.mubr.f32.mxu0 0.0
      %2773 = vmatmul.mubr.f32.gmra.mrb[0].mxu0 %v2608
      %v2774 = vpop.f32.mrb[0].mxu0
      %v2775 = vadd.f32 0.0, %v2774
      %v2776 = vpop.f32.mrb[0].mxu0
      %2777 = vmatprep.mubr.f32.mxu0 0.0
      %2778 = vmatmul.mubr.f32.gmra.mrb[0].mxu0 %v2611
      %v2779 = vpop.f32.mrb[0].mxu0
      %v2780 = vadd.f32 0.0, %v2779
      %v2781 = vpop.f32.mrb[0].mxu0
      %2782 = vmatprep.mubr.f32.mxu0 0.0
      %2783 = vmatmul.mubr.f32.gmra.mrb[0].mxu0 %v2614
      %v2784 = vpop.f32.mrb[0].mxu0
      %v2785 = vadd.f32 0.0, %v2784
      %v2786 = vpop.f32.mrb[0].mxu0
      %2787 = vmatprep.mubr.f32.mxu0 0.0
      %2788 = vmatmul.mubr.f32.gmra.mrb[0].mxu0 %v2617
      %v2789 = vpop.f32.mrb[0].mxu0
      %v2790 = vadd.f32 0.0, %v2789
      %v2791 = vpop.f32.mrb[0].mxu0
      %2792 = vmatprep.mubr.f32.mxu0 0.0
      %2793 = vmatmul.mubr.f32.gmra.mrb[0].mxu0 %v2620
      %v2794 = vpop.f32.mrb[0].mxu0
      %v2795 = vadd.f32 0.0, %v2794
      %v2796 = vpop.f32.mrb[0].mxu0
      %2797 = vmatprep.mubr.f32.mxu0 0.0
      %2798 = vmatmul.mubr.f32.gmra.mrb[0].mxu0 %v2623
      %v2799 = vpop.f32.mrb[0].mxu0
      %v2800 = vadd.f32 0.0, %v2799
      %v2801 = vpop.f32.mrb[0].mxu0
      %2802 = vmatprep.mubr.f32.mxu0 0.0
      %2803 = vmatmul.mubr.f32.gmra.mrb[0].mxu0 %v2626
      %v2804 = vpop.f32.mrb[0].mxu0
      %v2805 = vadd.f32 0.0, %v2804
      %v2806 = vpop.f32.mrb[0].mxu0
      %2807 = vmatprep.mubr.f32.mxu0 0.0
      %2808 = vmatmul.mubr.f32.gmra.mrb[0].mxu0 %v2629
      %v2809 = vpop.f32.mrb[0].mxu0
      %v2810 = vadd.f32 0.0, %v2809
      %v2811 = vpop.f32.mrb[0].mxu0
      %2812 = vmatprep.mubr.f32.mxu0 0.0
      %2813 = vmatmul.mubr.f32.gmra.mrb[0].mxu0 %v2632
      %v2814 = vpop.f32.mrb[0].mxu0
      %v2815 = vadd.f32 0.0, %v2814
      %v2816 = vpop.f32.mrb[0].mxu0
      %2817 = vmatprep.mubr.f32.mxu0 0.0
      %2818 = vmatmul.mubr.f32.gmra.mrb[0].mxu0 %v2635
      %v2819 = vpop.f32.mrb[0].mxu0
      %v2820 = vadd.f32 0.0, %v2819
      %v2821 = vpop.f32.mrb[0].mxu0
      %2822 = vmatprep.mubr.f32.mxu0 0.0
      %2823 = vmatmul.mubr.f32.gmra.mrb[0].mxu0 %v2638
      %v2824 = vpop.f32.mrb[0].mxu0
      %v2825 = vadd.f32 0.0, %v2824
      %v2826 = vpop.f32.mrb[0].mxu0
      %2827 = vmatprep.mubr.f32.mxu0 0.0
      %2828 = vmatmul.mubr.f32.gmra.mrb[0].mxu0 %v2641
      %v2829 = vpop.f32.mrb[0].mxu0
      %v2830 = vadd.f32 0.0, %v2829
      %v2831 = vpop.f32.mrb[0].mxu0
      %2832 = vmatprep.mubr.f32.mxu0 0.0
      %2833 = vmatmul.mubr.f32.gmra.mrb[0].mxu0 %v2644
      %v2834 = vpop.f32.mrb[0].mxu0
      %v2835 = vadd.f32 0.0, %v2834
      %v2836 = vpop.f32.mrb[0].mxu0
      %2837 = vmatprep.mubr.f32.mxu0 0.0
      %2838 = vmatmul.mubr.f32.gmra.mrb[0].mxu0 %v2647
      %v2839 = vpop.f32.mrb[0].mxu0
      %v2840 = vadd.f32 0.0, %v2839
      %v2841 = vpop.f32.mrb[0].mxu0
      %2842 = vmatprep.mubr.f32.mxu0 0.0
      %2843 = vmatmul.mubr.f32.gmra.mrb[0].mxu0 %v2650
      %v2844 = vpop.f32.mrb[0].mxu0
      %v2845 = vadd.f32 0.0, %v2844
      %v2846 = vpop.f32.mrb[0].mxu0
      %2847 = vmatprep.mubr.f32.mxu0 0.0
      %2848 = vmatmul.mubr.f32.gmra.mrb[0].mxu0 %v2653
      %v2849 = vpop.f32.mrb[0].mxu0
      %v2850 = vadd.f32 0.0, %v2849
      %v2851 = vpop.f32.mrb[0].mxu0
      %2852 = vmatprep.mubr.f32.mxu0 0.0
      %2853 = vmatmul.mubr.f32.gmra.mrb[0].mxu0 %v2656
      %v2854 = vpop.f32.mrb[0].mxu0
      %v2855 = vadd.f32 0.0, %v2854
      %v2856 = vpop.f32.mrb[0].mxu0
      %2857 = vmatprep.mubr.f32.mxu0 0.0
      %2858 = vmatmul.mubr.f32.gmra.mrb[0].mxu0 %v2659
      %v2859 = vpop.f32.mrb[0].mxu0
      %v2860 = vadd.f32 0.0, %v2859
      %v2861 = vpop.f32.mrb[0].mxu0
      %2862 = vmatprep.mubr.f32.mxu0 0.0
      %2863 = vmatmul.mubr.f32.gmra.mrb[0].mxu0 %v2662
      %v2864 = vpop.f32.mrb[0].mxu0
      %v2865 = vadd.f32 0.0, %v2864
      %v2866 = vpop.f32.mrb[0].mxu0
      %2867 = vmatprep.mubr.f32.mxu0 0.0
      %2868 = vmatmul.mubr.f32.gmra.mrb[0].mxu0 %v2665
      %v2869 = vpop.f32.mrb[0].mxu0
      %v2870 = vadd.f32 0.0, %v2869
      %v2871 = vpop.f32.mrb[0].mxu0
      %2872 = vmatprep.mubr.f32.mxu0 0.0
      %2873 = vmatmul.mubr.f32.gmra.mrb[0].mxu0 %v2668
      %v2874 = vpop.f32.mrb[0].mxu0
      %v2875 = vadd.f32 0.0, %v2874
      %v2876 = vpop.f32.mrb[0].mxu0
      %2877 = vmatprep.mubr.f32.mxu0 0.0
      %2878 = vmatmul.mubr.f32.gmra.mrb[0].mxu0 %v2671
      %v2879 = vpop.f32.mrb[0].mxu0
      %v2880 = vadd.f32 0.0, %v2879
      %v2881 = vpop.f32.mrb[0].mxu0
      %2882 = vmatprep.mubr.f32.mxu0 0.0
      %2883 = vmatmul.mubr.f32.gmra.mrb[0].mxu0 %v2674
      %v2884 = vpop.f32.mrb[0].mxu0
      %v2885 = vadd.f32 0.0, %v2884
      %v2886 = vpop.f32.mrb[0].mxu0
      %2887 = vmatprep.mubr.f32.mxu0 0.0
      %2888 = vmatmul.mubr.f32.gmra.mrb[0].mxu0 %v2677
      %v2889 = vpop.f32.mrb[0].mxu0
      %v2890 = vadd.f32 0.0, %v2889
      %v2891 = vpop.f32.mrb[0].mxu0
      %2892 = vmatprep.mubr.f32.mxu0 0.0
      %2893 = vmatmul.mubr.f32.gmra.mrb[0].mxu0 %v2680
      %v2894 = vpop.f32.mrb[0].mxu0
      %v2895 = vadd.f32 0.0, %v2894
      %v2896 = vpop.f32.mrb[0].mxu0
      %2897 = vmatprep.mubr.f32.mxu0 0.0
      %2898 = vmatmul.mubr.f32.gmra.mrb[0].mxu0 %v2683
      %v2899 = vpop.f32.mrb[0].mxu0
      %v2900 = vadd.f32 0.0, %v2899
      %v2901 = vpop.f32.mrb[0].mxu0
      %2902 = vmatprep.mubr.f32.mxu0 0.0
      %2903 = vmatmul.mubr.f32.gmra.mrb[0].mxu0 %v2686
      %v2904 = vpop.f32.mrb[0].mxu0
      %v2905 = vadd.f32 0.0, %v2904
      %v2906 = vpop.f32.mrb[0].mxu0
      %2907 = vmatprep.mubr.f32.mxu0 0.0
      %2908 = vmatmul.mubr.f32.gmra.mrb[0].mxu0 %v2689
      %v2909 = vpop.f32.mrb[0].mxu0
      %v2910 = vadd.f32 0.0, %v2909
      %v2911 = vpop.f32.mrb[0].mxu0
      %2912 = vmatprep.mubr.f32.mxu0 0.0
      %2913 = vmatmul.mubr.f32.gmra.mrb[0].mxu0 %v2692
      %v2914 = vpop.f32.mrb[0].mxu0
      %v2915 = vadd.f32 0.0, %v2914
      %v2916 = vpop.f32.mrb[0].mxu0
      %2917 = vmatprep.mubr.f32.mxu0 0.0
      %2918 = vmatmul.mubr.f32.gmra.mrb[0].mxu0 %v2695
      %v2919 = vpop.f32.mrb[0].mxu0
      %v2920 = vadd.f32 0.0, %v2919
      %v2921 = vpop.f32.mrb[0].mxu0
      %2922 = vmatprep.mubr.f32.mxu0 0.0
      %2923 = vmatmul.mubr.f32.gmra.mrb[0].mxu0 %v2698
      %v2924 = vpop.f32.mrb[0].mxu0
      %v2925 = vadd.f32 0.0, %v2924
      %v2926 = vpop.f32.mrb[0].mxu0
      %2927 = vdwg.mxu0
      %v2928 = vld [vmem:[#allocation3] sm:$0xff]
      %v2929 = vld [vmem:[#allocation3 + $0x8] sm:$0xff]
      %v2930 = vld [vmem:[#allocation3 + $0x10] sm:$0xff]
      %v2931 = vld [vmem:[#allocation3 + $0x18] sm:$0xff]
      %v2932 = vld [vmem:[#allocation3 + $0x20] sm:$0xff]
      %v2933 = vld [vmem:[#allocation3 + $0x28] sm:$0xff]
      %v2934 = vld [vmem:[#allocation3 + $0x30] sm:$0xff]
      %v2935 = vld [vmem:[#allocation3 + $0x38] sm:$0xff]
      %v2936 = vld [vmem:[#allocation3 + $0x40] sm:$0xff]
      %v2937 = vld [vmem:[#allocation3 + $0x48] sm:$0xff]
      %v2938 = vld [vmem:[#allocation3 + $0x50] sm:$0xff]
      %v2939 = vld [vmem:[#allocation3 + $0x58] sm:$0xff]
      %v2940 = vld [vmem:[#allocation3 + $0x60] sm:$0xff]
      %v2941 = vld [vmem:[#allocation3 + $0x68] sm:$0xff]
      %v2942 = vld [vmem:[#allocation3 + $0x70] sm:$0xff]
      %v2943 = vld [vmem:[#allocation3 + $0x78] sm:$0xff]
      %v2944 = vld [vmem:[#allocation3 + $0x80] sm:$0xff]
      %v2945 = vld [vmem:[#allocation3 + $0x88] sm:$0xff]
      %v2946 = vld [vmem:[#allocation3 + $0x90] sm:$0xff]
      %v2947 = vld [vmem:[#allocation3 + $0x98] sm:$0xff]
      %v2948 = vld [vmem:[#allocation3 + $0xa0] sm:$0xff]
      %v2949 = vld [vmem:[#allocation3 + $0xa8] sm:$0xff]
      %v2950 = vld [vmem:[#allocation3 + $0xb0] sm:$0xff]
      %v2951 = vld [vmem:[#allocation3 + $0xb8] sm:$0xff]
      %v2952 = vld [vmem:[#allocation3 + $0xc0] sm:$0xff]
      %v2953 = vld [vmem:[#allocation3 + $0xc8] sm:$0xff]
      %v2954 = vld [vmem:[#allocation3 + $0xd0] sm:$0xff]
      %v2955 = vld [vmem:[#allocation3 + $0xd8] sm:$0xff]
      %v2956 = vld [vmem:[#allocation3 + $0xe0] sm:$0xff]
      %v2957 = vld [vmem:[#allocation3 + $0xe8] sm:$0xff]
      %v2958 = vld [vmem:[#allocation3 + $0xf0] sm:$0xff]
      %v2959 = vld [vmem:[#allocation3 + $0xf8] sm:$0xff]
      %v2960 = vadd.f32 %v2928, %v2770
      %v2961 = vadd.f32 %v2929, %v2775
      %v2962 = vadd.f32 %v2930, %v2780
      %v2963 = vadd.f32 %v2931, %v2785
      %v2964 = vadd.f32 %v2932, %v2790
      %v2965 = vadd.f32 %v2933, %v2795
      %v2966 = vadd.f32 %v2934, %v2800
      %v2967 = vadd.f32 %v2935, %v2805
      %v2968 = vadd.f32 %v2936, %v2810
      %v2969 = vadd.f32 %v2937, %v2815
      %v2970 = vadd.f32 %v2938, %v2820
      %v2971 = vadd.f32 %v2939, %v2825
      %v2972 = vadd.f32 %v2940, %v2830
      %v2973 = vadd.f32 %v2941, %v2835
      %v2974 = vadd.f32 %v2942, %v2840
      %v2975 = vadd.f32 %v2943, %v2845
      %v2976 = vadd.f32 %v2944, %v2850
      %v2977 = vadd.f32 %v2945, %v2855
      %v2978 = vadd.f32 %v2946, %v2860
      %v2979 = vadd.f32 %v2947, %v2865
      %v2980 = vadd.f32 %v2948, %v2870
      %v2981 = vadd.f32 %v2949, %v2875
      %v2982 = vadd.f32 %v2950, %v2880
      %v2983 = vadd.f32 %v2951, %v2885
      %v2984 = vadd.f32 %v2952, %v2890
      %v2985 = vadd.f32 %v2953, %v2895
      %v2986 = vadd.f32 %v2954, %v2900
      %v2987 = vadd.f32 %v2955, %v2905
      %v2988 = vadd.f32 %v2956, %v2910
      %v2989 = vadd.f32 %v2957, %v2915
      %v2990 = vadd.f32 %v2958, %v2920
      %v2991 = vadd.f32 %v2959, %v2925
      %2992 = vst.msk [vmem:[#allocation3] sm:$0xff] %vm721, %v2960
      %2993 = vst.msk [vmem:[#allocation3 + $0x8] sm:$0xff] %vm721, %v2961
      %2994 = vst.msk [vmem:[#allocation3 + $0x10] sm:$0xff] %vm721, %v2962
      %2995 = vst.msk [vmem:[#allocation3 + $0x18] sm:$0xff] %vm721, %v2963
      %2996 = vst.msk [vmem:[#allocation3 + $0x20] sm:$0xff] %vm721, %v2964
      %2997 = vst.msk [vmem:[#allocation3 + $0x28] sm:$0xff] %vm721, %v2965
      %2998 = vst.msk [vmem:[#allocation3 + $0x30] sm:$0xff] %vm721, %v2966
      %2999 = vst.msk [vmem:[#allocation3 + $0x38] sm:$0xff] %vm721, %v2967
      %3000 = vst.msk [vmem:[#allocation3 + $0x40] sm:$0xff] %vm721, %v2968
      %3001 = vst.msk [vmem:[#allocation3 + $0x48] sm:$0xff] %vm721, %v2969
      %3002 = vst.msk [vmem:[#allocation3 + $0x50] sm:$0xff] %vm721, %v2970
      %3003 = vst.msk [vmem:[#allocation3 + $0x58] sm:$0xff] %vm721, %v2971
      %3004 = vst.msk [vmem:[#allocation3 + $0x60] sm:$0xff] %vm721, %v2972
      %3005 = vst.msk [vmem:[#allocation3 + $0x68] sm:$0xff] %vm721, %v2973
      %3006 = vst.msk [vmem:[#allocation3 + $0x70] sm:$0xff] %vm721, %v2974
      %3007 = vst.msk [vmem:[#allocation3 + $0x78] sm:$0xff] %vm721, %v2975
      %3008 = vst.msk [vmem:[#allocation3 + $0x80] sm:$0xff] %vm721, %v2976
      %3009 = vst.msk [vmem:[#allocation3 + $0x88] sm:$0xff] %vm721, %v2977
      %3010 = vst.msk [vmem:[#allocation3 + $0x90] sm:$0xff] %vm721, %v2978
      %3011 = vst.msk [vmem:[#allocation3 + $0x98] sm:$0xff] %vm721, %v2979
      %3012 = vst.msk [vmem:[#allocation3 + $0xa0] sm:$0xff] %vm721, %v2980
      %3013 = vst.msk [vmem:[#allocation3 + $0xa8] sm:$0xff] %vm721, %v2981
      %3014 = vst.msk [vmem:[#allocation3 + $0xb0] sm:$0xff] %vm721, %v2982
      %3015 = vst.msk [vmem:[#allocation3 + $0xb8] sm:$0xff] %vm721, %v2983
      %3016 = vst.msk [vmem:[#allocation3 + $0xc0] sm:$0xff] %vm721, %v2984
      %3017 = vst.msk [vmem:[#allocation3 + $0xc8] sm:$0xff] %vm721, %v2985
      %3018 = vst.msk [vmem:[#allocation3 + $0xd0] sm:$0xff] %vm721, %v2986
      %3019 = vst.msk [vmem:[#allocation3 + $0xd8] sm:$0xff] %vm721, %v2987
      %3020 = vst.msk [vmem:[#allocation3 + $0xe0] sm:$0xff] %vm721, %v2988
      %3021 = vst.msk [vmem:[#allocation3 + $0xe8] sm:$0xff] %vm721, %v2989
      %3022 = vst.msk [vmem:[#allocation3 + $0xf0] sm:$0xff] %vm721, %v2990
      %3023 = vst.msk [vmem:[#allocation3 + $0xf8] sm:$0xff] %vm721, %v2991
      %s3024 = scalar_lea.vmem [#allocation2], 48
      %v3025 = vld [vmem:[%s3024] sm:$0xff]
      %v3026 = vld [vmem:[%s3024 + $0x8] sm:$0xff]
      %v3027 = vld [vmem:[%s3024 + $0x18] sm:$0xff]
      %v3028 = vld [vmem:[%s3024 + $0x20] sm:$0xff]
      %v3029 = vld [vmem:[%s3024 + $0x30] sm:$0xff]
      %v3030 = vld [vmem:[%s3024 + $0x38] sm:$0xff]
      %v3031 = vld [vmem:[%s3024 + $0x48] sm:$0xff]
      %v3032 = vld [vmem:[%s3024 + $0x50] sm:$0xff]
      %v3033 = vld [vmem:[%s3024 + $0x60] sm:$0xff]
      %v3034 = vld [vmem:[%s3024 + $0x68] sm:$0xff]
      %v3035 = vld [vmem:[%s3024 + $0x78] sm:$0xff]
      %v3036 = vld [vmem:[%s3024 + $0x80] sm:$0xff]
      %v3037 = vld [vmem:[%s3024 + $0x90] sm:$0xff]
      %v3038 = vld [vmem:[%s3024 + $0x98] sm:$0xff]
      %v3039 = vld [vmem:[%s3024 + $0xa8] sm:$0xff]
      %v3040 = vld [vmem:[%s3024 + $0xb0] sm:$0xff]
      %v3041 = vld [vmem:[%s3024 + $0xc0] sm:$0xff]
      %v3042 = vld [vmem:[%s3024 + $0xc8] sm:$0xff]
      %v3043 = vld [vmem:[%s3024 + $0xd8] sm:$0xff]
      %v3044 = vld [vmem:[%s3024 + $0xe0] sm:$0xff]
      %v3045 = vld [vmem:[%s3024 + $0xf0] sm:$0xff]
      %v3046 = vld [vmem:[%s3024 + $0xf8] sm:$0xff]
      %v3047 = vld [vmem:[%s3024 + $0x108] sm:$0xff]
      %v3048 = vld [vmem:[%s3024 + $0x110] sm:$0xff]
      %v3049 = vld [vmem:[%s3024 + $0x120] sm:$0xff]
      %v3050 = vld [vmem:[%s3024 + $0x128] sm:$0xff]
      %v3051 = vld [vmem:[%s3024 + $0x138] sm:$0xff]
      %v3052 = vld [vmem:[%s3024 + $0x140] sm:$0xff]
      %v3053 = vld [vmem:[%s3024 + $0x150] sm:$0xff]
      %v3054 = vld [vmem:[%s3024 + $0x158] sm:$0xff]
      %v3055 = vld [vmem:[%s3024 + $0x168] sm:$0xff]
      %v3056 = vld [vmem:[%s3024 + $0x170] sm:$0xff]
      %s3057 = scalar_lea.vmem %s1, 24
      %v3058 = vld [vmem:[%s3057] sm:$0xf]
      %v3060 = vsel %vm242, %v3025, 0
      %v3063 = vsel %vm242, %v3026, 0
      %v3066 = vsel %vm242, %v3027, 0
      %v3069 = vsel %vm242, %v3028, 0
      %v3072 = vsel %vm242, %v3029, 0
      %v3075 = vsel %vm242, %v3030, 0
      %v3078 = vsel %vm242, %v3031, 0
      %v3081 = vsel %vm242, %v3032, 0
      %v3084 = vsel %vm242, %v3033, 0
      %v3087 = vsel %vm242, %v3034, 0
      %v3090 = vsel %vm242, %v3035, 0
      %v3093 = vsel %vm242, %v3036, 0
      %v3096 = vsel %vm242, %v3037, 0
      %v3099 = vsel %vm242, %v3038, 0
      %v3102 = vsel %vm242, %v3039, 0
      %v3105 = vsel %vm242, %v3040, 0
      %v3108 = vsel %vm242, %v3041, 0
      %v3111 = vsel %vm242, %v3042, 0
      %v3114 = vsel %vm242, %v3043, 0
      %v3117 = vsel %vm242, %v3044, 0
      %v3120 = vsel %vm242, %v3045, 0
      %v3123 = vsel %vm242, %v3046, 0
      %v3126 = vsel %vm242, %v3047, 0
      %v3129 = vsel %vm242, %v3048, 0
      %v3132 = vsel %vm242, %v3049, 0
      %v3135 = vsel %vm242, %v3050, 0
      %v3138 = vsel %vm242, %v3051, 0
      %v3141 = vsel %vm242, %v3052, 0
      %v3144 = vsel %vm242, %v3053, 0
      %v3147 = vsel %vm242, %v3054, 0
      %v3150 = vsel %vm242, %v3055, 0
      %v3153 = vsel %vm242, %v3056, 0
      %v3156 = vsel %vm492, %v3058, 0
      %3158 = vmatprep.subr.mxu0 0.0
      %3159 = vmatpush1.msra.mxu0 %v3156
      %3160 = vmatprep.subr.mxu0 0.0
      %3161 = vmatpush1.msra.mxu0 0.0
      %3162 = vmatprep.subr.mxu0 0.0
      %3163 = vmatpush1.msra.mxu0 0.0
      %3164 = vmatprep.subr.mxu0 0.0
      %3165 = vmatpush1.msra.mxu0 0.0
      %3166 = vmatprep.subr.mxu0 0.0
      %3167 = vmatpush1.msra.mxu0 0.0
      %3168 = vmatprep.subr.mxu0 0.0
      %3169 = vmatpush1.msra.mxu0 0.0
      %3170 = vmatprep.subr.mxu0 0.0
      %3171 = vmatpush1.msra.mxu0 0.0
      %3172 = vmatprep.subr.mxu0 0.0
      %3173 = vmatpush1.msra.mxu0 0.0
      %3174 = vmatprep.subr.mxu0 0.0
      %3175 = vmatpush1.msra.mxu0 0.0
      %3176 = vmatprep.subr.mxu0 0.0
      %3177 = vmatpush1.msra.mxu0 0.0
      %3178 = vmatprep.subr.mxu0 0.0
      %3179 = vmatpush1.msra.mxu0 0.0
      %3180 = vmatprep.subr.mxu0 0.0
      %3181 = vmatpush1.msra.mxu0 0.0
      %3182 = vmatprep.subr.mxu0 0.0
      %3183 = vmatpush1.msra.mxu0 0.0
      %3184 = vmatprep.subr.mxu0 0.0
      %3185 = vmatpush1.msra.mxu0 0.0
      %3186 = vmatprep.subr.mxu0 0.0
      %3187 = vmatpush1.msra.mxu0 0.0
      %3188 = vmatprep.subr.mxu0 0.0
      %3189 = vmatpush1.msra.mxu0 0.0
      %3190 = vmatprep.subr.mxu0 0.0
      %3191 = vmatpush1.msra.mxu0 0.0
      %3192 = vmatprep.subr.mxu0 0.0
      %3193 = vmatpush1.msra.mxu0 0.0
      %3194 = vmatprep.subr.mxu0 0.0
      %3195 = vmatpush1.msra.mxu0 0.0
      %3196 = vmatprep.subr.mxu0 0.0
      %3197 = vmatpush1.msra.mxu0 0.0
      %3198 = vmatprep.subr.mxu0 0.0
      %3199 = vmatpush1.msra.mxu0 0.0
      %3200 = vmatprep.subr.mxu0 0.0
      %3201 = vmatpush1.msra.mxu0 0.0
      %3202 = vmatprep.subr.mxu0 0.0
      %3203 = vmatpush1.msra.mxu0 0.0
      %3204 = vmatprep.subr.mxu0 0.0
      %3205 = vmatpush1.msra.mxu0 0.0
      %3206 = vmatprep.subr.mxu0 0.0
      %3207 = vmatpush1.msra.mxu0 0.0
      %3208 = vmatprep.subr.mxu0 0.0
      %3209 = vmatpush1.msra.mxu0 0.0
      %3210 = vmatprep.subr.mxu0 0.0
      %3211 = vmatpush1.msra.mxu0 0.0
      %3212 = vmatprep.subr.mxu0 0.0
      %3213 = vmatpush1.msra.mxu0 0.0
      %3214 = vmatprep.subr.mxu0 0.0
      %3215 = vmatpush1.msra.mxu0 0.0
      %3216 = vmatprep.subr.mxu0 0.0
      %3217 = vmatpush1.msra.mxu0 0.0
      %3218 = vmatprep.subr.mxu0 0.0
      %3219 = vmatpush1.msra.mxu0 0.0
      %3220 = vmatprep.subr.mxu0 0.0
      %3221 = vmatpush1.msra.mxu0 0.0
      %3222 = vmatprep.mubr.f32.mxu0 0.0
      %3223 = vmatmul.mubr.f32.gmra.mrb[0].mxu0 %v3060
      %v3224 = vpop.f32.mrb[0].mxu0
      %v3225 = vadd.f32 0.0, %v3224
      %v3226 = vpop.f32.mrb[0].mxu0
      %3227 = vmatprep.mubr.f32.mxu0 0.0
      %3228 = vmatmul.mubr.f32.gmra.mrb[0].mxu0 %v3063
      %v3229 = vpop.f32.mrb[0].mxu0
      %v3230 = vadd.f32 0.0, %v3229
      %v3231 = vpop.f32.mrb[0].mxu0
      %3232 = vmatprep.mubr.f32.mxu0 0.0
      %3233 = vmatmul.mubr.f32.gmra.mrb[0].mxu0 %v3066
      %v3234 = vpop.f32.mrb[0].mxu0
      %v3235 = vadd.f32 0.0, %v3234
      %v3236 = vpop.f32.mrb[0].mxu0
      %3237 = vmatprep.mubr.f32.mxu0 0.0
      %3238 = vmatmul.mubr.f32.gmra.mrb[0].mxu0 %v3069
      %v3239 = vpop.f32.mrb[0].mxu0
      %v3240 = vadd.f32 0.0, %v3239
      %v3241 = vpop.f32.mrb[0].mxu0
      %3242 = vmatprep.mubr.f32.mxu0 0.0
      %3243 = vmatmul.mubr.f32.gmra.mrb[0].mxu0 %v3072
      %v3244 = vpop.f32.mrb[0].mxu0
      %v3245 = vadd.f32 0.0, %v3244
      %v3246 = vpop.f32.mrb[0].mxu0
      %3247 = vmatprep.mubr.f32.mxu0 0.0
      %3248 = vmatmul.mubr.f32.gmra.mrb[0].mxu0 %v3075
      %v3249 = vpop.f32.mrb[0].mxu0
      %v3250 = vadd.f32 0.0, %v3249
      %v3251 = vpop.f32.mrb[0].mxu0
      %3252 = vmatprep.mubr.f32.mxu0 0.0
      %3253 = vmatmul.mubr.f32.gmra.mrb[0].mxu0 %v3078
      %v3254 = vpop.f32.mrb[0].mxu0
      %v3255 = vadd.f32 0.0, %v3254
      %v3256 = vpop.f32.mrb[0].mxu0
      %3257 = vmatprep.mubr.f32.mxu0 0.0
      %3258 = vmatmul.mubr.f32.gmra.mrb[0].mxu0 %v3081
      %v3259 = vpop.f32.mrb[0].mxu0
      %v3260 = vadd.f32 0.0, %v3259
      %v3261 = vpop.f32.mrb[0].mxu0
      %3262 = vmatprep.mubr.f32.mxu0 0.0
      %3263 = vmatmul.mubr.f32.gmra.mrb[0].mxu0 %v3084
      %v3264 = vpop.f32.mrb[0].mxu0
      %v3265 = vadd.f32 0.0, %v3264
      %v3266 = vpop.f32.mrb[0].mxu0
      %3267 = vmatprep.mubr.f32.mxu0 0.0
      %3268 = vmatmul.mubr.f32.gmra.mrb[0].mxu0 %v3087
      %v3269 = vpop.f32.mrb[0].mxu0
      %v3270 = vadd.f32 0.0, %v3269
      %v3271 = vpop.f32.mrb[0].mxu0
      %3272 = vmatprep.mubr.f32.mxu0 0.0
      %3273 = vmatmul.mubr.f32.gmra.mrb[0].mxu0 %v3090
      %v3274 = vpop.f32.mrb[0].mxu0
      %v3275 = vadd.f32 0.0, %v3274
      %v3276 = vpop.f32.mrb[0].mxu0
      %3277 = vmatprep.mubr.f32.mxu0 0.0
      %3278 = vmatmul.mubr.f32.gmra.mrb[0].mxu0 %v3093
      %v3279 = vpop.f32.mrb[0].mxu0
      %v3280 = vadd.f32 0.0, %v3279
      %v3281 = vpop.f32.mrb[0].mxu0
      %3282 = vmatprep.mubr.f32.mxu0 0.0
      %3283 = vmatmul.mubr.f32.gmra.mrb[0].mxu0 %v3096
      %v3284 = vpop.f32.mrb[0].mxu0
      %v3285 = vadd.f32 0.0, %v3284
      %v3286 = vpop.f32.mrb[0].mxu0
      %3287 = vmatprep.mubr.f32.mxu0 0.0
      %3288 = vmatmul.mubr.f32.gmra.mrb[0].mxu0 %v3099
      %v3289 = vpop.f32.mrb[0].mxu0
      %v3290 = vadd.f32 0.0, %v3289
      %v3291 = vpop.f32.mrb[0].mxu0
      %3292 = vmatprep.mubr.f32.mxu0 0.0
      %3293 = vmatmul.mubr.f32.gmra.mrb[0].mxu0 %v3102
      %v3294 = vpop.f32.mrb[0].mxu0
      %v3295 = vadd.f32 0.0, %v3294
      %v3296 = vpop.f32.mrb[0].mxu0
      %3297 = vmatprep.mubr.f32.mxu0 0.0
      %3298 = vmatmul.mubr.f32.gmra.mrb[0].mxu0 %v3105
      %v3299 = vpop.f32.mrb[0].mxu0
      %v3300 = vadd.f32 0.0, %v3299
      %v3301 = vpop.f32.mrb[0].mxu0
      %3302 = vmatprep.mubr.f32.mxu0 0.0
      %3303 = vmatmul.mubr.f32.gmra.mrb[0].mxu0 %v3108
      %v3304 = vpop.f32.mrb[0].mxu0
      %v3305 = vadd.f32 0.0, %v3304
      %v3306 = vpop.f32.mrb[0].mxu0
      %3307 = vmatprep.mubr.f32.mxu0 0.0
      %3308 = vmatmul.mubr.f32.gmra.mrb[0].mxu0 %v3111
      %v3309 = vpop.f32.mrb[0].mxu0
      %v3310 = vadd.f32 0.0, %v3309
      %v3311 = vpop.f32.mrb[0].mxu0
      %3312 = vmatprep.mubr.f32.mxu0 0.0
      %3313 = vmatmul.mubr.f32.gmra.mrb[0].mxu0 %v3114
      %v3314 = vpop.f32.mrb[0].mxu0
      %v3315 = vadd.f32 0.0, %v3314
      %v3316 = vpop.f32.mrb[0].mxu0
      %3317 = vmatprep.mubr.f32.mxu0 0.0
      %3318 = vmatmul.mubr.f32.gmra.mrb[0].mxu0 %v3117
      %v3319 = vpop.f32.mrb[0].mxu0
      %v3320 = vadd.f32 0.0, %v3319
      %v3321 = vpop.f32.mrb[0].mxu0
      %3322 = vmatprep.mubr.f32.mxu0 0.0
      %3323 = vmatmul.mubr.f32.gmra.mrb[0].mxu0 %v3120
      %v3324 = vpop.f32.mrb[0].mxu0
      %v3325 = vadd.f32 0.0, %v3324
      %v3326 = vpop.f32.mrb[0].mxu0
      %3327 = vmatprep.mubr.f32.mxu0 0.0
      %3328 = vmatmul.mubr.f32.gmra.mrb[0].mxu0 %v3123
      %v3329 = vpop.f32.mrb[0].mxu0
      %v3330 = vadd.f32 0.0, %v3329
      %v3331 = vpop.f32.mrb[0].mxu0
      %3332 = vmatprep.mubr.f32.mxu0 0.0
      %3333 = vmatmul.mubr.f32.gmra.mrb[0].mxu0 %v3126
      %v3334 = vpop.f32.mrb[0].mxu0
      %v3335 = vadd.f32 0.0, %v3334
      %v3336 = vpop.f32.mrb[0].mxu0
      %3337 = vmatprep.mubr.f32.mxu0 0.0
      %3338 = vmatmul.mubr.f32.gmra.mrb[0].mxu0 %v3129
      %v3339 = vpop.f32.mrb[0].mxu0
      %v3340 = vadd.f32 0.0, %v3339
      %v3341 = vpop.f32.mrb[0].mxu0
      %3342 = vmatprep.mubr.f32.mxu0 0.0
      %3343 = vmatmul.mubr.f32.gmra.mrb[0].mxu0 %v3132
      %v3344 = vpop.f32.mrb[0].mxu0
      %v3345 = vadd.f32 0.0, %v3344
      %v3346 = vpop.f32.mrb[0].mxu0
      %3347 = vmatprep.mubr.f32.mxu0 0.0
      %3348 = vmatmul.mubr.f32.gmra.mrb[0].mxu0 %v3135
      %v3349 = vpop.f32.mrb[0].mxu0
      %v3350 = vadd.f32 0.0, %v3349
      %v3351 = vpop.f32.mrb[0].mxu0
      %3352 = vmatprep.mubr.f32.mxu0 0.0
      %3353 = vmatmul.mubr.f32.gmra.mrb[0].mxu0 %v3138
      %v3354 = vpop.f32.mrb[0].mxu0
      %v3355 = vadd.f32 0.0, %v3354
      %v3356 = vpop.f32.mrb[0].mxu0
      %3357 = vmatprep.mubr.f32.mxu0 0.0
      %3358 = vmatmul.mubr.f32.gmra.mrb[0].mxu0 %v3141
      %v3359 = vpop.f32.mrb[0].mxu0
      %v3360 = vadd.f32 0.0, %v3359
      %v3361 = vpop.f32.mrb[0].mxu0
      %3362 = vmatprep.mubr.f32.mxu0 0.0
      %3363 = vmatmul.mubr.f32.gmra.mrb[0].mxu0 %v3144
      %v3364 = vpop.f32.mrb[0].mxu0
      %v3365 = vadd.f32 0.0, %v3364
      %v3366 = vpop.f32.mrb[0].mxu0
      %3367 = vmatprep.mubr.f32.mxu0 0.0
      %3368 = vmatmul.mubr.f32.gmra.mrb[0].mxu0 %v3147
      %v3369 = vpop.f32.mrb[0].mxu0
      %v3370 = vadd.f32 0.0, %v3369
      %v3371 = vpop.f32.mrb[0].mxu0
      %3372 = vmatprep.mubr.f32.mxu0 0.0
      %3373 = vmatmul.mubr.f32.gmra.mrb[0].mxu0 %v3150
      %v3374 = vpop.f32.mrb[0].mxu0
      %v3375 = vadd.f32 0.0, %v3374
      %v3376 = vpop.f32.mrb[0].mxu0
      %3377 = vmatprep.mubr.f32.mxu0 0.0
      %3378 = vmatmul.mubr.f32.gmra.mrb[0].mxu0 %v3153
      %v3379 = vpop.f32.mrb[0].mxu0
      %v3380 = vadd.f32 0.0, %v3379
      %v3381 = vpop.f32.mrb[0].mxu0
      %3382 = vdwg.mxu0
      %v3383 = vld [vmem:[#allocation3] sm:$0xff]
      %v3384 = vld [vmem:[#allocation3 + $0x8] sm:$0xff]
      %v3385 = vld [vmem:[#allocation3 + $0x10] sm:$0xff]
      %v3386 = vld [vmem:[#allocation3 + $0x18] sm:$0xff]
      %v3387 = vld [vmem:[#allocation3 + $0x20] sm:$0xff]
      %v3388 = vld [vmem:[#allocation3 + $0x28] sm:$0xff]
      %v3389 = vld [vmem:[#allocation3 + $0x30] sm:$0xff]
      %v3390 = vld [vmem:[#allocation3 + $0x38] sm:$0xff]
      %v3391 = vld [vmem:[#allocation3 + $0x40] sm:$0xff]
      %v3392 = vld [vmem:[#allocation3 + $0x48] sm:$0xff]
      %v3393 = vld [vmem:[#allocation3 + $0x50] sm:$0xff]
      %v3394 = vld [vmem:[#allocation3 + $0x58] sm:$0xff]
      %v3395 = vld [vmem:[#allocation3 + $0x60] sm:$0xff]
      %v3396 = vld [vmem:[#allocation3 + $0x68] sm:$0xff]
      %v3397 = vld [vmem:[#allocation3 + $0x70] sm:$0xff]
      %v3398 = vld [vmem:[#allocation3 + $0x78] sm:$0xff]
      %v3399 = vld [vmem:[#allocation3 + $0x80] sm:$0xff]
      %v3400 = vld [vmem:[#allocation3 + $0x88] sm:$0xff]
      %v3401 = vld [vmem:[#allocation3 + $0x90] sm:$0xff]
      %v3402 = vld [vmem:[#allocation3 + $0x98] sm:$0xff]
      %v3403 = vld [vmem:[#allocation3 + $0xa0] sm:$0xff]
      %v3404 = vld [vmem:[#allocation3 + $0xa8] sm:$0xff]
      %v3405 = vld [vmem:[#allocation3 + $0xb0] sm:$0xff]
      %v3406 = vld [vmem:[#allocation3 + $0xb8] sm:$0xff]
      %v3407 = vld [vmem:[#allocation3 + $0xc0] sm:$0xff]
      %v3408 = vld [vmem:[#allocation3 + $0xc8] sm:$0xff]
      %v3409 = vld [vmem:[#allocation3 + $0xd0] sm:$0xff]
      %v3410 = vld [vmem:[#allocation3 + $0xd8] sm:$0xff]
      %v3411 = vld [vmem:[#allocation3 + $0xe0] sm:$0xff]
      %v3412 = vld [vmem:[#allocation3 + $0xe8] sm:$0xff]
      %v3413 = vld [vmem:[#allocation3 + $0xf0] sm:$0xff]
      %v3414 = vld [vmem:[#allocation3 + $0xf8] sm:$0xff]
      %v3415 = vadd.f32 %v3383, %v3225
      %v3416 = vadd.f32 %v3384, %v3230
      %v3417 = vadd.f32 %v3385, %v3235
      %v3418 = vadd.f32 %v3386, %v3240
      %v3419 = vadd.f32 %v3387, %v3245
      %v3420 = vadd.f32 %v3388, %v3250
      %v3421 = vadd.f32 %v3389, %v3255
      %v3422 = vadd.f32 %v3390, %v3260
      %v3423 = vadd.f32 %v3391, %v3265
      %v3424 = vadd.f32 %v3392, %v3270
      %v3425 = vadd.f32 %v3393, %v3275
      %v3426 = vadd.f32 %v3394, %v3280
      %v3427 = vadd.f32 %v3395, %v3285
      %v3428 = vadd.f32 %v3396, %v3290
      %v3429 = vadd.f32 %v3397, %v3295
      %v3430 = vadd.f32 %v3398, %v3300
      %v3431 = vadd.f32 %v3399, %v3305
      %v3432 = vadd.f32 %v3400, %v3310
      %v3433 = vadd.f32 %v3401, %v3315
      %v3434 = vadd.f32 %v3402, %v3320
      %v3435 = vadd.f32 %v3403, %v3325
      %v3436 = vadd.f32 %v3404, %v3330
      %v3437 = vadd.f32 %v3405, %v3335
      %v3438 = vadd.f32 %v3406, %v3340
      %v3439 = vadd.f32 %v3407, %v3345
      %v3440 = vadd.f32 %v3408, %v3350
      %v3441 = vadd.f32 %v3409, %v3355
      %v3442 = vadd.f32 %v3410, %v3360
      %v3443 = vadd.f32 %v3411, %v3365
      %v3444 = vadd.f32 %v3412, %v3370
      %v3445 = vadd.f32 %v3413, %v3375
      %v3446 = vadd.f32 %v3414, %v3380
      %3447 = vst.msk [vmem:[#allocation3] sm:$0xff] %vm721, %v3415
      %3448 = vst.msk [vmem:[#allocation3 + $0x8] sm:$0xff] %vm721, %v3416
      %3449 = vst.msk [vmem:[#allocation3 + $0x10] sm:$0xff] %vm721, %v3417
      %3450 = vst.msk [vmem:[#allocation3 + $0x18] sm:$0xff] %vm721, %v3418
      %3451 = vst.msk [vmem:[#allocation3 + $0x20] sm:$0xff] %vm721, %v3419
      %3452 = vst.msk [vmem:[#allocation3 + $0x28] sm:$0xff] %vm721, %v3420
      %3453 = vst.msk [vmem:[#allocation3 + $0x30] sm:$0xff] %vm721, %v3421
      %3454 = vst.msk [vmem:[#allocation3 + $0x38] sm:$0xff] %vm721, %v3422
      %3455 = vst.msk [vmem:[#allocation3 + $0x40] sm:$0xff] %vm721, %v3423
      %3456 = vst.msk [vmem:[#allocation3 + $0x48] sm:$0xff] %vm721, %v3424
      %3457 = vst.msk [vmem:[#allocation3 + $0x50] sm:$0xff] %vm721, %v3425
      %3458 = vst.msk [vmem:[#allocation3 + $0x58] sm:$0xff] %vm721, %v3426
      %3459 = vst.msk [vmem:[#allocation3 + $0x60] sm:$0xff] %vm721, %v3427
      %3460 = vst.msk [vmem:[#allocation3 + $0x68] sm:$0xff] %vm721, %v3428
      %3461 = vst.msk [vmem:[#allocation3 + $0x70] sm:$0xff] %vm721, %v3429
      %3462 = vst.msk [vmem:[#allocation3 + $0x78] sm:$0xff] %vm721, %v3430
      %3463 = vst.msk [vmem:[#allocation3 + $0x80] sm:$0xff] %vm721, %v3431
      %3464 = vst.msk [vmem:[#allocation3 + $0x88] sm:$0xff] %vm721, %v3432
      %3465 = vst.msk [vmem:[#allocation3 + $0x90] sm:$0xff] %vm721, %v3433
      %3466 = vst.msk [vmem:[#allocation3 + $0x98] sm:$0xff] %vm721, %v3434
      %3467 = vst.msk [vmem:[#allocation3 + $0xa0] sm:$0xff] %vm721, %v3435
      %3468 = vst.msk [vmem:[#allocation3 + $0xa8] sm:$0xff] %vm721, %v3436
      %3469 = vst.msk [vmem:[#allocation3 + $0xb0] sm:$0xff] %vm721, %v3437
      %3470 = vst.msk [vmem:[#allocation3 + $0xb8] sm:$0xff] %vm721, %v3438
      %3471 = vst.msk [vmem:[#allocation3 + $0xc0] sm:$0xff] %vm721, %v3439
      %3472 = vst.msk [vmem:[#allocation3 + $0xc8] sm:$0xff] %vm721, %v3440
      %3473 = vst.msk [vmem:[#allocation3 + $0xd0] sm:$0xff] %vm721, %v3441
      %3474 = vst.msk [vmem:[#allocation3 + $0xd8] sm:$0xff] %vm721, %v3442
      %3475 = vst.msk [vmem:[#allocation3 + $0xe0] sm:$0xff] %vm721, %v3443
      %3476 = vst.msk [vmem:[#allocation3 + $0xe8] sm:$0xff] %vm721, %v3444
      %3477 = vst.msk [vmem:[#allocation3 + $0xf0] sm:$0xff] %vm721, %v3445
      %3478 = vst.msk [vmem:[#allocation3 + $0xf8] sm:$0xff] %vm721, %v3446
      %v3479 = vld [vmem:[%s3024 + $0x1] sm:$0xff]
      %v3480 = vld [vmem:[%s3024 + $0x9] sm:$0xff]
      %v3481 = vld [vmem:[%s3024 + $0x19] sm:$0xff]
      %v3482 = vld [vmem:[%s3024 + $0x21] sm:$0xff]
      %v3483 = vld [vmem:[%s3024 + $0x31] sm:$0xff]
      %v3484 = vld [vmem:[%s3024 + $0x39] sm:$0xff]
      %v3485 = vld [vmem:[%s3024 + $0x49] sm:$0xff]
      %v3486 = vld [vmem:[%s3024 + $0x51] sm:$0xff]
      %v3487 = vld [vmem:[%s3024 + $0x61] sm:$0xff]
      %v3488 = vld [vmem:[%s3024 + $0x69] sm:$0xff]
      %v3489 = vld [vmem:[%s3024 + $0x79] sm:$0xff]
      %v3490 = vld [vmem:[%s3024 + $0x81] sm:$0xff]
      %v3491 = vld [vmem:[%s3024 + $0x91] sm:$0xff]
      %v3492 = vld [vmem:[%s3024 + $0x99] sm:$0xff]
      %v3493 = vld [vmem:[%s3024 + $0xa9] sm:$0xff]
      %v3494 = vld [vmem:[%s3024 + $0xb1] sm:$0xff]
      %v3495 = vld [vmem:[%s3024 + $0xc1] sm:$0xff]
      %v3496 = vld [vmem:[%s3024 + $0xc9] sm:$0xff]
      %v3497 = vld [vmem:[%s3024 + $0xd9] sm:$0xff]
      %v3498 = vld [vmem:[%s3024 + $0xe1] sm:$0xff]
      %v3499 = vld [vmem:[%s3024 + $0xf1] sm:$0xff]
      %v3500 = vld [vmem:[%s3024 + $0xf9] sm:$0xff]
      %v3501 = vld [vmem:[%s3024 + $0x109] sm:$0xff]
      %v3502 = vld [vmem:[%s3024 + $0x111] sm:$0xff]
      %v3503 = vld [vmem:[%s3024 + $0x121] sm:$0xff]
      %v3504 = vld [vmem:[%s3024 + $0x129] sm:$0xff]
      %v3505 = vld [vmem:[%s3024 + $0x139] sm:$0xff]
      %v3506 = vld [vmem:[%s3024 + $0x141] sm:$0xff]
      %v3507 = vld [vmem:[%s3024 + $0x151] sm:$0xff]
      %v3508 = vld [vmem:[%s3024 + $0x159] sm:$0xff]
      %v3509 = vld [vmem:[%s3024 + $0x169] sm:$0xff]
      %v3510 = vld [vmem:[%s3024 + $0x171] sm:$0xff]
      %s3511 = scalar_lea.vmem %s1, 28
      %v3512 = vld [vmem:[%s3511] sm:$0xf]
      %v3514 = vsel %vm242, %v3479, 0
      %v3517 = vsel %vm242, %v3480, 0
      %v3520 = vsel %vm242, %v3481, 0
      %v3523 = vsel %vm242, %v3482, 0
      %v3526 = vsel %vm242, %v3483, 0
      %v3529 = vsel %vm242, %v3484, 0
      %v3532 = vsel %vm242, %v3485, 0
      %v3535 = vsel %vm242, %v3486, 0
      %v3538 = vsel %vm242, %v3487, 0
      %v3541 = vsel %vm242, %v3488, 0
      %v3544 = vsel %vm242, %v3489, 0
      %v3547 = vsel %vm242, %v3490, 0
      %v3550 = vsel %vm242, %v3491, 0
      %v3553 = vsel %vm242, %v3492, 0
      %v3556 = vsel %vm242, %v3493, 0
      %v3559 = vsel %vm242, %v3494, 0
      %v3562 = vsel %vm242, %v3495, 0
      %v3565 = vsel %vm242, %v3496, 0
      %v3568 = vsel %vm242, %v3497, 0
      %v3571 = vsel %vm242, %v3498, 0
      %v3574 = vsel %vm242, %v3499, 0
      %v3577 = vsel %vm242, %v3500, 0
      %v3580 = vsel %vm242, %v3501, 0
      %v3583 = vsel %vm242, %v3502, 0
      %v3586 = vsel %vm242, %v3503, 0
      %v3589 = vsel %vm242, %v3504, 0
      %v3592 = vsel %vm242, %v3505, 0
      %v3595 = vsel %vm242, %v3506, 0
      %v3598 = vsel %vm242, %v3507, 0
      %v3601 = vsel %vm242, %v3508, 0
      %v3604 = vsel %vm242, %v3509, 0
      %v3607 = vsel %vm242, %v3510, 0
      %v3610 = vsel %vm492, %v3512, 0
      %3612 = vmatprep.subr.mxu0 0.0
      %3613 = vmatpush1.msra.mxu0 %v3610
      %3614 = vmatprep.subr.mxu0 0.0
      %3615 = vmatpush1.msra.mxu0 0.0
      %3616 = vmatprep.subr.mxu0 0.0
      %3617 = vmatpush1.msra.mxu0 0.0
      %3618 = vmatprep.subr.mxu0 0.0
      %3619 = vmatpush1.msra.mxu0 0.0
      %3620 = vmatprep.subr.mxu0 0.0
      %3621 = vmatpush1.msra.mxu0 0.0
      %3622 = vmatprep.subr.mxu0 0.0
      %3623 = vmatpush1.msra.mxu0 0.0
      %3624 = vmatprep.subr.mxu0 0.0
      %3625 = vmatpush1.msra.mxu0 0.0
      %3626 = vmatprep.subr.mxu0 0.0
      %3627 = vmatpush1.msra.mxu0 0.0
      %3628 = vmatprep.subr.mxu0 0.0
      %3629 = vmatpush1.msra.mxu0 0.0
      %3630 = vmatprep.subr.mxu0 0.0
      %3631 = vmatpush1.msra.mxu0 0.0
      %3632 = vmatprep.subr.mxu0 0.0
      %3633 = vmatpush1.msra.mxu0 0.0
      %3634 = vmatprep.subr.mxu0 0.0
      %3635 = vmatpush1.msra.mxu0 0.0
      %3636 = vmatprep.subr.mxu0 0.0
      %3637 = vmatpush1.msra.mxu0 0.0
      %3638 = vmatprep.subr.mxu0 0.0
      %3639 = vmatpush1.msra.mxu0 0.0
      %3640 = vmatprep.subr.mxu0 0.0
      %3641 = vmatpush1.msra.mxu0 0.0
      %3642 = vmatprep.subr.mxu0 0.0
      %3643 = vmatpush1.msra.mxu0 0.0
      %3644 = vmatprep.subr.mxu0 0.0
      %3645 = vmatpush1.msra.mxu0 0.0
      %3646 = vmatprep.subr.mxu0 0.0
      %3647 = vmatpush1.msra.mxu0 0.0
      %3648 = vmatprep.subr.mxu0 0.0
      %3649 = vmatpush1.msra.mxu0 0.0
      %3650 = vmatprep.subr.mxu0 0.0
      %3651 = vmatpush1.msra.mxu0 0.0
      %3652 = vmatprep.subr.mxu0 0.0
      %3653 = vmatpush1.msra.mxu0 0.0
      %3654 = vmatprep.subr.mxu0 0.0
      %3655 = vmatpush1.msra.mxu0 0.0
      %3656 = vmatprep.subr.mxu0 0.0
      %3657 = vmatpush1.msra.mxu0 0.0
      %3658 = vmatprep.subr.mxu0 0.0
      %3659 = vmatpush1.msra.mxu0 0.0
      %3660 = vmatprep.subr.mxu0 0.0
      %3661 = vmatpush1.msra.mxu0 0.0
      %3662 = vmatprep.subr.mxu0 0.0
      %3663 = vmatpush1.msra.mxu0 0.0
      %3664 = vmatprep.subr.mxu0 0.0
      %3665 = vmatpush1.msra.mxu0 0.0
      %3666 = vmatprep.subr.mxu0 0.0
      %3667 = vmatpush1.msra.mxu0 0.0
      %3668 = vmatprep.subr.mxu0 0.0
      %3669 = vmatpush1.msra.mxu0 0.0
      %3670 = vmatprep.subr.mxu0 0.0
      %3671 = vmatpush1.msra.mxu0 0.0
      %3672 = vmatprep.subr.mxu0 0.0
      %3673 = vmatpush1.msra.mxu0 0.0
      %3674 = vmatprep.subr.mxu0 0.0
      %3675 = vmatpush1.msra.mxu0 0.0
      %3676 = vmatprep.mubr.f32.mxu0 0.0
      %3677 = vmatmul.mubr.f32.gmra.mrb[0].mxu0 %v3514
      %v3678 = vpop.f32.mrb[0].mxu0
      %v3679 = vadd.f32 0.0, %v3678
      %v3680 = vpop.f32.mrb[0].mxu0
      %3681 = vmatprep.mubr.f32.mxu0 0.0
      %3682 = vmatmul.mubr.f32.gmra.mrb[0].mxu0 %v3517
      %v3683 = vpop.f32.mrb[0].mxu0
      %v3684 = vadd.f32 0.0, %v3683
      %v3685 = vpop.f32.mrb[0].mxu0
      %3686 = vmatprep.mubr.f32.mxu0 0.0
      %3687 = vmatmul.mubr.f32.gmra.mrb[0].mxu0 %v3520
      %v3688 = vpop.f32.mrb[0].mxu0
      %v3689 = vadd.f32 0.0, %v3688
      %v3690 = vpop.f32.mrb[0].mxu0
      %3691 = vmatprep.mubr.f32.mxu0 0.0
      %3692 = vmatmul.mubr.f32.gmra.mrb[0].mxu0 %v3523
      %v3693 = vpop.f32.mrb[0].mxu0
      %v3694 = vadd.f32 0.0, %v3693
      %v3695 = vpop.f32.mrb[0].mxu0
      %3696 = vmatprep.mubr.f32.mxu0 0.0
      %3697 = vmatmul.mubr.f32.gmra.mrb[0].mxu0 %v3526
      %v3698 = vpop.f32.mrb[0].mxu0
      %v3699 = vadd.f32 0.0, %v3698
      %v3700 = vpop.f32.mrb[0].mxu0
      %3701 = vmatprep.mubr.f32.mxu0 0.0
      %3702 = vmatmul.mubr.f32.gmra.mrb[0].mxu0 %v3529
      %v3703 = vpop.f32.mrb[0].mxu0
      %v3704 = vadd.f32 0.0, %v3703
      %v3705 = vpop.f32.mrb[0].mxu0
      %3706 = vmatprep.mubr.f32.mxu0 0.0
      %3707 = vmatmul.mubr.f32.gmra.mrb[0].mxu0 %v3532
      %v3708 = vpop.f32.mrb[0].mxu0
      %v3709 = vadd.f32 0.0, %v3708
      %v3710 = vpop.f32.mrb[0].mxu0
      %3711 = vmatprep.mubr.f32.mxu0 0.0
      %3712 = vmatmul.mubr.f32.gmra.mrb[0].mxu0 %v3535
      %v3713 = vpop.f32.mrb[0].mxu0
      %v3714 = vadd.f32 0.0, %v3713
      %v3715 = vpop.f32.mrb[0].mxu0
      %3716 = vmatprep.mubr.f32.mxu0 0.0
      %3717 = vmatmul.mubr.f32.gmra.mrb[0].mxu0 %v3538
      %v3718 = vpop.f32.mrb[0].mxu0
      %v3719 = vadd.f32 0.0, %v3718
      %v3720 = vpop.f32.mrb[0].mxu0
      %3721 = vmatprep.mubr.f32.mxu0 0.0
      %3722 = vmatmul.mubr.f32.gmra.mrb[0].mxu0 %v3541
      %v3723 = vpop.f32.mrb[0].mxu0
      %v3724 = vadd.f32 0.0, %v3723
      %v3725 = vpop.f32.mrb[0].mxu0
      %3726 = vmatprep.mubr.f32.mxu0 0.0
      %3727 = vmatmul.mubr.f32.gmra.mrb[0].mxu0 %v3544
      %v3728 = vpop.f32.mrb[0].mxu0
      %v3729 = vadd.f32 0.0, %v3728
      %v3730 = vpop.f32.mrb[0].mxu0
      %3731 = vmatprep.mubr.f32.mxu0 0.0
      %3732 = vmatmul.mubr.f32.gmra.mrb[0].mxu0 %v3547
      %v3733 = vpop.f32.mrb[0].mxu0
      %v3734 = vadd.f32 0.0, %v3733
      %v3735 = vpop.f32.mrb[0].mxu0
      %3736 = vmatprep.mubr.f32.mxu0 0.0
      %3737 = vmatmul.mubr.f32.gmra.mrb[0].mxu0 %v3550
      %v3738 = vpop.f32.mrb[0].mxu0
      %v3739 = vadd.f32 0.0, %v3738
      %v3740 = vpop.f32.mrb[0].mxu0
      %3741 = vmatprep.mubr.f32.mxu0 0.0
      %3742 = vmatmul.mubr.f32.gmra.mrb[0].mxu0 %v3553
      %v3743 = vpop.f32.mrb[0].mxu0
      %v3744 = vadd.f32 0.0, %v3743
      %v3745 = vpop.f32.mrb[0].mxu0
      %3746 = vmatprep.mubr.f32.mxu0 0.0
      %3747 = vmatmul.mubr.f32.gmra.mrb[0].mxu0 %v3556
      %v3748 = vpop.f32.mrb[0].mxu0
      %v3749 = vadd.f32 0.0, %v3748
      %v3750 = vpop.f32.mrb[0].mxu0
      %3751 = vmatprep.mubr.f32.mxu0 0.0
      %3752 = vmatmul.mubr.f32.gmra.mrb[0].mxu0 %v3559
      %v3753 = vpop.f32.mrb[0].mxu0
      %v3754 = vadd.f32 0.0, %v3753
      %v3755 = vpop.f32.mrb[0].mxu0
      %3756 = vmatprep.mubr.f32.mxu0 0.0
      %3757 = vmatmul.mubr.f32.gmra.mrb[0].mxu0 %v3562
      %v3758 = vpop.f32.mrb[0].mxu0
      %v3759 = vadd.f32 0.0, %v3758
      %v3760 = vpop.f32.mrb[0].mxu0
      %3761 = vmatprep.mubr.f32.mxu0 0.0
      %3762 = vmatmul.mubr.f32.gmra.mrb[0].mxu0 %v3565
      %v3763 = vpop.f32.mrb[0].mxu0
      %v3764 = vadd.f32 0.0, %v3763
      %v3765 = vpop.f32.mrb[0].mxu0
      %3766 = vmatprep.mubr.f32.mxu0 0.0
      %3767 = vmatmul.mubr.f32.gmra.mrb[0].mxu0 %v3568
      %v3768 = vpop.f32.mrb[0].mxu0
      %v3769 = vadd.f32 0.0, %v3768
      %v3770 = vpop.f32.mrb[0].mxu0
      %3771 = vmatprep.mubr.f32.mxu0 0.0
      %3772 = vmatmul.mubr.f32.gmra.mrb[0].mxu0 %v3571
      %v3773 = vpop.f32.mrb[0].mxu0
      %v3774 = vadd.f32 0.0, %v3773
      %v3775 = vpop.f32.mrb[0].mxu0
      %3776 = vmatprep.mubr.f32.mxu0 0.0
      %3777 = vmatmul.mubr.f32.gmra.mrb[0].mxu0 %v3574
      %v3778 = vpop.f32.mrb[0].mxu0
      %v3779 = vadd.f32 0.0, %v3778
      %v3780 = vpop.f32.mrb[0].mxu0
      %3781 = vmatprep.mubr.f32.mxu0 0.0
      %3782 = vmatmul.mubr.f32.gmra.mrb[0].mxu0 %v3577
      %v3783 = vpop.f32.mrb[0].mxu0
      %v3784 = vadd.f32 0.0, %v3783
      %v3785 = vpop.f32.mrb[0].mxu0
      %3786 = vmatprep.mubr.f32.mxu0 0.0
      %3787 = vmatmul.mubr.f32.gmra.mrb[0].mxu0 %v3580
      %v3788 = vpop.f32.mrb[0].mxu0
      %v3789 = vadd.f32 0.0, %v3788
      %v3790 = vpop.f32.mrb[0].mxu0
      %3791 = vmatprep.mubr.f32.mxu0 0.0
      %3792 = vmatmul.mubr.f32.gmra.mrb[0].mxu0 %v3583
      %v3793 = vpop.f32.mrb[0].mxu0
      %v3794 = vadd.f32 0.0, %v3793
      %v3795 = vpop.f32.mrb[0].mxu0
      %3796 = vmatprep.mubr.f32.mxu0 0.0
      %3797 = vmatmul.mubr.f32.gmra.mrb[0].mxu0 %v3586
      %v3798 = vpop.f32.mrb[0].mxu0
      %v3799 = vadd.f32 0.0, %v3798
      %v3800 = vpop.f32.mrb[0].mxu0
      %3801 = vmatprep.mubr.f32.mxu0 0.0
      %3802 = vmatmul.mubr.f32.gmra.mrb[0].mxu0 %v3589
      %v3803 = vpop.f32.mrb[0].mxu0
      %v3804 = vadd.f32 0.0, %v3803
      %v3805 = vpop.f32.mrb[0].mxu0
      %3806 = vmatprep.mubr.f32.mxu0 0.0
      %3807 = vmatmul.mubr.f32.gmra.mrb[0].mxu0 %v3592
      %v3808 = vpop.f32.mrb[0].mxu0
      %v3809 = vadd.f32 0.0, %v3808
      %v3810 = vpop.f32.mrb[0].mxu0
      %3811 = vmatprep.mubr.f32.mxu0 0.0
      %3812 = vmatmul.mubr.f32.gmra.mrb[0].mxu0 %v3595
      %v3813 = vpop.f32.mrb[0].mxu0
      %v3814 = vadd.f32 0.0, %v3813
      %v3815 = vpop.f32.mrb[0].mxu0
      %3816 = vmatprep.mubr.f32.mxu0 0.0
      %3817 = vmatmul.mubr.f32.gmra.mrb[0].mxu0 %v3598
      %v3818 = vpop.f32.mrb[0].mxu0
      %v3819 = vadd.f32 0.0, %v3818
      %v3820 = vpop.f32.mrb[0].mxu0
      %3821 = vmatprep.mubr.f32.mxu0 0.0
      %3822 = vmatmul.mubr.f32.gmra.mrb[0].mxu0 %v3601
      %v3823 = vpop.f32.mrb[0].mxu0
      %v3824 = vadd.f32 0.0, %v3823
      %v3825 = vpop.f32.mrb[0].mxu0
      %3826 = vmatprep.mubr.f32.mxu0 0.0
      %3827 = vmatmul.mubr.f32.gmra.mrb[0].mxu0 %v3604
      %v3828 = vpop.f32.mrb[0].mxu0
      %v3829 = vadd.f32 0.0, %v3828
      %v3830 = vpop.f32.mrb[0].mxu0
      %3831 = vmatprep.mubr.f32.mxu0 0.0
      %3832 = vmatmul.mubr.f32.gmra.mrb[0].mxu0 %v3607
      %v3833 = vpop.f32.mrb[0].mxu0
      %v3834 = vadd.f32 0.0, %v3833
      %v3835 = vpop.f32.mrb[0].mxu0
      %3836 = vdwg.mxu0
      %v3837 = vld [vmem:[#allocation3] sm:$0xff]
      %v3838 = vld [vmem:[#allocation3 + $0x8] sm:$0xff]
      %v3839 = vld [vmem:[#allocation3 + $0x10] sm:$0xff]
      %v3840 = vld [vmem:[#allocation3 + $0x18] sm:$0xff]
      %v3841 = vld [vmem:[#allocation3 + $0x20] sm:$0xff]
      %v3842 = vld [vmem:[#allocation3 + $0x28] sm:$0xff]
      %v3843 = vld [vmem:[#allocation3 + $0x30] sm:$0xff]
      %v3844 = vld [vmem:[#allocation3 + $0x38] sm:$0xff]
      %v3845 = vld [vmem:[#allocation3 + $0x40] sm:$0xff]
      %v3846 = vld [vmem:[#allocation3 + $0x48] sm:$0xff]
      %v3847 = vld [vmem:[#allocation3 + $0x50] sm:$0xff]
      %v3848 = vld [vmem:[#allocation3 + $0x58] sm:$0xff]
      %v3849 = vld [vmem:[#allocation3 + $0x60] sm:$0xff]
      %v3850 = vld [vmem:[#allocation3 + $0x68] sm:$0xff]
      %v3851 = vld [vmem:[#allocation3 + $0x70] sm:$0xff]
      %v3852 = vld [vmem:[#allocation3 + $0x78] sm:$0xff]
      %v3853 = vld [vmem:[#allocation3 + $0x80] sm:$0xff]
      %v3854 = vld [vmem:[#allocation3 + $0x88] sm:$0xff]
      %v3855 = vld [vmem:[#allocation3 + $0x90] sm:$0xff]
      %v3856 = vld [vmem:[#allocation3 + $0x98] sm:$0xff]
      %v3857 = vld [vmem:[#allocation3 + $0xa0] sm:$0xff]
      %v3858 = vld [vmem:[#allocation3 + $0xa8] sm:$0xff]
      %v3859 = vld [vmem:[#allocation3 + $0xb0] sm:$0xff]
      %v3860 = vld [vmem:[#allocation3 + $0xb8] sm:$0xff]
      %v3861 = vld [vmem:[#allocation3 + $0xc0] sm:$0xff]
      %v3862 = vld [vmem:[#allocation3 + $0xc8] sm:$0xff]
      %v3863 = vld [vmem:[#allocation3 + $0xd0] sm:$0xff]
      %v3864 = vld [vmem:[#allocation3 + $0xd8] sm:$0xff]
      %v3865 = vld [vmem:[#allocation3 + $0xe0] sm:$0xff]
      %v3866 = vld [vmem:[#allocation3 + $0xe8] sm:$0xff]
      %v3867 = vld [vmem:[#allocation3 + $0xf0] sm:$0xff]
      %v3868 = vld [vmem:[#allocation3 + $0xf8] sm:$0xff]
      %v3869 = vadd.f32 %v3837, %v3679
      %v3870 = vadd.f32 %v3838, %v3684
      %v3871 = vadd.f32 %v3839, %v3689
      %v3872 = vadd.f32 %v3840, %v3694
      %v3873 = vadd.f32 %v3841, %v3699
      %v3874 = vadd.f32 %v3842, %v3704
      %v3875 = vadd.f32 %v3843, %v3709
      %v3876 = vadd.f32 %v3844, %v3714
      %v3877 = vadd.f32 %v3845, %v3719
      %v3878 = vadd.f32 %v3846, %v3724
      %v3879 = vadd.f32 %v3847, %v3729
      %v3880 = vadd.f32 %v3848, %v3734
      %v3881 = vadd.f32 %v3849, %v3739
      %v3882 = vadd.f32 %v3850, %v3744
      %v3883 = vadd.f32 %v3851, %v3749
      %v3884 = vadd.f32 %v3852, %v3754
      %v3885 = vadd.f32 %v3853, %v3759
      %v3886 = vadd.f32 %v3854, %v3764
      %v3887 = vadd.f32 %v3855, %v3769
      %v3888 = vadd.f32 %v3856, %v3774
      %v3889 = vadd.f32 %v3857, %v3779
      %v3890 = vadd.f32 %v3858, %v3784
      %v3891 = vadd.f32 %v3859, %v3789
      %v3892 = vadd.f32 %v3860, %v3794
      %v3893 = vadd.f32 %v3861, %v3799
      %v3894 = vadd.f32 %v3862, %v3804
      %v3895 = vadd.f32 %v3863, %v3809
      %v3896 = vadd.f32 %v3864, %v3814
      %v3897 = vadd.f32 %v3865, %v3819
      %v3898 = vadd.f32 %v3866, %v3824
      %v3899 = vadd.f32 %v3867, %v3829
      %v3900 = vadd.f32 %v3868, %v3834
      %3901 = vst.msk [vmem:[#allocation3] sm:$0xff] %vm721, %v3869
      %3902 = vst.msk [vmem:[#allocation3 + $0x8] sm:$0xff] %vm721, %v3870
      %3903 = vst.msk [vmem:[#allocation3 + $0x10] sm:$0xff] %vm721, %v3871
      %3904 = vst.msk [vmem:[#allocation3 + $0x18] sm:$0xff] %vm721, %v3872
      %3905 = vst.msk [vmem:[#allocation3 + $0x20] sm:$0xff] %vm721, %v3873
      %3906 = vst.msk [vmem:[#allocation3 + $0x28] sm:$0xff] %vm721, %v3874
      %3907 = vst.msk [vmem:[#allocation3 + $0x30] sm:$0xff] %vm721, %v3875
      %3908 = vst.msk [vmem:[#allocation3 + $0x38] sm:$0xff] %vm721, %v3876
      %3909 = vst.msk [vmem:[#allocation3 + $0x40] sm:$0xff] %vm721, %v3877
      %3910 = vst.msk [vmem:[#allocation3 + $0x48] sm:$0xff] %vm721, %v3878
      %3911 = vst.msk [vmem:[#allocation3 + $0x50] sm:$0xff] %vm721, %v3879
      %3912 = vst.msk [vmem:[#allocation3 + $0x58] sm:$0xff] %vm721, %v3880
      %3913 = vst.msk [vmem:[#allocation3 + $0x60] sm:$0xff] %vm721, %v3881
      %3914 = vst.msk [vmem:[#allocation3 + $0x68] sm:$0xff] %vm721, %v3882
      %3915 = vst.msk [vmem:[#allocation3 + $0x70] sm:$0xff] %vm721, %v3883
      %3916 = vst.msk [vmem:[#allocation3 + $0x78] sm:$0xff] %vm721, %v3884
      %3917 = vst.msk [vmem:[#allocation3 + $0x80] sm:$0xff] %vm721, %v3885
      %3918 = vst.msk [vmem:[#allocation3 + $0x88] sm:$0xff] %vm721, %v3886
      %3919 = vst.msk [vmem:[#allocation3 + $0x90] sm:$0xff] %vm721, %v3887
      %3920 = vst.msk [vmem:[#allocation3 + $0x98] sm:$0xff] %vm721, %v3888
      %3921 = vst.msk [vmem:[#allocation3 + $0xa0] sm:$0xff] %vm721, %v3889
      %3922 = vst.msk [vmem:[#allocation3 + $0xa8] sm:$0xff] %vm721, %v3890
      %3923 = vst.msk [vmem:[#allocation3 + $0xb0] sm:$0xff] %vm721, %v3891
      %3924 = vst.msk [vmem:[#allocation3 + $0xb8] sm:$0xff] %vm721, %v3892
      %3925 = vst.msk [vmem:[#allocation3 + $0xc0] sm:$0xff] %vm721, %v3893
      %3926 = vst.msk [vmem:[#allocation3 + $0xc8] sm:$0xff] %vm721, %v3894
      %3927 = vst.msk [vmem:[#allocation3 + $0xd0] sm:$0xff] %vm721, %v3895
      %3928 = vst.msk [vmem:[#allocation3 + $0xd8] sm:$0xff] %vm721, %v3896
      %3929 = vst.msk [vmem:[#allocation3 + $0xe0] sm:$0xff] %vm721, %v3897
      %3930 = vst.msk [vmem:[#allocation3 + $0xe8] sm:$0xff] %vm721, %v3898
      %3931 = vst.msk [vmem:[#allocation3 + $0xf0] sm:$0xff] %vm721, %v3899
      %3932 = vst.msk [vmem:[#allocation3 + $0xf8] sm:$0xff] %vm721, %v3900
      %v3933 = vld [vmem:[%s3024 + $0x2] sm:$0xff]
      %v3934 = vld [vmem:[%s3024 + $0xa] sm:$0xff]
      %v3935 = vld [vmem:[%s3024 + $0x1a] sm:$0xff]
      %v3936 = vld [vmem:[%s3024 + $0x22] sm:$0xff]
      %v3937 = vld [vmem:[%s3024 + $0x32] sm:$0xff]
      %v3938 = vld [vmem:[%s3024 + $0x3a] sm:$0xff]
      %v3939 = vld [vmem:[%s3024 + $0x4a] sm:$0xff]
      %v3940 = vld [vmem:[%s3024 + $0x52] sm:$0xff]
      %v3941 = vld [vmem:[%s3024 + $0x62] sm:$0xff]
      %v3942 = vld [vmem:[%s3024 + $0x6a] sm:$0xff]
      %v3943 = vld [vmem:[%s3024 + $0x7a] sm:$0xff]
      %v3944 = vld [vmem:[%s3024 + $0x82] sm:$0xff]
      %v3945 = vld [vmem:[%s3024 + $0x92] sm:$0xff]
      %v3946 = vld [vmem:[%s3024 + $0x9a] sm:$0xff]
      %v3947 = vld [vmem:[%s3024 + $0xaa] sm:$0xff]
      %v3948 = vld [vmem:[%s3024 + $0xb2] sm:$0xff]
      %v3949 = vld [vmem:[%s3024 + $0xc2] sm:$0xff]
      %v3950 = vld [vmem:[%s3024 + $0xca] sm:$0xff]
      %v3951 = vld [vmem:[%s3024 + $0xda] sm:$0xff]
      %v3952 = vld [vmem:[%s3024 + $0xe2] sm:$0xff]
      %v3953 = vld [vmem:[%s3024 + $0xf2] sm:$0xff]
      %v3954 = vld [vmem:[%s3024 + $0xfa] sm:$0xff]
      %v3955 = vld [vmem:[%s3024 + $0x10a] sm:$0xff]
      %v3956 = vld [vmem:[%s3024 + $0x112] sm:$0xff]
      %v3957 = vld [vmem:[%s3024 + $0x122] sm:$0xff]
      %v3958 = vld [vmem:[%s3024 + $0x12a] sm:$0xff]
      %v3959 = vld [vmem:[%s3024 + $0x13a] sm:$0xff]
      %v3960 = vld [vmem:[%s3024 + $0x142] sm:$0xff]
      %v3961 = vld [vmem:[%s3024 + $0x152] sm:$0xff]
      %v3962 = vld [vmem:[%s3024 + $0x15a] sm:$0xff]
      %v3963 = vld [vmem:[%s3024 + $0x16a] sm:$0xff]
      %v3964 = vld [vmem:[%s3024 + $0x172] sm:$0xff]
      %s3965 = scalar_lea.vmem %s1, 32
      %v3966 = vld [vmem:[%s3965] sm:$0xf]
      %v3968 = vsel %vm242, %v3933, 0
      %v3971 = vsel %vm242, %v3934, 0
      %v3974 = vsel %vm242, %v3935, 0
      %v3977 = vsel %vm242, %v3936, 0
      %v3980 = vsel %vm242, %v3937, 0
      %v3983 = vsel %vm242, %v3938, 0
      %v3986 = vsel %vm242, %v3939, 0
      %v3989 = vsel %vm242, %v3940, 0
      %v3992 = vsel %vm242, %v3941, 0
      %v3995 = vsel %vm242, %v3942, 0
      %v3998 = vsel %vm242, %v3943, 0
      %v4001 = vsel %vm242, %v3944, 0
      %v4004 = vsel %vm242, %v3945, 0
      %v4007 = vsel %vm242, %v3946, 0
      %v4010 = vsel %vm242, %v3947, 0
      %v4013 = vsel %vm242, %v3948, 0
      %v4016 = vsel %vm242, %v3949, 0
      %v4019 = vsel %vm242, %v3950, 0
      %v4022 = vsel %vm242, %v3951, 0
      %v4025 = vsel %vm242, %v3952, 0
      %v4028 = vsel %vm242, %v3953, 0
      %v4031 = vsel %vm242, %v3954, 0
      %v4034 = vsel %vm242, %v3955, 0
      %v4037 = vsel %vm242, %v3956, 0
      %v4040 = vsel %vm242, %v3957, 0
      %v4043 = vsel %vm242, %v3958, 0
      %v4046 = vsel %vm242, %v3959, 0
      %v4049 = vsel %vm242, %v3960, 0
      %v4052 = vsel %vm242, %v3961, 0
      %v4055 = vsel %vm242, %v3962, 0
      %v4058 = vsel %vm242, %v3963, 0
      %v4061 = vsel %vm242, %v3964, 0
      %v4064 = vsel %vm492, %v3966, 0
      %4066 = vmatprep.subr.mxu0 0.0
      %4067 = vmatpush1.msra.mxu0 %v4064
      %4068 = vmatprep.subr.mxu0 0.0
      %4069 = vmatpush1.msra.mxu0 0.0
      %4070 = vmatprep.subr.mxu0 0.0
      %4071 = vmatpush1.msra.mxu0 0.0
      %4072 = vmatprep.subr.mxu0 0.0
      %4073 = vmatpush1.msra.mxu0 0.0
      %4074 = vmatprep.subr.mxu0 0.0
      %4075 = vmatpush1.msra.mxu0 0.0
      %4076 = vmatprep.subr.mxu0 0.0
      %4077 = vmatpush1.msra.mxu0 0.0
      %4078 = vmatprep.subr.mxu0 0.0
      %4079 = vmatpush1.msra.mxu0 0.0
      %4080 = vmatprep.subr.mxu0 0.0
      %4081 = vmatpush1.msra.mxu0 0.0
      %4082 = vmatprep.subr.mxu0 0.0
      %4083 = vmatpush1.msra.mxu0 0.0
      %4084 = vmatprep.subr.mxu0 0.0
      %4085 = vmatpush1.msra.mxu0 0.0
      %4086 = vmatprep.subr.mxu0 0.0
      %4087 = vmatpush1.msra.mxu0 0.0
      %4088 = vmatprep.subr.mxu0 0.0
      %4089 = vmatpush1.msra.mxu0 0.0
      %4090 = vmatprep.subr.mxu0 0.0
      %4091 = vmatpush1.msra.mxu0 0.0
      %4092 = vmatprep.subr.mxu0 0.0
      %4093 = vmatpush1.msra.mxu0 0.0
      %4094 = vmatprep.subr.mxu0 0.0
      %4095 = vmatpush1.msra.mxu0 0.0
      %4096 = vmatprep.subr.mxu0 0.0
      %4097 = vmatpush1.msra.mxu0 0.0
      %4098 = vmatprep.subr.mxu0 0.0
      %4099 = vmatpush1.msra.mxu0 0.0
      %4100 = vmatprep.subr.mxu0 0.0
      %4101 = vmatpush1.msra.mxu0 0.0
      %4102 = vmatprep.subr.mxu0 0.0
      %4103 = vmatpush1.msra.mxu0 0.0
      %4104 = vmatprep.subr.mxu0 0.0
      %4105 = vmatpush1.msra.mxu0 0.0
      %4106 = vmatprep.subr.mxu0 0.0
      %4107 = vmatpush1.msra.mxu0 0.0
      %4108 = vmatprep.subr.mxu0 0.0
      %4109 = vmatpush1.msra.mxu0 0.0
      %4110 = vmatprep.subr.mxu0 0.0
      %4111 = vmatpush1.msra.mxu0 0.0
      %4112 = vmatprep.subr.mxu0 0.0
      %4113 = vmatpush1.msra.mxu0 0.0
      %4114 = vmatprep.subr.mxu0 0.0
      %4115 = vmatpush1.msra.mxu0 0.0
      %4116 = vmatprep.subr.mxu0 0.0
      %4117 = vmatpush1.msra.mxu0 0.0
      %4118 = vmatprep.subr.mxu0 0.0
      %4119 = vmatpush1.msra.mxu0 0.0
      %4120 = vmatprep.subr.mxu0 0.0
      %4121 = vmatpush1.msra.mxu0 0.0
      %4122 = vmatprep.subr.mxu0 0.0
      %4123 = vmatpush1.msra.mxu0 0.0
      %4124 = vmatprep.subr.mxu0 0.0
      %4125 = vmatpush1.msra.mxu0 0.0
      %4126 = vmatprep.subr.mxu0 0.0
      %4127 = vmatpush1.msra.mxu0 0.0
      %4128 = vmatprep.subr.mxu0 0.0
      %4129 = vmatpush1.msra.mxu0 0.0
      %4130 = vmatprep.mubr.f32.mxu0 0.0
      %4131 = vmatmul.mubr.f32.gmra.mrb[0].mxu0 %v3968
      %v4132 = vpop.f32.mrb[0].mxu0
      %v4133 = vadd.f32 0.0, %v4132
      %v4134 = vpop.f32.mrb[0].mxu0
      %4135 = vmatprep.mubr.f32.mxu0 0.0
      %4136 = vmatmul.mubr.f32.gmra.mrb[0].mxu0 %v3971
      %v4137 = vpop.f32.mrb[0].mxu0
      %v4138 = vadd.f32 0.0, %v4137
      %v4139 = vpop.f32.mrb[0].mxu0
      %4140 = vmatprep.mubr.f32.mxu0 0.0
      %4141 = vmatmul.mubr.f32.gmra.mrb[0].mxu0 %v3974
      %v4142 = vpop.f32.mrb[0].mxu0
      %v4143 = vadd.f32 0.0, %v4142
      %v4144 = vpop.f32.mrb[0].mxu0
      %4145 = vmatprep.mubr.f32.mxu0 0.0
      %4146 = vmatmul.mubr.f32.gmra.mrb[0].mxu0 %v3977
      %v4147 = vpop.f32.mrb[0].mxu0
      %v4148 = vadd.f32 0.0, %v4147
      %v4149 = vpop.f32.mrb[0].mxu0
      %4150 = vmatprep.mubr.f32.mxu0 0.0
      %4151 = vmatmul.mubr.f32.gmra.mrb[0].mxu0 %v3980
      %v4152 = vpop.f32.mrb[0].mxu0
      %v4153 = vadd.f32 0.0, %v4152
      %v4154 = vpop.f32.mrb[0].mxu0
      %4155 = vmatprep.mubr.f32.mxu0 0.0
      %4156 = vmatmul.mubr.f32.gmra.mrb[0].mxu0 %v3983
      %v4157 = vpop.f32.mrb[0].mxu0
      %v4158 = vadd.f32 0.0, %v4157
      %v4159 = vpop.f32.mrb[0].mxu0
      %4160 = vmatprep.mubr.f32.mxu0 0.0
      %4161 = vmatmul.mubr.f32.gmra.mrb[0].mxu0 %v3986
      %v4162 = vpop.f32.mrb[0].mxu0
      %v4163 = vadd.f32 0.0, %v4162
      %v4164 = vpop.f32.mrb[0].mxu0
      %4165 = vmatprep.mubr.f32.mxu0 0.0
      %4166 = vmatmul.mubr.f32.gmra.mrb[0].mxu0 %v3989
      %v4167 = vpop.f32.mrb[0].mxu0
      %v4168 = vadd.f32 0.0, %v4167
      %v4169 = vpop.f32.mrb[0].mxu0
      %4170 = vmatprep.mubr.f32.mxu0 0.0
      %4171 = vmatmul.mubr.f32.gmra.mrb[0].mxu0 %v3992
      %v4172 = vpop.f32.mrb[0].mxu0
      %v4173 = vadd.f32 0.0, %v4172
      %v4174 = vpop.f32.mrb[0].mxu0
      %4175 = vmatprep.mubr.f32.mxu0 0.0
      %4176 = vmatmul.mubr.f32.gmra.mrb[0].mxu0 %v3995
      %v4177 = vpop.f32.mrb[0].mxu0
      %v4178 = vadd.f32 0.0, %v4177
      %v4179 = vpop.f32.mrb[0].mxu0
      %4180 = vmatprep.mubr.f32.mxu0 0.0
      %4181 = vmatmul.mubr.f32.gmra.mrb[0].mxu0 %v3998
      %v4182 = vpop.f32.mrb[0].mxu0
      %v4183 = vadd.f32 0.0, %v4182
      %v4184 = vpop.f32.mrb[0].mxu0
      %4185 = vmatprep.mubr.f32.mxu0 0.0
      %4186 = vmatmul.mubr.f32.gmra.mrb[0].mxu0 %v4001
      %v4187 = vpop.f32.mrb[0].mxu0
      %v4188 = vadd.f32 0.0, %v4187
      %v4189 = vpop.f32.mrb[0].mxu0
      %4190 = vmatprep.mubr.f32.mxu0 0.0
      %4191 = vmatmul.mubr.f32.gmra.mrb[0].mxu0 %v4004
      %v4192 = vpop.f32.mrb[0].mxu0
      %v4193 = vadd.f32 0.0, %v4192
      %v4194 = vpop.f32.mrb[0].mxu0
      %4195 = vmatprep.mubr.f32.mxu0 0.0
      %4196 = vmatmul.mubr.f32.gmra.mrb[0].mxu0 %v4007
      %v4197 = vpop.f32.mrb[0].mxu0
      %v4198 = vadd.f32 0.0, %v4197
      %v4199 = vpop.f32.mrb[0].mxu0
      %4200 = vmatprep.mubr.f32.mxu0 0.0
      %4201 = vmatmul.mubr.f32.gmra.mrb[0].mxu0 %v4010
      %v4202 = vpop.f32.mrb[0].mxu0
      %v4203 = vadd.f32 0.0, %v4202
      %v4204 = vpop.f32.mrb[0].mxu0
      %4205 = vmatprep.mubr.f32.mxu0 0.0
      %4206 = vmatmul.mubr.f32.gmra.mrb[0].mxu0 %v4013
      %v4207 = vpop.f32.mrb[0].mxu0
      %v4208 = vadd.f32 0.0, %v4207
      %v4209 = vpop.f32.mrb[0].mxu0
      %4210 = vmatprep.mubr.f32.mxu0 0.0
      %4211 = vmatmul.mubr.f32.gmra.mrb[0].mxu0 %v4016
      %v4212 = vpop.f32.mrb[0].mxu0
      %v4213 = vadd.f32 0.0, %v4212
      %v4214 = vpop.f32.mrb[0].mxu0
      %4215 = vmatprep.mubr.f32.mxu0 0.0
      %4216 = vmatmul.mubr.f32.gmra.mrb[0].mxu0 %v4019
      %v4217 = vpop.f32.mrb[0].mxu0
      %v4218 = vadd.f32 0.0, %v4217
      %v4219 = vpop.f32.mrb[0].mxu0
      %4220 = vmatprep.mubr.f32.mxu0 0.0
      %4221 = vmatmul.mubr.f32.gmra.mrb[0].mxu0 %v4022
      %v4222 = vpop.f32.mrb[0].mxu0
      %v4223 = vadd.f32 0.0, %v4222
      %v4224 = vpop.f32.mrb[0].mxu0
      %4225 = vmatprep.mubr.f32.mxu0 0.0
      %4226 = vmatmul.mubr.f32.gmra.mrb[0].mxu0 %v4025
      %v4227 = vpop.f32.mrb[0].mxu0
      %v4228 = vadd.f32 0.0, %v4227
      %v4229 = vpop.f32.mrb[0].mxu0
      %4230 = vmatprep.mubr.f32.mxu0 0.0
      %4231 = vmatmul.mubr.f32.gmra.mrb[0].mxu0 %v4028
      %v4232 = vpop.f32.mrb[0].mxu0
      %v4233 = vadd.f32 0.0, %v4232
      %v4234 = vpop.f32.mrb[0].mxu0
      %4235 = vmatprep.mubr.f32.mxu0 0.0
      %4236 = vmatmul.mubr.f32.gmra.mrb[0].mxu0 %v4031
      %v4237 = vpop.f32.mrb[0].mxu0
      %v4238 = vadd.f32 0.0, %v4237
      %v4239 = vpop.f32.mrb[0].mxu0
      %4240 = vmatprep.mubr.f32.mxu0 0.0
      %4241 = vmatmul.mubr.f32.gmra.mrb[0].mxu0 %v4034
      %v4242 = vpop.f32.mrb[0].mxu0
      %v4243 = vadd.f32 0.0, %v4242
      %v4244 = vpop.f32.mrb[0].mxu0
      %4245 = vmatprep.mubr.f32.mxu0 0.0
      %4246 = vmatmul.mubr.f32.gmra.mrb[0].mxu0 %v4037
      %v4247 = vpop.f32.mrb[0].mxu0
      %v4248 = vadd.f32 0.0, %v4247
      %v4249 = vpop.f32.mrb[0].mxu0
      %4250 = vmatprep.mubr.f32.mxu0 0.0
      %4251 = vmatmul.mubr.f32.gmra.mrb[0].mxu0 %v4040
      %v4252 = vpop.f32.mrb[0].mxu0
      %v4253 = vadd.f32 0.0, %v4252
      %v4254 = vpop.f32.mrb[0].mxu0
      %4255 = vmatprep.mubr.f32.mxu0 0.0
      %4256 = vmatmul.mubr.f32.gmra.mrb[0].mxu0 %v4043
      %v4257 = vpop.f32.mrb[0].mxu0
      %v4258 = vadd.f32 0.0, %v4257
      %v4259 = vpop.f32.mrb[0].mxu0
      %4260 = vmatprep.mubr.f32.mxu0 0.0
      %4261 = vmatmul.mubr.f32.gmra.mrb[0].mxu0 %v4046
      %v4262 = vpop.f32.mrb[0].mxu0
      %v4263 = vadd.f32 0.0, %v4262
      %v4264 = vpop.f32.mrb[0].mxu0
      %4265 = vmatprep.mubr.f32.mxu0 0.0
      %4266 = vmatmul.mubr.f32.gmra.mrb[0].mxu0 %v4049
      %v4267 = vpop.f32.mrb[0].mxu0
      %v4268 = vadd.f32 0.0, %v4267
      %v4269 = vpop.f32.mrb[0].mxu0
      %4270 = vmatprep.mubr.f32.mxu0 0.0
      %4271 = vmatmul.mubr.f32.gmra.mrb[0].mxu0 %v4052
      %v4272 = vpop.f32.mrb[0].mxu0
      %v4273 = vadd.f32 0.0, %v4272
      %v4274 = vpop.f32.mrb[0].mxu0
      %4275 = vmatprep.mubr.f32.mxu0 0.0
      %4276 = vmatmul.mubr.f32.gmra.mrb[0].mxu0 %v4055
      %v4277 = vpop.f32.mrb[0].mxu0
      %v4278 = vadd.f32 0.0, %v4277
      %v4279 = vpop.f32.mrb[0].mxu0
      %4280 = vmatprep.mubr.f32.mxu0 0.0
      %4281 = vmatmul.mubr.f32.gmra.mrb[0].mxu0 %v4058
      %v4282 = vpop.f32.mrb[0].mxu0
      %v4283 = vadd.f32 0.0, %v4282
      %v4284 = vpop.f32.mrb[0].mxu0
      %4285 = vmatprep.mubr.f32.mxu0 0.0
      %4286 = vmatmul.mubr.f32.gmra.mrb[0].mxu0 %v4061
      %v4287 = vpop.f32.mrb[0].mxu0
      %v4288 = vadd.f32 0.0, %v4287
      %v4289 = vpop.f32.mrb[0].mxu0
      %4290 = vdwg.mxu0
      %v4291 = vld [vmem:[#allocation3] sm:$0xff]
      %v4292 = vld [vmem:[#allocation3 + $0x8] sm:$0xff]
      %v4293 = vld [vmem:[#allocation3 + $0x10] sm:$0xff]
      %v4294 = vld [vmem:[#allocation3 + $0x18] sm:$0xff]
      %v4295 = vld [vmem:[#allocation3 + $0x20] sm:$0xff]
      %v4296 = vld [vmem:[#allocation3 + $0x28] sm:$0xff]
      %v4297 = vld [vmem:[#allocation3 + $0x30] sm:$0xff]
      %v4298 = vld [vmem:[#allocation3 + $0x38] sm:$0xff]
      %v4299 = vld [vmem:[#allocation3 + $0x40] sm:$0xff]
      %v4300 = vld [vmem:[#allocation3 + $0x48] sm:$0xff]
      %v4301 = vld [vmem:[#allocation3 + $0x50] sm:$0xff]
      %v4302 = vld [vmem:[#allocation3 + $0x58] sm:$0xff]
      %v4303 = vld [vmem:[#allocation3 + $0x60] sm:$0xff]
      %v4304 = vld [vmem:[#allocation3 + $0x68] sm:$0xff]
      %v4305 = vld [vmem:[#allocation3 + $0x70] sm:$0xff]
      %v4306 = vld [vmem:[#allocation3 + $0x78] sm:$0xff]
      %v4307 = vld [vmem:[#allocation3 + $0x80] sm:$0xff]
      %v4308 = vld [vmem:[#allocation3 + $0x88] sm:$0xff]
      %v4309 = vld [vmem:[#allocation3 + $0x90] sm:$0xff]
      %v4310 = vld [vmem:[#allocation3 + $0x98] sm:$0xff]
      %v4311 = vld [vmem:[#allocation3 + $0xa0] sm:$0xff]
      %v4312 = vld [vmem:[#allocation3 + $0xa8] sm:$0xff]
      %v4313 = vld [vmem:[#allocation3 + $0xb0] sm:$0xff]
      %v4314 = vld [vmem:[#allocation3 + $0xb8] sm:$0xff]
      %v4315 = vld [vmem:[#allocation3 + $0xc0] sm:$0xff]
      %v4316 = vld [vmem:[#allocation3 + $0xc8] sm:$0xff]
      %v4317 = vld [vmem:[#allocation3 + $0xd0] sm:$0xff]
      %v4318 = vld [vmem:[#allocation3 + $0xd8] sm:$0xff]
      %v4319 = vld [vmem:[#allocation3 + $0xe0] sm:$0xff]
      %v4320 = vld [vmem:[#allocation3 + $0xe8] sm:$0xff]
      %v4321 = vld [vmem:[#allocation3 + $0xf0] sm:$0xff]
      %v4322 = vld [vmem:[#allocation3 + $0xf8] sm:$0xff]
      %v4323 = vadd.f32 %v4291, %v4133
      %v4324 = vadd.f32 %v4292, %v4138
      %v4325 = vadd.f32 %v4293, %v4143
      %v4326 = vadd.f32 %v4294, %v4148
      %v4327 = vadd.f32 %v4295, %v4153
      %v4328 = vadd.f32 %v4296, %v4158
      %v4329 = vadd.f32 %v4297, %v4163
      %v4330 = vadd.f32 %v4298, %v4168
      %v4331 = vadd.f32 %v4299, %v4173
      %v4332 = vadd.f32 %v4300, %v4178
      %v4333 = vadd.f32 %v4301, %v4183
      %v4334 = vadd.f32 %v4302, %v4188
      %v4335 = vadd.f32 %v4303, %v4193
      %v4336 = vadd.f32 %v4304, %v4198
      %v4337 = vadd.f32 %v4305, %v4203
      %v4338 = vadd.f32 %v4306, %v4208
      %v4339 = vadd.f32 %v4307, %v4213
      %v4340 = vadd.f32 %v4308, %v4218
      %v4341 = vadd.f32 %v4309, %v4223
      %v4342 = vadd.f32 %v4310, %v4228
      %v4343 = vadd.f32 %v4311, %v4233
      %v4344 = vadd.f32 %v4312, %v4238
      %v4345 = vadd.f32 %v4313, %v4243
      %v4346 = vadd.f32 %v4314, %v4248
      %v4347 = vadd.f32 %v4315, %v4253
      %v4348 = vadd.f32 %v4316, %v4258
      %v4349 = vadd.f32 %v4317, %v4263
      %v4350 = vadd.f32 %v4318, %v4268
      %v4351 = vadd.f32 %v4319, %v4273
      %v4352 = vadd.f32 %v4320, %v4278
      %v4353 = vadd.f32 %v4321, %v4283
      %v4354 = vadd.f32 %v4322, %v4288
      %4355 = vst.msk [vmem:[#allocation3] sm:$0xff] %vm721, %v4323
      %4356 = vst.msk [vmem:[#allocation3 + $0x8] sm:$0xff] %vm721, %v4324
      %4357 = vst.msk [vmem:[#allocation3 + $0x10] sm:$0xff] %vm721, %v4325
      %4358 = vst.msk [vmem:[#allocation3 + $0x18] sm:$0xff] %vm721, %v4326
      %4359 = vst.msk [vmem:[#allocation3 + $0x20] sm:$0xff] %vm721, %v4327
      %4360 = vst.msk [vmem:[#allocation3 + $0x28] sm:$0xff] %vm721, %v4328
      %4361 = vst.msk [vmem:[#allocation3 + $0x30] sm:$0xff] %vm721, %v4329
      %4362 = vst.msk [vmem:[#allocation3 + $0x38] sm:$0xff] %vm721, %v4330
      %4363 = vst.msk [vmem:[#allocation3 + $0x40] sm:$0xff] %vm721, %v4331
      %4364 = vst.msk [vmem:[#allocation3 + $0x48] sm:$0xff] %vm721, %v4332
      %4365 = vst.msk [vmem:[#allocation3 + $0x50] sm:$0xff] %vm721, %v4333
      %4366 = vst.msk [vmem:[#allocation3 + $0x58] sm:$0xff] %vm721, %v4334
      %4367 = vst.msk [vmem:[#allocation3 + $0x60] sm:$0xff] %vm721, %v4335
      %4368 = vst.msk [vmem:[#allocation3 + $0x68] sm:$0xff] %vm721, %v4336
      %4369 = vst.msk [vmem:[#allocation3 + $0x70] sm:$0xff] %vm721, %v4337
      %4370 = vst.msk [vmem:[#allocation3 + $0x78] sm:$0xff] %vm721, %v4338
      %4371 = vst.msk [vmem:[#allocation3 + $0x80] sm:$0xff] %vm721, %v4339
      %4372 = vst.msk [vmem:[#allocation3 + $0x88] sm:$0xff] %vm721, %v4340
      %4373 = vst.msk [vmem:[#allocation3 + $0x90] sm:$0xff] %vm721, %v4341
      %4374 = vst.msk [vmem:[#allocation3 + $0x98] sm:$0xff] %vm721, %v4342
      %4375 = vst.msk [vmem:[#allocation3 + $0xa0] sm:$0xff] %vm721, %v4343
      %4376 = vst.msk [vmem:[#allocation3 + $0xa8] sm:$0xff] %vm721, %v4344
      %4377 = vst.msk [vmem:[#allocation3 + $0xb0] sm:$0xff] %vm721, %v4345
      %4378 = vst.msk [vmem:[#allocation3 + $0xb8] sm:$0xff] %vm721, %v4346
      %4379 = vst.msk [vmem:[#allocation3 + $0xc0] sm:$0xff] %vm721, %v4347
      %4380 = vst.msk [vmem:[#allocation3 + $0xc8] sm:$0xff] %vm721, %v4348
      %4381 = vst.msk [vmem:[#allocation3 + $0xd0] sm:$0xff] %vm721, %v4349
      %4382 = vst.msk [vmem:[#allocation3 + $0xd8] sm:$0xff] %vm721, %v4350
      %4383 = vst.msk [vmem:[#allocation3 + $0xe0] sm:$0xff] %vm721, %v4351
      %4384 = vst.msk [vmem:[#allocation3 + $0xe8] sm:$0xff] %vm721, %v4352
      %4385 = vst.msk [vmem:[#allocation3 + $0xf0] sm:$0xff] %vm721, %v4353
      %4386 = vst.msk [vmem:[#allocation3 + $0xf8] sm:$0xff] %vm721, %v4354
      %v4387 = vld [vmem:[#allocation3] sm:$0xff]
      %v4388 = vld [vmem:[#allocation3 + $0x8] sm:$0xff]
      %v4389 = vld [vmem:[#allocation3 + $0x10] sm:$0xff]
      %v4390 = vld [vmem:[#allocation3 + $0x18] sm:$0xff]
      %v4391 = vld [vmem:[#allocation3 + $0x20] sm:$0xff]
      %v4392 = vld [vmem:[#allocation3 + $0x28] sm:$0xff]
      %v4393 = vld [vmem:[#allocation3 + $0x30] sm:$0xff]
      %v4394 = vld [vmem:[#allocation3 + $0x38] sm:$0xff]
      %v4395 = vld [vmem:[#allocation3 + $0x40] sm:$0xff]
      %v4396 = vld [vmem:[#allocation3 + $0x48] sm:$0xff]
      %v4397 = vld [vmem:[#allocation3 + $0x50] sm:$0xff]
      %v4398 = vld [vmem:[#allocation3 + $0x58] sm:$0xff]
      %v4399 = vld [vmem:[#allocation3 + $0x60] sm:$0xff]
      %v4400 = vld [vmem:[#allocation3 + $0x68] sm:$0xff]
      %v4401 = vld [vmem:[#allocation3 + $0x70] sm:$0xff]
      %v4402 = vld [vmem:[#allocation3 + $0x78] sm:$0xff]
      %v4403 = vld [vmem:[#allocation3 + $0x80] sm:$0xff]
      %v4404 = vld [vmem:[#allocation3 + $0x88] sm:$0xff]
      %v4405 = vld [vmem:[#allocation3 + $0x90] sm:$0xff]
      %v4406 = vld [vmem:[#allocation3 + $0x98] sm:$0xff]
      %v4407 = vld [vmem:[#allocation3 + $0xa0] sm:$0xff]
      %v4408 = vld [vmem:[#allocation3 + $0xa8] sm:$0xff]
      %v4409 = vld [vmem:[#allocation3 + $0xb0] sm:$0xff]
      %v4410 = vld [vmem:[#allocation3 + $0xb8] sm:$0xff]
      %v4411 = vld [vmem:[#allocation3 + $0xc0] sm:$0xff]
      %v4412 = vld [vmem:[#allocation3 + $0xc8] sm:$0xff]
      %v4413 = vld [vmem:[#allocation3 + $0xd0] sm:$0xff]
      %v4414 = vld [vmem:[#allocation3 + $0xd8] sm:$0xff]
      %v4415 = vld [vmem:[#allocation3 + $0xe0] sm:$0xff]
      %v4416 = vld [vmem:[#allocation3 + $0xe8] sm:$0xff]
      %v4417 = vld [vmem:[#allocation3 + $0xf0] sm:$0xff]
      %v4418 = vld [vmem:[#allocation3 + $0xf8] sm:$0xff]
      %v4419 = vld [vmem:[%s2] sm:$0x1]
      %v4421 = vlaneseq
      %v4422 = vshrl.u32 %v4421, 7
      %v4423 = vsub.s32 0, %v4422
      %v4424 = vrot.slane %v4419, %v4423
      %v4426 = vadd.f32 %v4387, %v4424
      %v4427 = vadd.f32 %v4388, %v4424
      %v4428 = vadd.f32 %v4389, %v4424
      %v4429 = vadd.f32 %v4390, %v4424
      %v4430 = vadd.f32 %v4391, %v4424
      %v4431 = vadd.f32 %v4392, %v4424
      %v4432 = vadd.f32 %v4393, %v4424
      %v4433 = vadd.f32 %v4394, %v4424
      %v4434 = vadd.f32 %v4395, %v4424
      %v4435 = vadd.f32 %v4396, %v4424
      %v4436 = vadd.f32 %v4397, %v4424
      %v4437 = vadd.f32 %v4398, %v4424
      %v4438 = vadd.f32 %v4399, %v4424
      %v4439 = vadd.f32 %v4400, %v4424
      %v4440 = vadd.f32 %v4401, %v4424
      %v4441 = vadd.f32 %v4402, %v4424
      %v4442 = vadd.f32 %v4403, %v4424
      %v4443 = vadd.f32 %v4404, %v4424
      %v4444 = vadd.f32 %v4405, %v4424
      %v4445 = vadd.f32 %v4406, %v4424
      %v4446 = vadd.f32 %v4407, %v4424
      %v4447 = vadd.f32 %v4408, %v4424
      %v4448 = vadd.f32 %v4409, %v4424
      %v4449 = vadd.f32 %v4410, %v4424
      %v4450 = vadd.f32 %v4411, %v4424
      %v4451 = vadd.f32 %v4412, %v4424
      %v4452 = vadd.f32 %v4413, %v4424
      %v4453 = vadd.f32 %v4414, %v4424
      %v4454 = vadd.f32 %v4415, %v4424
      %v4455 = vadd.f32 %v4416, %v4424
      %v4456 = vadd.f32 %v4417, %v4424
      %v4457 = vadd.f32 %v4418, %v4424
      %4458 = vst.msk [vmem:[%s235] sm:$0xff] %vm721, %v4426
      %4459 = vst.msk [vmem:[%s235 + $0x8] sm:$0xff] %vm721, %v4427
      %4460 = vst.msk [vmem:[%s235 + $0x10] sm:$0xff] %vm721, %v4428
      %4461 = vst.msk [vmem:[%s235 + $0x18] sm:$0xff] %vm721, %v4429
      %4462 = vst.msk [vmem:[%s235 + $0x20] sm:$0xff] %vm721, %v4430
      %4463 = vst.msk [vmem:[%s235 + $0x28] sm:$0xff] %vm721, %v4431
      %4464 = vst.msk [vmem:[%s235 + $0x30] sm:$0xff] %vm721, %v4432
      %4465 = vst.msk [vmem:[%s235 + $0x38] sm:$0xff] %vm721, %v4433
      %4466 = vst.msk [vmem:[%s235 + $0x40] sm:$0xff] %vm721, %v4434
      %4467 = vst.msk [vmem:[%s235 + $0x48] sm:$0xff] %vm721, %v4435
      %4468 = vst.msk [vmem:[%s235 + $0x50] sm:$0xff] %vm721, %v4436
      %4469 = vst.msk [vmem:[%s235 + $0x58] sm:$0xff] %vm721, %v4437
      %4470 = vst.msk [vmem:[%s235 + $0x60] sm:$0xff] %vm721, %v4438
      %4471 = vst.msk [vmem:[%s235 + $0x68] sm:$0xff] %vm721, %v4439
      %4472 = vst.msk [vmem:[%s235 + $0x70] sm:$0xff] %vm721, %v4440
      %4473 = vst.msk [vmem:[%s235 + $0x78] sm:$0xff] %vm721, %v4441
      %4474 = vst.msk [vmem:[%s235 + $0x80] sm:$0xff] %vm721, %v4442
      %4475 = vst.msk [vmem:[%s235 + $0x88] sm:$0xff] %vm721, %v4443
      %4476 = vst.msk [vmem:[%s235 + $0x90] sm:$0xff] %vm721, %v4444
      %4477 = vst.msk [vmem:[%s235 + $0x98] sm:$0xff] %vm721, %v4445
      %4478 = vst.msk [vmem:[%s235 + $0xa0] sm:$0xff] %vm721, %v4446
      %4479 = vst.msk [vmem:[%s235 + $0xa8] sm:$0xff] %vm721, %v4447
      %4480 = vst.msk [vmem:[%s235 + $0xb0] sm:$0xff] %vm721, %v4448
      %4481 = vst.msk [vmem:[%s235 + $0xb8] sm:$0xff] %vm721, %v4449
      %4482 = vst.msk [vmem:[%s235 + $0xc0] sm:$0xff] %vm721, %v4450
      %4483 = vst.msk [vmem:[%s235 + $0xc8] sm:$0xff] %vm721, %v4451
      %4484 = vst.msk [vmem:[%s235 + $0xd0] sm:$0xff] %vm721, %v4452
      %4485 = vst.msk [vmem:[%s235 + $0xd8] sm:$0xff] %vm721, %v4453
      %4486 = vst.msk [vmem:[%s235 + $0xe0] sm:$0xff] %vm721, %v4454
      %4487 = vst.msk [vmem:[%s235 + $0xe8] sm:$0xff] %vm721, %v4455
      %4488 = vst.msk [vmem:[%s235 + $0xf0] sm:$0xff] %vm721, %v4456
      %4489 = vst.msk [vmem:[%s235 + $0xf8] sm:$0xff] %vm721, %v4457
      %v4490 = vsel %vm721, %v4426, 0.0
      %v4491 = vsel %vm721, %v4427, 0.0
      %v4492 = vadd.f32 %v4490, %v4491
      %v4493 = vsel %vm721, %v4428, 0.0
      %v4494 = vadd.f32 %v4492, %v4493
      %v4495 = vsel %vm721, %v4429, 0.0
      %v4496 = vadd.f32 %v4494, %v4495
      %v4497 = vsel %vm721, %v4430, 0.0
      %v4498 = vadd.f32 %v4496, %v4497
      %v4499 = vsel %vm721, %v4431, 0.0
      %v4500 = vadd.f32 %v4498, %v4499
      %v4501 = vsel %vm721, %v4432, 0.0
      %v4502 = vadd.f32 %v4500, %v4501
      %v4503 = vsel %vm721, %v4433, 0.0
      %v4504 = vadd.f32 %v4502, %v4503
      %v4505 = vsel %vm721, %v4434, 0.0
      %v4506 = vadd.f32 %v4504, %v4505
      %v4507 = vsel %vm721, %v4435, 0.0
      %v4508 = vadd.f32 %v4506, %v4507
      %v4509 = vsel %vm721, %v4436, 0.0
      %v4510 = vadd.f32 %v4508, %v4509
      %v4511 = vsel %vm721, %v4437, 0.0
      %v4512 = vadd.f32 %v4510, %v4511
      %v4513 = vsel %vm721, %v4438, 0.0
      %v4514 = vadd.f32 %v4512, %v4513
      %v4515 = vsel %vm721, %v4439, 0.0
      %v4516 = vadd.f32 %v4514, %v4515
      %v4517 = vsel %vm721, %v4440, 0.0
      %v4518 = vadd.f32 %v4516, %v4517
      %v4519 = vsel %vm721, %v4441, 0.0
      %v4520 = vadd.f32 %v4518, %v4519
      %v4521 = vsel %vm721, %v4442, 0.0
      %v4522 = vadd.f32 %v4520, %v4521
      %v4523 = vsel %vm721, %v4443, 0.0
      %v4524 = vadd.f32 %v4522, %v4523
      %v4525 = vsel %vm721, %v4444, 0.0
      %v4526 = vadd.f32 %v4524, %v4525
      %v4527 = vsel %vm721, %v4445, 0.0
      %v4528 = vadd.f32 %v4526, %v4527
      %v4529 = vsel %vm721, %v4446, 0.0
      %v4530 = vadd.f32 %v4528, %v4529
      %v4531 = vsel %vm721, %v4447, 0.0
      %v4532 = vadd.f32 %v4530, %v4531
      %v4533 = vsel %vm721, %v4448, 0.0
      %v4534 = vadd.f32 %v4532, %v4533
      %v4535 = vsel %vm721, %v4449, 0.0
      %v4536 = vadd.f32 %v4534, %v4535
      %v4537 = vsel %vm721, %v4450, 0.0
      %v4538 = vadd.f32 %v4536, %v4537
      %v4539 = vsel %vm721, %v4451, 0.0
      %v4540 = vadd.f32 %v4538, %v4539
      %v4541 = vsel %vm721, %v4452, 0.0
      %v4542 = vadd.f32 %v4540, %v4541
      %v4543 = vsel %vm721, %v4453, 0.0
      %v4544 = vadd.f32 %v4542, %v4543
      %v4545 = vsel %vm721, %v4454, 0.0
      %v4546 = vadd.f32 %v4544, %v4545
      %v4547 = vsel %vm721, %v4455, 0.0
      %v4548 = vadd.f32 %v4546, %v4547
      %v4549 = vsel %vm721, %v4456, 0.0
      %v4550 = vadd.f32 %v4548, %v4549
      %v4551 = vsel %vm721, %v4457, 0.0
      %v4552 = vadd.f32 %v4550, %v4551
      %v4553 = vrot.slane %v4552, 4
      %v4554 = vadd.f32 %v4552, %v4553
      %v4555 = vrot.slane %v4554, 2
      %v4556 = vadd.f32 %v4554, %v4555
      %v4557 = vrot.slane %v4556, 1
      %v4558 = vadd.f32 %v4556, %v4557
      %vm4559 = vcmask 57344
      %4560 = vst.msk [vmem:[%s238] sm:$0x1] %vm4559, %v4558
      %v4561 = vmul.f32 %v4426, %v4426
      %v4562 = vmul.f32 %v4427, %v4427
      %v4563 = vmul.f32 %v4428, %v4428
      %v4564 = vmul.f32 %v4429, %v4429
      %v4565 = vmul.f32 %v4430, %v4430
      %v4566 = vmul.f32 %v4431, %v4431
      %v4567 = vmul.f32 %v4432, %v4432
      %v4568 = vmul.f32 %v4433, %v4433
      %v4569 = vmul.f32 %v4434, %v4434
      %v4570 = vmul.f32 %v4435, %v4435
      %v4571 = vmul.f32 %v4436, %v4436
      %v4572 = vmul.f32 %v4437, %v4437
      %v4573 = vmul.f32 %v4438, %v4438
      %v4574 = vmul.f32 %v4439, %v4439
      %v4575 = vmul.f32 %v4440, %v4440
      %v4576 = vmul.f32 %v4441, %v4441
      %v4577 = vmul.f32 %v4442, %v4442
      %v4578 = vmul.f32 %v4443, %v4443
      %v4579 = vmul.f32 %v4444, %v4444
      %v4580 = vmul.f32 %v4445, %v4445
      %v4581 = vmul.f32 %v4446, %v4446
      %v4582 = vmul.f32 %v4447, %v4447
      %v4583 = vmul.f32 %v4448, %v4448
      %v4584 = vmul.f32 %v4449, %v4449
      %v4585 = vmul.f32 %v4450, %v4450
      %v4586 = vmul.f32 %v4451, %v4451
      %v4587 = vmul.f32 %v4452, %v4452
      %v4588 = vmul.f32 %v4453, %v4453
      %v4589 = vmul.f32 %v4454, %v4454
      %v4590 = vmul.f32 %v4455, %v4455
      %v4591 = vmul.f32 %v4456, %v4456
      %v4592 = vmul.f32 %v4457, %v4457
      %v4593 = vsel %vm721, %v4561, 0.0
      %v4594 = vsel %vm721, %v4562, 0.0
      %v4595 = vadd.f32 %v4593, %v4594
      %v4596 = vsel %vm721, %v4563, 0.0
      %v4597 = vadd.f32 %v4595, %v4596
      %v4598 = vsel %vm721, %v4564, 0.0
      %v4599 = vadd.f32 %v4597, %v4598
      %v4600 = vsel %vm721, %v4565, 0.0
      %v4601 = vadd.f32 %v4599, %v4600
      %v4602 = vsel %vm721, %v4566, 0.0
      %v4603 = vadd.f32 %v4601, %v4602
      %v4604 = vsel %vm721, %v4567, 0.0
      %v4605 = vadd.f32 %v4603, %v4604
      %v4606 = vsel %vm721, %v4568, 0.0
      %v4607 = vadd.f32 %v4605, %v4606
      %v4608 = vsel %vm721, %v4569, 0.0
      %v4609 = vadd.f32 %v4607, %v4608
      %v4610 = vsel %vm721, %v4570, 0.0
      %v4611 = vadd.f32 %v4609, %v4610
      %v4612 = vsel %vm721, %v4571, 0.0
      %v4613 = vadd.f32 %v4611, %v4612
      %v4614 = vsel %vm721, %v4572, 0.0
      %v4615 = vadd.f32 %v4613, %v4614
      %v4616 = vsel %vm721, %v4573, 0.0
      %v4617 = vadd.f32 %v4615, %v4616
      %v4618 = vsel %vm721, %v4574, 0.0
      %v4619 = vadd.f32 %v4617, %v4618
      %v4620 = vsel %vm721, %v4575, 0.0
      %v4621 = vadd.f32 %v4619, %v4620
      %v4622 = vsel %vm721, %v4576, 0.0
      %v4623 = vadd.f32 %v4621, %v4622
      %v4624 = vsel %vm721, %v4577, 0.0
      %v4625 = vadd.f32 %v4623, %v4624
      %v4626 = vsel %vm721, %v4578, 0.0
      %v4627 = vadd.f32 %v4625, %v4626
      %v4628 = vsel %vm721, %v4579, 0.0
      %v4629 = vadd.f32 %v4627, %v4628
      %v4630 = vsel %vm721, %v4580, 0.0
      %v4631 = vadd.f32 %v4629, %v4630
      %v4632 = vsel %vm721, %v4581, 0.0
      %v4633 = vadd.f32 %v4631, %v4632
      %v4634 = vsel %vm721, %v4582, 0.0
      %v4635 = vadd.f32 %v4633, %v4634
      %v4636 = vsel %vm721, %v4583, 0.0
      %v4637 = vadd.f32 %v4635, %v4636
      %v4638 = vsel %vm721, %v4584, 0.0
      %v4639 = vadd.f32 %v4637, %v4638
      %v4640 = vsel %vm721, %v4585, 0.0
      %v4641 = vadd.f32 %v4639, %v4640
      %v4642 = vsel %vm721, %v4586, 0.0
      %v4643 = vadd.f32 %v4641, %v4642
      %v4644 = vsel %vm721, %v4587, 0.0
      %v4645 = vadd.f32 %v4643, %v4644
      %v4646 = vsel %vm721, %v4588, 0.0
      %v4647 = vadd.f32 %v4645, %v4646
      %v4648 = vsel %vm721, %v4589, 0.0
      %v4649 = vadd.f32 %v4647, %v4648
      %v4650 = vsel %vm721, %v4590, 0.0
      %v4651 = vadd.f32 %v4649, %v4650
      %v4652 = vsel %vm721, %v4591, 0.0
      %v4653 = vadd.f32 %v4651, %v4652
      %v4654 = vsel %vm721, %v4592, 0.0
      %v4655 = vadd.f32 %v4653, %v4654
      %v4656 = vrot.slane %v4655, 4
      %v4657 = vadd.f32 %v4655, %v4656
      %v4658 = vrot.slane %v4657, 2
      %v4659 = vadd.f32 %v4657, %v4658
      %v4660 = vrot.slane %v4659, 1
      %v4661 = vadd.f32 %v4659, %v4660
      %4662 = vst.msk [vmem:[%s241] sm:$0x1] %vm4559, %v4661
      %p4663 = scmp.lt.s32.totalorder %s17, 1
      %s4664 = scalar_select %p4663, %s17, 1
      %s4665 = smul.addr %s4664, 32
      %s4666 = smul.addr %s4665, 8
      %s4667 = scalar_lea.vmem %s3, %s4666
      %p4668 = scmp.lt.s32.totalorder %s17, 1
      %s4669 = scalar_select %p4668, %s17, 1
      %s4670 = scalar_lea.vmem %s4, %s4669
      %p4671 = scmp.lt.s32.totalorder %s17, 1
      %s4672 = scalar_select %p4671, %s17, 1
      %s4673 = scalar_lea.vmem %s5, %s4672
      // Predicated region
      $region33: #{_forward_impl.2} parent=31 // pred_check
        %p4674 = pneg %p103
      $region34: #{_forward_impl.2} parent=31 // pred_check_branch
        %4676 = sbr.rel (%p4674) target = $region36
      $region35: #{_forward_impl.2} parent=31 // pred_region
        _
      $region36: #{_forward_impl.2} parent=31 // pred_fallthru
        _
      // Predicated region
      $region37: #{_forward_impl.2} parent=31 // pred_check
        %p4677 = pneg %p129
      $region38: #{_forward_impl.2} parent=31 // pred_check_branch
        %4679 = sbr.rel (%p4677) target = $region40
      $region39: #{_forward_impl.2} parent=31 // pred_region
        _
      $region40: #{_forward_impl.2} parent=31 // pred_fallthru
        _
      // Predicated region
      $region41: #{_forward_impl.2} parent=31 // pred_check
        %p4680 = pneg %p155
      $region42: #{_forward_impl.2} parent=31 // pred_check_branch
        %4682 = sbr.rel (%p4680) target = $region44
      $region43: #{_forward_impl.2} parent=31 // pred_region
        _
      $region44: #{_forward_impl.2} parent=31 // pred_fallthru
        _
    $region32: #{_forward_impl.2} parent=5 // pred_fallthru
      _
    %p4683 = scmp.le.s32.totalorder 2, %s12
    // Predicated region
    $region45: #{_forward_impl.2} parent=5 // pred_check
      %p4684 = pneg %p4683
    $region46: #{_forward_impl.2} parent=5 // pred_check_branch
      %4686 = sbr.rel (%p4684) target = $region48
    $region47: #{_forward_impl.2} parent=5 // pred_region
      %s4687 = ssub.s32 %s12, 2
      // Predicated region
      $region49: #{_forward_impl.2} parent=47 // pred_check
        %p4688 = pneg %p109
      $region50: #{_forward_impl.2} parent=47 // pred_check_branch
        %4690 = sbr.rel (%p4688) target = $region52
      $region51: #{_forward_impl.2} parent=47 // pred_region
        %p4691 = scmp.lt.s32.totalorder %s18, 1
        %s4692 = scalar_select %p4691, %s18, 1
        %s4693 = smul.addr %s4692, 32
        %s4694 = smul.addr %s4693, 8
        %s4695 = scalar_lea.vmem %s3, %s4694
      $region52: #{_forward_impl.2} parent=47 // pred_fallthru
        _
      // Predicated region
      $region53: #{_forward_impl.2} parent=47 // pred_check
        %p4696 = pneg %p135
      $region54: #{_forward_impl.2} parent=47 // pred_check_branch
        %4698 = sbr.rel (%p4696) target = $region56
      $region55: #{_forward_impl.2} parent=47 // pred_region
        %p4699 = scmp.lt.s32.totalorder %s18, 1
        %s4700 = scalar_select %p4699, %s18, 1
        %s4701 = scalar_lea.vmem %s4, %s4700
      $region56: #{_forward_impl.2} parent=47 // pred_fallthru
        _
      // Predicated region
      $region57: #{_forward_impl.2} parent=47 // pred_check
        %p4702 = pneg %p161
      $region58: #{_forward_impl.2} parent=47 // pred_check_branch
        %4704 = sbr.rel (%p4702) target = $region60
      $region59: #{_forward_impl.2} parent=47 // pred_region
        %p4705 = scmp.lt.s32.totalorder %s18, 1
        %s4706 = scalar_select %p4705, %s18, 1
        %s4707 = scalar_lea.vmem %s5, %s4706
      $region60: #{_forward_impl.2} parent=47 // pred_fallthru
        _
    $region48: #{_forward_impl.2} parent=5 // pred_fallthru
      _
  $region6: #{_forward_impl.2} parent=0 // loop_footer
    %s16 = sadd.s32 1, %s12
  $region7: #{_forward_impl.2} parent=0 // loop_footer_branch
    %11 = sbr.rel target = $region3
  $region8: #{_forward_impl.2} parent=0 // loop_exit
    _

</llo_original>
